<compile_context>
chip_gen: v7x
topology: tpu7x:2x2x1
jax: 0.10.0
libtpu: 0.0.40
codegen_flags: <defaults>
</compile_context>

<pallas_src>
import numpy as np
import jax
import jax.numpy as jnp
from jax.experimental import pallas as pl
from jax.experimental.pallas import tpu as pltpu


def _pick_tile_n(N):
    """Positions per attention grid step: multiple of 8 dividing N, <= 256."""
    if N <= 256:
        return N
    for tn in range(256, 7, -8):
        if N % tn == 0:
            return tn
    return N


# -----------------------------------------------------------------------------
# Fully fused forward kernel:
#   attention + LSTM (all layers) + predict_Linear + masked BCE-with-logits
# -----------------------------------------------------------------------------
def fused_forward_pallas(gru_flat, ce2, cid2, cur2, tgt2, res2,
                         concept_w, transdim_wT, lstm_layers, pred_wT, pred_b,
                         bs, T, L):
    """gru_flat:   (N*L, 128) f32   N = bs*T, row = (position, tree-node)
       ce2/cid2:   (N, C) f32       lane-dense c_embed / c_id
       cur2:       (N, 2) f32
       tgt2:       (N, C) f32       target_c
       res2:       (N, 1) f32       result
       concept_w:  (C, E) f32
       transdim_wT:(128, E) f32
       lstm_layers: layer 0 -> {'wc_T'(C,4H),'wa_T'(E,4H),'wr_T'(2,4H),'whh_T'(H,4H),'bias'(1,4H)}
                    layer>0 -> {'wih_T'(H,4H),'whh_T'(H,4H),'bias'(1,4H)}
       returns loss (1,1), sigmoid(pred_scaled) (N,1), mask (N,1) -- all f32."""
    N = bs * T
    NL, D = gru_flat.shape
    C = ce2.shape[1]
    E = concept_w.shape[1]
    Rcur = cur2.shape[1]
    H4 = lstm_layers[0]["whh_T"].shape[1]
    H = H4 // 4
    n_layers = len(lstm_layers)

    TN = _pick_tile_n(N)
    G = N // TN
    n_in = 8 + 5 + 3 * (n_layers - 1) + 2

    def kernel(*refs):
        in_refs = refs[:n_in]
        loss_ref, sig_ref, mask_ref = refs[n_in:n_in + 3]
        attn_scr, hs_scr = refs[n_in + 3:n_in + 5]
        (gru_ref, ce_ref, cid_ref, cur_ref, tgt_ref, res_ref,
         cw_ref, wt_ref) = in_refs[:8]
        layer_refs = in_refs[8:n_in - 2]
        pred_w_ref, pred_b_ref = in_refs[n_in - 2:n_in]

        bf16 = jnp.bfloat16
        f32 = jnp.float32
        i = pl.program_id(0)

        # -------- attention for this tile of TN positions (bf16 MXU, f32 acc) ----
        # cast to bf16 in-kernel: gru_input is read from HBM exactly once, as f32
        g = jnp.dot(gru_ref[...].astype(bf16), wt_ref[...].astype(bf16),
                    preferred_element_type=f32)                     # (TN*L, E)
        g3 = g.reshape(TN, L, E)
        off = pl.multiple_of(i * TN, TN)
        ce_t = ce_ref[pl.ds(off, TN), :]                            # (TN, C)
        cid_t = cid_ref[pl.ds(off, TN), :]                          # (TN, C)
        q = ce_t[:, :, None] * cw_ref[...][None, :, :]              # concept query (TN,C,E)
        w = jnp.einsum('nce,nle->ncl', q, g3, preferred_element_type=f32)
        w = jax.nn.softmax(w, axis=-1)
        o = jnp.einsum('ncl,nle->nce', w, g3, preferred_element_type=f32)
        o = o * ce_t[:, :, None]
        num = jnp.sum(cid_t, axis=-1, keepdims=True)                # (TN, 1)
        num = jnp.where(num == 0.0, 1.0, num)                       # masked_fill(num==0, 1)
        attn_scr[pl.ds(off, TN), :] = jnp.sum(o, axis=1) / num      # (TN, E)

        # -------- epilogue on last tile: LSTM + predict + masked BCE -------------
        @pl.when(i == pl.num_programs(0) - 1)
        def _epilogue():
            def run_layer(gx, whh_bf):
                """gx: (N, 4H) position(b)-major input projection; writes hs_scr."""
                gx3 = gx.reshape(bs, T, 4 * H)
                h = jnp.zeros((bs, H), f32)
                c = jnp.zeros((bs, H), f32)
                for t in range(T):                                   # static unroll
                    gates = gx3[:, t, :] + jnp.dot(h.astype(bf16), whh_bf,
                                                   preferred_element_type=f32)  # (bs,4H)
                    sg = jax.nn.sigmoid(gates)                       # i,f,o: one EUP pass
                    th = jnp.tanh(gates)                             # g:     one EUP pass
                    c = sg[:, H:2 * H] * c + sg[:, 0:H] * th[:, 2 * H:3 * H]
                    h = sg[:, 3 * H:4 * H] * jnp.tanh(c)
                    hs_scr[:, pl.ds(t, 1), :] = h.reshape(bs, 1, H)  # VMEM, no concat

            # layer 0: hoisted input projection, feature-concat fused via split weights
            gx0 = (jnp.dot(ce_ref[...].astype(bf16), layer_refs[0][...].astype(bf16),
                           preferred_element_type=f32)
                   + jnp.dot(attn_scr[...].astype(bf16), layer_refs[1][...].astype(bf16),
                             preferred_element_type=f32)
                   + jnp.dot(cur_ref[...].astype(bf16), layer_refs[2][...].astype(bf16),
                             preferred_element_type=f32)
                   + layer_refs[4][...])                             # (N, 4H)
            run_layer(gx0, layer_refs[3][...].astype(bf16))

            for l in range(1, n_layers):
                base = 5 + 3 * (l - 1)
                hs_prev = hs_scr[...].reshape(N, H)
                gx = (jnp.dot(hs_prev.astype(bf16), layer_refs[base][...].astype(bf16),
                              preferred_element_type=f32)
                      + layer_refs[base + 2][...])
                run_layer(gx, layer_refs[base + 1][...].astype(bf16))

            # fused predict_Linear epilogue (rows already in position order)
            hs = hs_scr[...].reshape(N, H)
            pred = jnp.dot(hs.astype(bf16), pred_w_ref[...].astype(bf16),
                           preferred_element_type=f32) + pred_b_ref[...]    # (N, C)

            # masked BCE-with-logits, fused
            tgt = tgt_ref[...]                                       # (N, C)
            pred1d = jnp.sum(pred * tgt, axis=1, keepdims=True)      # (N, 1)
            nc = jnp.sum(tgt, axis=1, keepdims=True)                 # (N, 1)
            mask = nc > 0.0
            ps = pred1d / jnp.where(mask, nc, 1.0)                   # (N, 1)
            r = res_ref[...]                                         # (N, 1)
            bce = (jnp.maximum(ps, 0.0) - ps * r
                   + jnp.log(1.0 + jnp.exp(-jnp.abs(ps))))
            mask_f = mask.astype(f32)
            n_valid = jnp.maximum(jnp.sum(mask_f, keepdims=True), 1.0)   # (1, 1)
            loss_ref[...] = jnp.sum(jnp.where(mask, bce, 0.0), keepdims=True) / n_valid
            sig_ref[...] = jax.nn.sigmoid(ps)
            mask_ref[...] = mask_f

    def _full(shape):
        z = (0,) * len(shape)
        return pl.BlockSpec(shape, lambda i, _z=z: _z)

    in_specs = [
        pl.BlockSpec((TN * L, D), lambda i: (i, 0)),   # gru_flat tiled over positions
        _full((N, C)), _full((N, C)), _full((N, Rcur)),
        _full((N, C)), _full((N, 1)),
        _full((C, E)), _full((D, E)),
    ]
    args = [gru_flat, ce2, cid2, cur2, tgt2, res2, concept_w, transdim_wT]
    for l, layer in enumerate(lstm_layers):
        keys = ("wc_T", "wa_T", "wr_T", "whh_T", "bias") if l == 0 else \
               ("wih_T", "whh_T", "bias")
        for k in keys:
            arr = layer[k]
            in_specs.append(_full(arr.shape))
            args.append(arr)
    in_specs += [_full(pred_wT.shape), _full(pred_b.shape)]
    args += [pred_wT, pred_b]

    out_shape = (
        jax.ShapeDtypeStruct((1, 1), jnp.float32),
        jax.ShapeDtypeStruct((N, 1), jnp.float32),
        jax.ShapeDtypeStruct((N, 1), jnp.float32),
    )
    out_specs = (
        pl.BlockSpec((1, 1), lambda i: (0, 0)),
        pl.BlockSpec((N, 1), lambda i: (0, 0)),
        pl.BlockSpec((N, 1), lambda i: (0, 0)),
    )

    return pl.pallas_call(
        kernel,
        out_shape=out_shape,
        grid=(G,),
        in_specs=in_specs,
        out_specs=out_specs,
        scratch_shapes=[
            pltpu.VMEM((N, E), jnp.float32),       # attention output, persists across tiles
            pltpu.VMEM((bs, T, H), jnp.float32),   # per-layer hidden sequence
        ],
        compiler_params=pltpu.CompilerParams(dimension_semantics=("arbitrary",)),
    )(*args)


# -----------------------------------------------------------------------------
# MODEL forward core (fully jit-able; static shapes; no host sync)
# -----------------------------------------------------------------------------
def model_forward_core(params, c_id, target_c, result, c_embed, cur_result, gru_input):
    bs, seqlen, C = c_id.shape
    L, D = gru_input.shape[2], gru_input.shape[3]
    N = bs * seqlen

    loss, sig, mask_f = fused_forward_pallas(
        gru_input.reshape(N * L, D).astype(jnp.float32),
        c_embed.reshape(N, C).astype(jnp.float32),
        c_id.reshape(N, C).astype(jnp.float32),
        cur_result.reshape(N, -1).astype(jnp.float32),
        target_c.reshape(N, C).astype(jnp.float32),
        result.reshape(N, 1).astype(jnp.float32),
        params["concept_embedding"],
        params["transdim_wT"],
        params["lstm"],
        params["pred_wT"],
        params["pred_b"],
        bs, seqlen, L)

    return loss[0, 0], sig.reshape(-1), result.reshape(-1), mask_f.reshape(-1) > 0.5


_model_forward_core_jit = jax.jit(model_forward_core)


def model_forward(params, c_id, target_c, result, c_embed, cur_result, gru_input):
    """PyTorch-compatible return (loss, sigmoid(filtered_pred), filtered_target).
    Training loops should call `_model_forward_core_jit` directly (dense outputs +
    mask, no host sync); the masked_select below is host-side by necessity
    (dynamic output shape) and is done only when these filtered values are needed."""
    loss, sig_all, tgt_all, mask = _model_forward_core_jit(
        params, c_id, target_c, result, c_embed, cur_result, gru_input)
    m = np.asarray(mask)
    sig_filtered = jnp.asarray(np.asarray(sig_all)[m])
    tgt_filtered = jnp.asarray(np.asarray(tgt_all)[m])
    return loss, sig_filtered, tgt_filtered


# -----------------------------------------------------------------------------
# Deterministic parameter init + example run
# -----------------------------------------------------------------------------
def init_params(key, num_concepts, concept_embed_dim, hidden_dim, hidden_layers):
    C = num_concepts + 1
    E = concept_embed_dim
    H = hidden_dim
    F = 2 + E + C  # LSTM_feature_dim (order: [c_embed | attn_out | cur_result])
    ks = jax.random.split(key, 4 + 4 * hidden_layers)
    params = {
        "concept_embedding": 0.1 * jax.random.normal(ks[0], (C, E), jnp.float32),
        "transdim_wT": 0.1 * jax.random.normal(ks[1], (128, E), jnp.float32),
        "pred_wT": 0.1 * jax.random.normal(ks[2], (H, C), jnp.float32),
        "pred_b": jnp.zeros((1, C), jnp.float32),
        "lstm": [],
    }
    for l in range(hidden_layers):
        in_dim = F if l == 0 else H
        wih = 0.1 * jax.random.normal(ks[4 + 4 * l + 0], (4 * H, in_dim), jnp.float32)
        whh = 0.1 * jax.random.normal(ks[4 + 4 * l + 1], (4 * H, H), jnp.float32)
        bih = 0.05 * jax.random.normal(ks[4 + 4 * l + 2], (4 * H,), jnp.float32)
        bhh = 0.05 * jax.random.normal(ks[4 + 4 * l + 3], (4 * H,), jnp.float32)
        layer = {"whh_T": whh.T, "bias": (bih + bhh).reshape(1, 4 * H)}
        wih_T = wih.T                                   # (in_dim, 4H)
        if l == 0:
            layer["wc_T"] = wih_T[:C]                   # c_embed rows
            layer["wa_T"] = wih_T[C:C + E]              # attn_out rows
            layer["wr_T"] = wih_T[C + E:]               # cur_result rows
        else:
            layer["wih_T"] = wih_T
        params["lstm"].append(layer)
    return params


if __name__ == "__main__":
    key = jax.random.PRNGKey(0)
    bs, seqlen, max_len = 2, 8, 8
    num_concepts = 15           # -> C = 16
    concept_embed_dim = 32
    ast_encode_dim = 128        # fixed: transdim is Linear(128, concept_embed_dim)
    hidden_dim = 32
    hidden_layers = 1
    C = num_concepts + 1

    params = init_params(key, num_concepts, concept_embed_dim, hidden_dim, hidden_layers)

    k1, k2, k3, k4, k5, k6 = jax.random.split(jax.random.PRNGKey(1), 6)
    c_id = jax.random.bernoulli(k1, 0.4, (bs, seqlen, C)).astype(jnp.float32)
    c_embed = jax.random.bernoulli(k2, 0.4, (bs, seqlen, C)).astype(jnp.float32)
    target_c = jax.random.bernoulli(k3, 0.5, (bs, seqlen, C)).astype(jnp.float32)
    result = jax.random.bernoulli(k4, 0.5, (bs * seqlen, 1)).astype(jnp.float32)
    cur_result = jax.random.normal(k5, (bs, seqlen, 2), jnp.float32)
    # stands in for BatchTreeEncoder output (recursive tree traversal not translatable)
    gru_input = jax.random.normal(k6, (bs, seqlen, max_len, ast_encode_dim), jnp.float32)

    loss, sig_pred, filt_target = model_forward(
        params, c_id, target_c, result, c_embed, cur_result, gru_input)

    jax.block_until_ready((loss, sig_pred, filt_target))
    assert np.isfinite(float(loss))
    assert sig_pred.shape == filt_target.shape
    assert np.all(np.asarray(sig_pred) >= 0.0) and np.all(np.asarray(sig_pred) <= 1.0)
    print("KERNEL_OK")
</pallas_src>

<mosaic_0001>
module attributes {stable_mosaic.version = 11 : i64} {
  func.func @kernel(%arg0: i32, %arg1: memref<128x128xf32, #tpu.memory_space<vmem>>, %arg2: memref<16x16xf32, #tpu.memory_space<vmem>>, %arg3: memref<16x16xf32, #tpu.memory_space<vmem>>, %arg4: memref<16x2xf32, #tpu.memory_space<vmem>>, %arg5: memref<16x16xf32, #tpu.memory_space<vmem>>, %arg6: memref<16x1xf32, #tpu.memory_space<vmem>>, %arg7: memref<16x32xf32, #tpu.memory_space<vmem>>, %arg8: memref<128x32xf32, #tpu.memory_space<vmem>>, %arg9: memref<16x128xf32, #tpu.memory_space<vmem>>, %arg10: memref<32x128xf32, #tpu.memory_space<vmem>>, %arg11: memref<2x128xf32, #tpu.memory_space<vmem>>, %arg12: memref<32x128xf32, #tpu.memory_space<vmem>>, %arg13: memref<1x128xf32, #tpu.memory_space<vmem>>, %arg14: memref<32x16xf32, #tpu.memory_space<vmem>>, %arg15: memref<1x16xf32, #tpu.memory_space<vmem>>, %arg16: memref<1x1xf32, #tpu.memory_space<vmem>>, %arg17: memref<16x1xf32, #tpu.memory_space<vmem>>, %arg18: memref<16x1xf32, #tpu.memory_space<vmem>>, %arg19: memref<16x32xf32, #tpu.memory_space<vmem>>, %arg20: memref<2x8x32xf32, #tpu.memory_space<vmem>>) attributes {dimension_semantics = [#tpu.dimension_semantics<arbitrary>], iteration_bounds = array<i64: 1>, scalar_prefetch = 0 : i64, scratch_operands = 2 : i64, tpu.core_type = #tpu.core_type<tc>, window_params = [{transform_indices = @transform_0, window_bounds = array<i64: 128, 128>}, {pipeline_mode = #tpu.pipeline_mode<synchronous>, transform_indices = @transform_1, window_bounds = array<i64: 16, 16>}, {pipeline_mode = #tpu.pipeline_mode<synchronous>, transform_indices = @transform_2, window_bounds = array<i64: 16, 16>}, {pipeline_mode = #tpu.pipeline_mode<synchronous>, transform_indices = @transform_3, window_bounds = array<i64: 16, 2>}, {pipeline_mode = #tpu.pipeline_mode<synchronous>, transform_indices = @transform_4, window_bounds = array<i64: 16, 16>}, {pipeline_mode = #tpu.pipeline_mode<synchronous>, transform_indices = @transform_5, window_bounds = array<i64: 16, 1>}, {pipeline_mode = #tpu.pipeline_mode<synchronous>, transform_indices = @transform_6, window_bounds = array<i64: 16, 32>}, {pipeline_mode = #tpu.pipeline_mode<synchronous>, transform_indices = @transform_7, window_bounds = array<i64: 128, 32>}, {pipeline_mode = #tpu.pipeline_mode<synchronous>, transform_indices = @transform_8, window_bounds = array<i64: 16, 128>}, {pipeline_mode = #tpu.pipeline_mode<synchronous>, transform_indices = @transform_9, window_bounds = array<i64: 32, 128>}, {pipeline_mode = #tpu.pipeline_mode<synchronous>, transform_indices = @transform_10, window_bounds = array<i64: 2, 128>}, {pipeline_mode = #tpu.pipeline_mode<synchronous>, transform_indices = @transform_11, window_bounds = array<i64: 32, 128>}, {pipeline_mode = #tpu.pipeline_mode<synchronous>, transform_indices = @transform_12, window_bounds = array<i64: 1, 128>}, {pipeline_mode = #tpu.pipeline_mode<synchronous>, transform_indices = @transform_13, window_bounds = array<i64: 32, 16>}, {pipeline_mode = #tpu.pipeline_mode<synchronous>, transform_indices = @transform_14, window_bounds = array<i64: 1, 16>}, {pipeline_mode = #tpu.pipeline_mode<synchronous>, transform_indices = @transform_15, window_bounds = array<i64: 1, 1>}, {pipeline_mode = #tpu.pipeline_mode<synchronous>, transform_indices = @transform_16, window_bounds = array<i64: 16, 1>}, {pipeline_mode = #tpu.pipeline_mode<synchronous>, transform_indices = @transform_17, window_bounds = array<i64: 16, 1>}]} {
    %c0 = arith.constant 0 : index
    %c0_0 = arith.constant 0 : index
    %0 = vector.load %arg1[%c0, %c0_0] : memref<128x128xf32, #tpu.memory_space<vmem>>, vector<128x128xf32>
    %1 = arith.truncf %0 : vector<128x128xf32> to vector<128x128xbf16>
    %c0_1 = arith.constant 0 : index
    %c0_2 = arith.constant 0 : index
    %2 = vector.load %arg8[%c0_1, %c0_2] : memref<128x32xf32, #tpu.memory_space<vmem>>, vector<128x32xf32>
    %3 = arith.truncf %2 : vector<128x32xf32> to vector<128x32xbf16>
    %cst = arith.constant dense<0.000000e+00> : vector<128x32xf32>
    %4 = tpu.matmul %1, %3, %cst {dimension_numbers = #tpu.dot_dimension_numbers<[1], [0], [0], [1], [0, 0, 1, 1], [], []>} : vector<128x128xbf16>, vector<128x32xbf16>, vector<128x32xf32> -> vector<128x32xf32>
    %5 = vector.shape_cast %4 : vector<128x32xf32> to vector<16x8x32xf32>
    %c16_i32 = arith.constant 16 : i32
    %6 = arith.muli %arg0, %c16_i32 : i32
    %7 = tpu.assume_multiple %6, 16 : i32
    %8 = arith.index_cast %7 : i32 to index
    %c0_3 = arith.constant 0 : index
    %9 = vector.load %arg2[%8, %c0_3] : memref<16x16xf32, #tpu.memory_space<vmem>>, vector<16x16xf32>
    %10 = arith.index_cast %7 : i32 to index
    %c0_4 = arith.constant 0 : index
    %11 = vector.load %arg3[%10, %c0_4] : memref<16x16xf32, #tpu.memory_space<vmem>>, vector<16x16xf32>
    %12 = vector.shape_cast %9 : vector<16x16xf32> to vector<16x16x1xf32>
    %c0_5 = arith.constant 0 : index
    %c0_6 = arith.constant 0 : index
    %13 = vector.load %arg7[%c0_5, %c0_6] : memref<16x32xf32, #tpu.memory_space<vmem>>, vector<16x32xf32>
    %14 = vector.shape_cast %13 : vector<16x32xf32> to vector<1x16x32xf32>
    %15 = vector.broadcast %12 : vector<16x16x1xf32> to vector<16x16x32xf32>
    %16 = vector.broadcast %14 : vector<1x16x32xf32> to vector<16x16x32xf32>
    %17 = arith.mulf %15, %16 : vector<16x16x32xf32>
    "tpu.trace_start"() <{level = 10 : i32, message = "nce,nle->ncl"}> : () -> ()
    %cst_7 = arith.constant dense<0.000000e+00> : vector<16x16x8xf32>
    %18 = tpu.matmul %17, %5, %cst_7 {dimension_numbers = #tpu.dot_dimension_numbers<[2], [2], [1], [1], [0, 0, 0, 1, 1, 1], [0], [0]>} : vector<16x16x32xf32>, vector<16x8x32xf32>, vector<16x16x8xf32> -> vector<16x16x8xf32>
    "tpu.trace_stop"() : () -> ()
    %cst_8 = arith.constant dense<0xFF800000> : vector<16x16xf32>
    %19 = vector.multi_reduction <maximumf>, %18, %cst_8 [2] : vector<16x16x8xf32> to vector<16x16xf32>
    %cst_9 = arith.constant 0xFF800000 : f32
    %20 = vector.broadcast %cst_9 : f32 to vector<16x16xf32>
    %21 = arith.maximumf %20, %19 : vector<16x16xf32>
    %22 = vector.shape_cast %21 : vector<16x16xf32> to vector<16x16x1xf32>
    %23 = vector.broadcast %22 : vector<16x16x1xf32> to vector<16x16x8xf32>
    %24 = arith.subf %18, %23 : vector<16x16x8xf32>
    %25 = math.exp %24 : vector<16x16x8xf32>
    %cst_10 = arith.constant dense<0.000000e+00> : vector<16x16xf32>
    %26 = vector.multi_reduction <add>, %25, %cst_10 [2] : vector<16x16x8xf32> to vector<16x16xf32>
    %27 = vector.shape_cast %26 : vector<16x16xf32> to vector<16x16x1xf32>
    %28 = vector.broadcast %27 : vector<16x16x1xf32> to vector<16x16x8xf32>
    %29 = arith.divf %25, %28 : vector<16x16x8xf32>
    "tpu.trace_start"() <{level = 10 : i32, message = "ncl,nle->nce"}> : () -> ()
    %cst_11 = arith.constant dense<0.000000e+00> : vector<16x16x32xf32>
    %30 = tpu.matmul %29, %5, %cst_11 {dimension_numbers = #tpu.dot_dimension_numbers<[2], [1], [1], [2], [0, 0, 0, 1, 1, 2], [0], [0]>} : vector<16x16x8xf32>, vector<16x8x32xf32>, vector<16x16x32xf32> -> vector<16x16x32xf32>
    "tpu.trace_stop"() : () -> ()
    %31 = vector.shape_cast %9 : vector<16x16xf32> to vector<16x16x1xf32>
    %32 = vector.broadcast %31 : vector<16x16x1xf32> to vector<16x16x32xf32>
    %33 = arith.mulf %30, %32 : vector<16x16x32xf32>
    %cst_12 = arith.constant dense<0.000000e+00> : vector<16xf32>
    %34 = vector.multi_reduction <add>, %11, %cst_12 [1] : vector<16x16xf32> to vector<16xf32>
    %35 = vector.shape_cast %34 : vector<16xf32> to vector<16x1xf32>
    %cst_13 = arith.constant 0.000000e+00 : f32
    %36 = vector.broadcast %cst_13 : f32 to vector<16x1xf32>
    %37 = arith.cmpf oeq, %35, %36 : vector<16x1xf32>
    %cst_14 = arith.constant 1.000000e+00 : f32
    %38 = vector.broadcast %cst_14 : f32 to vector<16x1xf32>
    %39 = arith.select %37, %38, %35 : vector<16x1xi1>, vector<16x1xf32>
    %cst_15 = arith.constant dense<0.000000e+00> : vector<16x32xf32>
    %40 = vector.multi_reduction <add>, %33, %cst_15 [1] : vector<16x16x32xf32> to vector<16x32xf32>
    %41 = vector.broadcast %39 : vector<16x1xf32> to vector<16x32xf32>
    %42 = arith.divf %40, %41 : vector<16x32xf32>
    %43 = arith.index_cast %7 : i32 to index
    %c0_16 = arith.constant 0 : index
    %44 = vector.load %arg19[%43, %c0_16] : memref<16x32xf32, #tpu.memory_space<vmem>>, vector<16x32xf32>
    tpu.vector_store %arg19[%43, %c0_16], %42 {strides = array<i32>} : memref<16x32xf32, #tpu.memory_space<vmem>>, vector<16x32xf32>,
    %c0_i32 = arith.constant 0 : i32
    %45 = arith.cmpi eq, %arg0, %c0_i32 : i32
    %46 = arith.extui %45 : i1 to i32
    %c0_i32_17 = arith.constant 0 : i32
    %47 = arith.cmpi ne, %46, %c0_i32_17 : i32
    scf.if %47 {
      %c0_18 = arith.constant 0 : index
      %c0_19 = arith.constant 0 : index
      %48 = vector.load %arg2[%c0_18, %c0_19] : memref<16x16xf32, #tpu.memory_space<vmem>>, vector<16x16xf32>
      %49 = arith.truncf %48 : vector<16x16xf32> to vector<16x16xbf16>
      %c0_20 = arith.constant 0 : index
      %c0_21 = arith.constant 0 : index
      %50 = vector.load %arg9[%c0_20, %c0_21] : memref<16x128xf32, #tpu.memory_space<vmem>>, vector<16x128xf32>
      %51 = arith.truncf %50 : vector<16x128xf32> to vector<16x128xbf16>
      %cst_22 = arith.constant dense<0.000000e+00> : vector<16x128xf32>
      %52 = tpu.matmul %49, %51, %cst_22 {dimension_numbers = #tpu.dot_dimension_numbers<[1], [0], [0], [1], [0, 0, 1, 1], [], []>} : vector<16x16xbf16>, vector<16x128xbf16>, vector<16x128xf32> -> vector<16x128xf32>
      %c0_23 = arith.constant 0 : index
      %c0_24 = arith.constant 0 : index
      %53 = vector.load %arg19[%c0_23, %c0_24] : memref<16x32xf32, #tpu.memory_space<vmem>>, vector<16x32xf32>
      %54 = arith.truncf %53 : vector<16x32xf32> to vector<16x32xbf16>
      %c0_25 = arith.constant 0 : index
      %c0_26 = arith.constant 0 : index
      %55 = vector.load %arg10[%c0_25, %c0_26] : memref<32x128xf32, #tpu.memory_space<vmem>>, vector<32x128xf32>
      %56 = arith.truncf %55 : vector<32x128xf32> to vector<32x128xbf16>
      %cst_27 = arith.constant dense<0.000000e+00> : vector<16x128xf32>
      %57 = tpu.matmul %54, %56, %cst_27 {dimension_numbers = #tpu.dot_dimension_numbers<[1], [0], [0], [1], [0, 0, 1, 1], [], []>} : vector<16x32xbf16>, vector<32x128xbf16>, vector<16x128xf32> -> vector<16x128xf32>
      %58 = arith.addf %52, %57 : vector<16x128xf32>
      %c0_28 = arith.constant 0 : index
      %c0_29 = arith.constant 0 : index
      %59 = vector.load %arg4[%c0_28, %c0_29] : memref<16x2xf32, #tpu.memory_space<vmem>>, vector<16x2xf32>
      %60 = arith.truncf %59 : vector<16x2xf32> to vector<16x2xbf16>
      %c0_30 = arith.constant 0 : index
      %c0_31 = arith.constant 0 : index
      %61 = vector.load %arg11[%c0_30, %c0_31] : memref<2x128xf32, #tpu.memory_space<vmem>>, vector<2x128xf32>
      %62 = arith.truncf %61 : vector<2x128xf32> to vector<2x128xbf16>
      %cst_32 = arith.constant dense<0.000000e+00> : vector<16x128xf32>
      %63 = tpu.matmul %60, %62, %cst_32 {dimension_numbers = #tpu.dot_dimension_numbers<[1], [0], [0], [1], [0, 0, 1, 1], [], []>} : vector<16x2xbf16>, vector<2x128xbf16>, vector<16x128xf32> -> vector<16x128xf32>
      %64 = arith.addf %58, %63 : vector<16x128xf32>
      %c0_33 = arith.constant 0 : index
      %c0_34 = arith.constant 0 : index
      %65 = vector.load %arg13[%c0_33, %c0_34] : memref<1x128xf32, #tpu.memory_space<vmem>>, vector<1x128xf32>
      %66 = vector.broadcast %65 : vector<1x128xf32> to vector<16x128xf32>
      %67 = arith.addf %64, %66 : vector<16x128xf32>
      %c0_35 = arith.constant 0 : index
      %c0_36 = arith.constant 0 : index
      %68 = vector.load %arg12[%c0_35, %c0_36] : memref<32x128xf32, #tpu.memory_space<vmem>>, vector<32x128xf32>
      %69 = arith.truncf %68 : vector<32x128xf32> to vector<32x128xbf16>
      %70 = vector.shape_cast %67 : vector<16x128xf32> to vector<2x8x128xf32>
      %cst_37 = arith.constant 0.000000e+00 : f32
      %71 = vector.broadcast %cst_37 : f32 to vector<2x32xf32>
      %cst_38 = arith.constant 0.000000e+00 : f32
      %72 = vector.broadcast %cst_38 : f32 to vector<2x32xf32>
      %73 = vector.extract_strided_slice %70 {offsets = [0, 0, 0], sizes = [2, 1, 128], strides = [1, 1, 1]} : vector<2x8x128xf32> to vector<2x1x128xf32>
      %74 = vector.shape_cast %73 : vector<2x1x128xf32> to vector<2x128xf32>
      %75 = arith.truncf %71 : vector<2x32xf32> to vector<2x32xbf16>
      %cst_39 = arith.constant dense<0.000000e+00> : vector<2x128xf32>
      %76 = tpu.matmul %75, %69, %cst_39 {dimension_numbers = #tpu.dot_dimension_numbers<[1], [0], [0], [1], [0, 0, 1, 1], [], []>} : vector<2x32xbf16>, vector<32x128xbf16>, vector<2x128xf32> -> vector<2x128xf32>
      %77 = arith.addf %74, %76 : vector<2x128xf32>
      %78 = arith.negf %77 : vector<2x128xf32>
      %79 = math.exp %78 : vector<2x128xf32>
      %cst_40 = arith.constant 1.000000e+00 : f32
      %80 = vector.broadcast %cst_40 : f32 to vector<2x128xf32>
      %81 = arith.addf %80, %79 : vector<2x128xf32>
      %82 = arith.divf %80, %81 : vector<2x128xf32>
      %83 = math.tanh %77 : vector<2x128xf32>
      %84 = vector.extract_strided_slice %82 {offsets = [0, 32], sizes = [2, 32], strides = [1, 1]} : vector<2x128xf32> to vector<2x32xf32>
      %85 = arith.mulf %84, %72 : vector<2x32xf32>
      %86 = vector.extract_strided_slice %82 {offsets = [0, 0], sizes = [2, 32], strides = [1, 1]} : vector<2x128xf32> to vector<2x32xf32>
      %87 = vector.extract_strided_slice %83 {offsets = [0, 64], sizes = [2, 32], strides = [1, 1]} : vector<2x128xf32> to vector<2x32xf32>
      %88 = arith.mulf %86, %87 : vector<2x32xf32>
      %89 = arith.addf %85, %88 : vector<2x32xf32>
      %90 = vector.extract_strided_slice %82 {offsets = [0, 96], sizes = [2, 32], strides = [1, 1]} : vector<2x128xf32> to vector<2x32xf32>
      %91 = math.tanh %89 : vector<2x32xf32>
      %92 = arith.mulf %90, %91 : vector<2x32xf32>
      %93 = vector.shape_cast %92 : vector<2x32xf32> to vector<2x1x32xf32>
      %c0_41 = arith.constant 0 : index
      %c0_42 = arith.constant 0 : index
      %c0_43 = arith.constant 0 : index
      %94 = vector.load %arg20[%c0_41, %c0_42, %c0_43] : memref<2x8x32xf32, #tpu.memory_space<vmem>>, vector<2x1x32xf32>
      tpu.vector_store %arg20[%c0_41, %c0_42, %c0_43], %93 {strides = array<i32>} : memref<2x8x32xf32, #tpu.memory_space<vmem>>, vector<2x1x32xf32>,
      %95 = vector.extract_strided_slice %70 {offsets = [0, 1, 0], sizes = [2, 1, 128], strides = [1, 1, 1]} : vector<2x8x128xf32> to vector<2x1x128xf32>
      %96 = vector.shape_cast %95 : vector<2x1x128xf32> to vector<2x128xf32>
      %97 = arith.truncf %92 : vector<2x32xf32> to vector<2x32xbf16>
      %cst_44 = arith.constant dense<0.000000e+00> : vector<2x128xf32>
      %98 = tpu.matmul %97, %69, %cst_44 {dimension_numbers = #tpu.dot_dimension_numbers<[1], [0], [0], [1], [0, 0, 1, 1], [], []>} : vector<2x32xbf16>, vector<32x128xbf16>, vector<2x128xf32> -> vector<2x128xf32>
      %99 = arith.addf %96, %98 : vector<2x128xf32>
      %100 = arith.negf %99 : vector<2x128xf32>
      %101 = math.exp %100 : vector<2x128xf32>
      %cst_45 = arith.constant 1.000000e+00 : f32
      %102 = vector.broadcast %cst_45 : f32 to vector<2x128xf32>
      %103 = arith.addf %102, %101 : vector<2x128xf32>
      %104 = arith.divf %102, %103 : vector<2x128xf32>
      %105 = math.tanh %99 : vector<2x128xf32>
      %106 = vector.extract_strided_slice %104 {offsets = [0, 32], sizes = [2, 32], strides = [1, 1]} : vector<2x128xf32> to vector<2x32xf32>
      %107 = arith.mulf %106, %89 : vector<2x32xf32>
      %108 = vector.extract_strided_slice %104 {offsets = [0, 0], sizes = [2, 32], strides = [1, 1]} : vector<2x128xf32> to vector<2x32xf32>
      %109 = vector.extract_strided_slice %105 {offsets = [0, 64], sizes = [2, 32], strides = [1, 1]} : vector<2x128xf32> to vector<2x32xf32>
      %110 = arith.mulf %108, %109 : vector<2x32xf32>
      %111 = arith.addf %107, %110 : vector<2x32xf32>
      %112 = vector.extract_strided_slice %104 {offsets = [0, 96], sizes = [2, 32], strides = [1, 1]} : vector<2x128xf32> to vector<2x32xf32>
      %113 = math.tanh %111 : vector<2x32xf32>
      %114 = arith.mulf %112, %113 : vector<2x32xf32>
      %115 = vector.shape_cast %114 : vector<2x32xf32> to vector<2x1x32xf32>
      %c0_46 = arith.constant 0 : index
      %c1 = arith.constant 1 : index
      %c0_47 = arith.constant 0 : index
      %116 = vector.load %arg20[%c0_46, %c1, %c0_47] : memref<2x8x32xf32, #tpu.memory_space<vmem>>, vector<2x1x32xf32>
      tpu.vector_store %arg20[%c0_46, %c1, %c0_47], %115 {strides = array<i32>} : memref<2x8x32xf32, #tpu.memory_space<vmem>>, vector<2x1x32xf32>,
      %117 = vector.extract_strided_slice %70 {offsets = [0, 2, 0], sizes = [2, 1, 128], strides = [1, 1, 1]} : vector<2x8x128xf32> to vector<2x1x128xf32>
      %118 = vector.shape_cast %117 : vector<2x1x128xf32> to vector<2x128xf32>
      %119 = arith.truncf %114 : vector<2x32xf32> to vector<2x32xbf16>
      %cst_48 = arith.constant dense<0.000000e+00> : vector<2x128xf32>
      %120 = tpu.matmul %119, %69, %cst_48 {dimension_numbers = #tpu.dot_dimension_numbers<[1], [0], [0], [1], [0, 0, 1, 1], [], []>} : vector<2x32xbf16>, vector<32x128xbf16>, vector<2x128xf32> -> vector<2x128xf32>
      %121 = arith.addf %118, %120 : vector<2x128xf32>
      %122 = arith.negf %121 : vector<2x128xf32>
      %123 = math.exp %122 : vector<2x128xf32>
      %cst_49 = arith.constant 1.000000e+00 : f32
      %124 = vector.broadcast %cst_49 : f32 to vector<2x128xf32>
      %125 = arith.addf %124, %123 : vector<2x128xf32>
      %126 = arith.divf %124, %125 : vector<2x128xf32>
      %127 = math.tanh %121 : vector<2x128xf32>
      %128 = vector.extract_strided_slice %126 {offsets = [0, 32], sizes = [2, 32], strides = [1, 1]} : vector<2x128xf32> to vector<2x32xf32>
      %129 = arith.mulf %128, %111 : vector<2x32xf32>
      %130 = vector.extract_strided_slice %126 {offsets = [0, 0], sizes = [2, 32], strides = [1, 1]} : vector<2x128xf32> to vector<2x32xf32>
      %131 = vector.extract_strided_slice %127 {offsets = [0, 64], sizes = [2, 32], strides = [1, 1]} : vector<2x128xf32> to vector<2x32xf32>
      %132 = arith.mulf %130, %131 : vector<2x32xf32>
      %133 = arith.addf %129, %132 : vector<2x32xf32>
      %134 = vector.extract_strided_slice %126 {offsets = [0, 96], sizes = [2, 32], strides = [1, 1]} : vector<2x128xf32> to vector<2x32xf32>
      %135 = math.tanh %133 : vector<2x32xf32>
      %136 = arith.mulf %134, %135 : vector<2x32xf32>
      %137 = vector.shape_cast %136 : vector<2x32xf32> to vector<2x1x32xf32>
      %c0_50 = arith.constant 0 : index
      %c2 = arith.constant 2 : index
      %c0_51 = arith.constant 0 : index
      %138 = vector.load %arg20[%c0_50, %c2, %c0_51] : memref<2x8x32xf32, #tpu.memory_space<vmem>>, vector<2x1x32xf32>
      tpu.vector_store %arg20[%c0_50, %c2, %c0_51], %137 {strides = array<i32>} : memref<2x8x32xf32, #tpu.memory_space<vmem>>, vector<2x1x32xf32>,
      %139 = vector.extract_strided_slice %70 {offsets = [0, 3, 0], sizes = [2, 1, 128], strides = [1, 1, 1]} : vector<2x8x128xf32> to vector<2x1x128xf32>
      %140 = vector.shape_cast %139 : vector<2x1x128xf32> to vector<2x128xf32>
      %141 = arith.truncf %136 : vector<2x32xf32> to vector<2x32xbf16>
      %cst_52 = arith.constant dense<0.000000e+00> : vector<2x128xf32>
      %142 = tpu.matmul %141, %69, %cst_52 {dimension_numbers = #tpu.dot_dimension_numbers<[1], [0], [0], [1], [0, 0, 1, 1], [], []>} : vector<2x32xbf16>, vector<32x128xbf16>, vector<2x128xf32> -> vector<2x128xf32>
      %143 = arith.addf %140, %142 : vector<2x128xf32>
      %144 = arith.negf %143 : vector<2x128xf32>
      %145 = math.exp %144 : vector<2x128xf32>
      %cst_53 = arith.constant 1.000000e+00 : f32
      %146 = vector.broadcast %cst_53 : f32 to vector<2x128xf32>
      %147 = arith.addf %146, %145 : vector<2x128xf32>
      %148 = arith.divf %146, %147 : vector<2x128xf32>
      %149 = math.tanh %143 : vector<2x128xf32>
      %150 = vector.extract_strided_slice %148 {offsets = [0, 32], sizes = [2, 32], strides = [1, 1]} : vector<2x128xf32> to vector<2x32xf32>
      %151 = arith.mulf %150, %133 : vector<2x32xf32>
      %152 = vector.extract_strided_slice %148 {offsets = [0, 0], sizes = [2, 32], strides = [1, 1]} : vector<2x128xf32> to vector<2x32xf32>
      %153 = vector.extract_strided_slice %149 {offsets = [0, 64], sizes = [2, 32], strides = [1, 1]} : vector<2x128xf32> to vector<2x32xf32>
      %154 = arith.mulf %152, %153 : vector<2x32xf32>
      %155 = arith.addf %151, %154 : vector<2x32xf32>
      %156 = vector.extract_strided_slice %148 {offsets = [0, 96], sizes = [2, 32], strides = [1, 1]} : vector<2x128xf32> to vector<2x32xf32>
      %157 = math.tanh %155 : vector<2x32xf32>
      %158 = arith.mulf %156, %157 : vector<2x32xf32>
      %159 = vector.shape_cast %158 : vector<2x32xf32> to vector<2x1x32xf32>
      %c0_54 = arith.constant 0 : index
      %c3 = arith.constant 3 : index
      %c0_55 = arith.constant 0 : index
      %160 = vector.load %arg20[%c0_54, %c3, %c0_55] : memref<2x8x32xf32, #tpu.memory_space<vmem>>, vector<2x1x32xf32>
      tpu.vector_store %arg20[%c0_54, %c3, %c0_55], %159 {strides = array<i32>} : memref<2x8x32xf32, #tpu.memory_space<vmem>>, vector<2x1x32xf32>,
      %161 = vector.extract_strided_slice %70 {offsets = [0, 4, 0], sizes = [2, 1, 128], strides = [1, 1, 1]} : vector<2x8x128xf32> to vector<2x1x128xf32>
      %162 = vector.shape_cast %161 : vector<2x1x128xf32> to vector<2x128xf32>
      %163 = arith.truncf %158 : vector<2x32xf32> to vector<2x32xbf16>
      %cst_56 = arith.constant dense<0.000000e+00> : vector<2x128xf32>
      %164 = tpu.matmul %163, %69, %cst_56 {dimension_numbers = #tpu.dot_dimension_numbers<[1], [0], [0], [1], [0, 0, 1, 1], [], []>} : vector<2x32xbf16>, vector<32x128xbf16>, vector<2x128xf32> -> vector<2x128xf32>
      %165 = arith.addf %162, %164 : vector<2x128xf32>
      %166 = arith.negf %165 : vector<2x128xf32>
      %167 = math.exp %166 : vector<2x128xf32>
      %cst_57 = arith.constant 1.000000e+00 : f32
      %168 = vector.broadcast %cst_57 : f32 to vector<2x128xf32>
      %169 = arith.addf %168, %167 : vector<2x128xf32>
      %170 = arith.divf %168, %169 : vector<2x128xf32>
      %171 = math.tanh %165 : vector<2x128xf32>
      %172 = vector.extract_strided_slice %170 {offsets = [0, 32], sizes = [2, 32], strides = [1, 1]} : vector<2x128xf32> to vector<2x32xf32>
      %173 = arith.mulf %172, %155 : vector<2x32xf32>
      %174 = vector.extract_strided_slice %170 {offsets = [0, 0], sizes = [2, 32], strides = [1, 1]} : vector<2x128xf32> to vector<2x32xf32>
      %175 = vector.extract_strided_slice %171 {offsets = [0, 64], sizes = [2, 32], strides = [1, 1]} : vector<2x128xf32> to vector<2x32xf32>
      %176 = arith.mulf %174, %175 : vector<2x32xf32>
      %177 = arith.addf %173, %176 : vector<2x32xf32>
      %178 = vector.extract_strided_slice %170 {offsets = [0, 96], sizes = [2, 32], strides = [1, 1]} : vector<2x128xf32> to vector<2x32xf32>
      %179 = math.tanh %177 : vector<2x32xf32>
      %180 = arith.mulf %178, %179 : vector<2x32xf32>
      %181 = vector.shape_cast %180 : vector<2x32xf32> to vector<2x1x32xf32>
      %c0_58 = arith.constant 0 : index
      %c4 = arith.constant 4 : index
      %c0_59 = arith.constant 0 : index
      %182 = vector.load %arg20[%c0_58, %c4, %c0_59] : memref<2x8x32xf32, #tpu.memory_space<vmem>>, vector<2x1x32xf32>
      tpu.vector_store %arg20[%c0_58, %c4, %c0_59], %181 {strides = array<i32>} : memref<2x8x32xf32, #tpu.memory_space<vmem>>, vector<2x1x32xf32>,
      %183 = vector.extract_strided_slice %70 {offsets = [0, 5, 0], sizes = [2, 1, 128], strides = [1, 1, 1]} : vector<2x8x128xf32> to vector<2x1x128xf32>
      %184 = vector.shape_cast %183 : vector<2x1x128xf32> to vector<2x128xf32>
      %185 = arith.truncf %180 : vector<2x32xf32> to vector<2x32xbf16>
      %cst_60 = arith.constant dense<0.000000e+00> : vector<2x128xf32>
      %186 = tpu.matmul %185, %69, %cst_60 {dimension_numbers = #tpu.dot_dimension_numbers<[1], [0], [0], [1], [0, 0, 1, 1], [], []>} : vector<2x32xbf16>, vector<32x128xbf16>, vector<2x128xf32> -> vector<2x128xf32>
      %187 = arith.addf %184, %186 : vector<2x128xf32>
      %188 = arith.negf %187 : vector<2x128xf32>
      %189 = math.exp %188 : vector<2x128xf32>
      %cst_61 = arith.constant 1.000000e+00 : f32
      %190 = vector.broadcast %cst_61 : f32 to vector<2x128xf32>
      %191 = arith.addf %190, %189 : vector<2x128xf32>
      %192 = arith.divf %190, %191 : vector<2x128xf32>
      %193 = math.tanh %187 : vector<2x128xf32>
      %194 = vector.extract_strided_slice %192 {offsets = [0, 32], sizes = [2, 32], strides = [1, 1]} : vector<2x128xf32> to vector<2x32xf32>
      %195 = arith.mulf %194, %177 : vector<2x32xf32>
      %196 = vector.extract_strided_slice %192 {offsets = [0, 0], sizes = [2, 32], strides = [1, 1]} : vector<2x128xf32> to vector<2x32xf32>
      %197 = vector.extract_strided_slice %193 {offsets = [0, 64], sizes = [2, 32], strides = [1, 1]} : vector<2x128xf32> to vector<2x32xf32>
      %198 = arith.mulf %196, %197 : vector<2x32xf32>
      %199 = arith.addf %195, %198 : vector<2x32xf32>
      %200 = vector.extract_strided_slice %192 {offsets = [0, 96], sizes = [2, 32], strides = [1, 1]} : vector<2x128xf32> to vector<2x32xf32>
      %201 = math.tanh %199 : vector<2x32xf32>
      %202 = arith.mulf %200, %201 : vector<2x32xf32>
      %203 = vector.shape_cast %202 : vector<2x32xf32> to vector<2x1x32xf32>
      %c0_62 = arith.constant 0 : index
      %c5 = arith.constant 5 : index
      %c0_63 = arith.constant 0 : index
      %204 = vector.load %arg20[%c0_62, %c5, %c0_63] : memref<2x8x32xf32, #tpu.memory_space<vmem>>, vector<2x1x32xf32>
      tpu.vector_store %arg20[%c0_62, %c5, %c0_63], %203 {strides = array<i32>} : memref<2x8x32xf32, #tpu.memory_space<vmem>>, vector<2x1x32xf32>,
      %205 = vector.extract_strided_slice %70 {offsets = [0, 6, 0], sizes = [2, 1, 128], strides = [1, 1, 1]} : vector<2x8x128xf32> to vector<2x1x128xf32>
      %206 = vector.shape_cast %205 : vector<2x1x128xf32> to vector<2x128xf32>
      %207 = arith.truncf %202 : vector<2x32xf32> to vector<2x32xbf16>
      %cst_64 = arith.constant dense<0.000000e+00> : vector<2x128xf32>
      %208 = tpu.matmul %207, %69, %cst_64 {dimension_numbers = #tpu.dot_dimension_numbers<[1], [0], [0], [1], [0, 0, 1, 1], [], []>} : vector<2x32xbf16>, vector<32x128xbf16>, vector<2x128xf32> -> vector<2x128xf32>
      %209 = arith.addf %206, %208 : vector<2x128xf32>
      %210 = arith.negf %209 : vector<2x128xf32>
      %211 = math.exp %210 : vector<2x128xf32>
      %cst_65 = arith.constant 1.000000e+00 : f32
      %212 = vector.broadcast %cst_65 : f32 to vector<2x128xf32>
      %213 = arith.addf %212, %211 : vector<2x128xf32>
      %214 = arith.divf %212, %213 : vector<2x128xf32>
      %215 = math.tanh %209 : vector<2x128xf32>
      %216 = vector.extract_strided_slice %214 {offsets = [0, 32], sizes = [2, 32], strides = [1, 1]} : vector<2x128xf32> to vector<2x32xf32>
      %217 = arith.mulf %216, %199 : vector<2x32xf32>
      %218 = vector.extract_strided_slice %214 {offsets = [0, 0], sizes = [2, 32], strides = [1, 1]} : vector<2x128xf32> to vector<2x32xf32>
      %219 = vector.extract_strided_slice %215 {offsets = [0, 64], sizes = [2, 32], strides = [1, 1]} : vector<2x128xf32> to vector<2x32xf32>
      %220 = arith.mulf %218, %219 : vector<2x32xf32>
      %221 = arith.addf %217, %220 : vector<2x32xf32>
      %222 = vector.extract_strided_slice %214 {offsets = [0, 96], sizes = [2, 32], strides = [1, 1]} : vector<2x128xf32> to vector<2x32xf32>
      %223 = math.tanh %221 : vector<2x32xf32>
      %224 = arith.mulf %222, %223 : vector<2x32xf32>
      %225 = vector.shape_cast %224 : vector<2x32xf32> to vector<2x1x32xf32>
      %c0_66 = arith.constant 0 : index
      %c6 = arith.constant 6 : index
      %c0_67 = arith.constant 0 : index
      %226 = vector.load %arg20[%c0_66, %c6, %c0_67] : memref<2x8x32xf32, #tpu.memory_space<vmem>>, vector<2x1x32xf32>
      tpu.vector_store %arg20[%c0_66, %c6, %c0_67], %225 {strides = array<i32>} : memref<2x8x32xf32, #tpu.memory_space<vmem>>, vector<2x1x32xf32>,
      %227 = vector.extract_strided_slice %70 {offsets = [0, 7, 0], sizes = [2, 1, 128], strides = [1, 1, 1]} : vector<2x8x128xf32> to vector<2x1x128xf32>
      %228 = vector.shape_cast %227 : vector<2x1x128xf32> to vector<2x128xf32>
      %229 = arith.truncf %224 : vector<2x32xf32> to vector<2x32xbf16>
      %cst_68 = arith.constant dense<0.000000e+00> : vector<2x128xf32>
      %230 = tpu.matmul %229, %69, %cst_68 {dimension_numbers = #tpu.dot_dimension_numbers<[1], [0], [0], [1], [0, 0, 1, 1], [], []>} : vector<2x32xbf16>, vector<32x128xbf16>, vector<2x128xf32> -> vector<2x128xf32>
      %231 = arith.addf %228, %230 : vector<2x128xf32>
      %232 = arith.negf %231 : vector<2x128xf32>
      %233 = math.exp %232 : vector<2x128xf32>
      %cst_69 = arith.constant 1.000000e+00 : f32
      %234 = vector.broadcast %cst_69 : f32 to vector<2x128xf32>
      %235 = arith.addf %234, %233 : vector<2x128xf32>
      %236 = arith.divf %234, %235 : vector<2x128xf32>
      %237 = math.tanh %231 : vector<2x128xf32>
      %238 = vector.extract_strided_slice %236 {offsets = [0, 32], sizes = [2, 32], strides = [1, 1]} : vector<2x128xf32> to vector<2x32xf32>
      %239 = arith.mulf %238, %221 : vector<2x32xf32>
      %240 = vector.extract_strided_slice %236 {offsets = [0, 0], sizes = [2, 32], strides = [1, 1]} : vector<2x128xf32> to vector<2x32xf32>
      %241 = vector.extract_strided_slice %237 {offsets = [0, 64], sizes = [2, 32], strides = [1, 1]} : vector<2x128xf32> to vector<2x32xf32>
      %242 = arith.mulf %240, %241 : vector<2x32xf32>
      %243 = arith.addf %239, %242 : vector<2x32xf32>
      %244 = vector.extract_strided_slice %236 {offsets = [0, 96], sizes = [2, 32], strides = [1, 1]} : vector<2x128xf32> to vector<2x32xf32>
      %245 = math.tanh %243 : vector<2x32xf32>
      %246 = arith.mulf %244, %245 : vector<2x32xf32>
      %247 = vector.shape_cast %246 : vector<2x32xf32> to vector<2x1x32xf32>
      %c0_70 = arith.constant 0 : index
      %c7 = arith.constant 7 : index
      %c0_71 = arith.constant 0 : index
      %248 = vector.load %arg20[%c0_70, %c7, %c0_71] : memref<2x8x32xf32, #tpu.memory_space<vmem>>, vector<2x1x32xf32>
      tpu.vector_store %arg20[%c0_70, %c7, %c0_71], %247 {strides = array<i32>} : memref<2x8x32xf32, #tpu.memory_space<vmem>>, vector<2x1x32xf32>,
      %c0_72 = arith.constant 0 : index
      %c0_73 = arith.constant 0 : index
      %c0_74 = arith.constant 0 : index
      %249 = vector.load %arg20[%c0_72, %c0_73, %c0_74] : memref<2x8x32xf32, #tpu.memory_space<vmem>>, vector<2x8x32xf32>
      %250 = vector.shape_cast %249 : vector<2x8x32xf32> to vector<16x32xf32>
      %251 = arith.truncf %250 : vector<16x32xf32> to vector<16x32xbf16>
      %c0_75 = arith.constant 0 : index
      %c0_76 = arith.constant 0 : index
      %252 = vector.load %arg14[%c0_75, %c0_76] : memref<32x16xf32, #tpu.memory_space<vmem>>, vector<32x16xf32>
      %253 = arith.truncf %252 : vector<32x16xf32> to vector<32x16xbf16>
      %cst_77 = arith.constant dense<0.000000e+00> : vector<16x16xf32>
      %254 = tpu.matmul %251, %253, %cst_77 {dimension_numbers = #tpu.dot_dimension_numbers<[1], [0], [0], [1], [0, 0, 1, 1], [], []>} : vector<16x32xbf16>, vector<32x16xbf16>, vector<16x16xf32> -> vector<16x16xf32>
      %c0_78 = arith.constant 0 : index
      %c0_79 = arith.constant 0 : index
      %255 = vector.load %arg15[%c0_78, %c0_79] : memref<1x16xf32, #tpu.memory_space<vmem>>, vector<1x16xf32>
      %256 = vector.broadcast %255 : vector<1x16xf32> to vector<16x16xf32>
      %257 = arith.addf %254, %256 : vector<16x16xf32>
      %c0_80 = arith.constant 0 : index
      %c0_81 = arith.constant 0 : index
      %258 = vector.load %arg5[%c0_80, %c0_81] : memref<16x16xf32, #tpu.memory_space<vmem>>, vector<16x16xf32>
      %259 = arith.mulf %257, %258 : vector<16x16xf32>
      %cst_82 = arith.constant dense<0.000000e+00> : vector<16xf32>
      %260 = vector.multi_reduction <add>, %259, %cst_82 [1] : vector<16x16xf32> to vector<16xf32>
      %261 = vector.shape_cast %260 : vector<16xf32> to vector<16x1xf32>
      %cst_83 = arith.constant dense<0.000000e+00> : vector<16xf32>
      %262 = vector.multi_reduction <add>, %258, %cst_83 [1] : vector<16x16xf32> to vector<16xf32>
      %263 = vector.shape_cast %262 : vector<16xf32> to vector<16x1xf32>
      %cst_84 = arith.constant 0.000000e+00 : f32
      %264 = vector.broadcast %cst_84 : f32 to vector<16x1xf32>
      %265 = arith.cmpf ogt, %263, %264 : vector<16x1xf32>
      %cst_85 = arith.constant 1.000000e+00 : f32
      %266 = vector.broadcast %cst_85 : f32 to vector<16x1xf32>
      %267 = arith.select %265, %263, %266 : vector<16x1xi1>, vector<16x1xf32>
      %268 = arith.divf %261, %267 : vector<16x1xf32>
      %c0_86 = arith.constant 0 : index
      %c0_87 = arith.constant 0 : index
      %269 = vector.load %arg6[%c0_86, %c0_87] : memref<16x1xf32, #tpu.memory_space<vmem>>, vector<16x1xf32>
      %cst_88 = arith.constant 0.000000e+00 : f32
      %270 = vector.broadcast %cst_88 : f32 to vector<16x1xf32>
      %271 = arith.maximumf %268, %270 : vector<16x1xf32>
      %272 = arith.mulf %268, %269 : vector<16x1xf32>
      %273 = arith.subf %271, %272 : vector<16x1xf32>
      %274 = math.absf %268 : vector<16x1xf32>
      %cst_89 = arith.constant 0.000000e+00 : f32
      %275 = vector.broadcast %cst_89 : f32 to vector<16x1xf32>
      %276 = arith.subf %275, %274 : vector<16x1xf32>
      %277 = math.exp %276 : vector<16x1xf32>
      %cst_90 = arith.constant 1.000000e+00 : f32
      %278 = vector.broadcast %cst_90 : f32 to vector<16x1xf32>
      %279 = arith.addf %278, %277 : vector<16x1xf32>
      %280 = math.log %279 : vector<16x1xf32>
      %281 = arith.addf %273, %280 : vector<16x1xf32>
      %282 = arith.extui %265 : vector<16x1xi1> to vector<16x1xi32>
      %283 = arith.sitofp %282 : vector<16x1xi32> to vector<16x1xf32>
      %284 = vector.shape_cast %283 : vector<16x1xf32> to vector<1x16x1xf32>
      %cst_91 = arith.constant dense<0.000000e+00> : vector<1xf32>
      %285 = vector.multi_reduction <add>, %284, %cst_91 [1, 2] : vector<1x16x1xf32> to vector<1xf32>
      %286 = vector.shape_cast %285 : vector<1xf32> to vector<1x1x1xf32>
      %287 = vector.extract %286[0, 0, 0] : f32 from vector<1x1x1xf32>
      %288 = vector.broadcast %287 : f32 to vector<1x1xf32>
      %cst_92 = arith.constant 1.000000e+00 : f32
      %289 = vector.broadcast %cst_92 : f32 to vector<1x1xf32>
      %290 = arith.maximumf %288, %289 : vector<1x1xf32>
      %cst_93 = arith.constant 0.000000e+00 : f32
      %291 = vector.broadcast %cst_93 : f32 to vector<16x1xf32>
      %292 = arith.select %265, %281, %291 : vector<16x1xi1>, vector<16x1xf32>
      %293 = vector.shape_cast %292 : vector<16x1xf32> to vector<1x16x1xf32>
      %cst_94 = arith.constant dense<0.000000e+00> : vector<1xf32>
      %294 = vector.multi_reduction <add>, %293, %cst_94 [1, 2] : vector<1x16x1xf32> to vector<1xf32>
      %295 = vector.shape_cast %294 : vector<1xf32> to vector<1x1x1xf32>
      %296 = vector.extract %295[0, 0, 0] : f32 from vector<1x1x1xf32>
      %297 = vector.broadcast %296 : f32 to vector<1x1xf32>
      %298 = arith.divf %297, %290 : vector<1x1xf32>
      %c0_95 = arith.constant 0 : index
      %c0_96 = arith.constant 0 : index
      %299 = vector.load %arg16[%c0_95, %c0_96] : memref<1x1xf32, #tpu.memory_space<vmem>>, vector<1x1xf32>
      tpu.vector_store %arg16[%c0_95, %c0_96], %298 {strides = array<i32>} : memref<1x1xf32, #tpu.memory_space<vmem>>, vector<1x1xf32>,
      %300 = arith.negf %268 : vector<16x1xf32>
      %301 = math.exp %300 : vector<16x1xf32>
      %cst_97 = arith.constant 1.000000e+00 : f32
      %302 = vector.broadcast %cst_97 : f32 to vector<16x1xf32>
      %303 = arith.addf %302, %301 : vector<16x1xf32>
      %304 = arith.divf %302, %303 : vector<16x1xf32>
      %c0_98 = arith.constant 0 : index
      %c0_99 = arith.constant 0 : index
      %305 = vector.load %arg17[%c0_98, %c0_99] : memref<16x1xf32, #tpu.memory_space<vmem>>, vector<16x1xf32>
      tpu.vector_store %arg17[%c0_98, %c0_99], %304 {strides = array<i32>} : memref<16x1xf32, #tpu.memory_space<vmem>>, vector<16x1xf32>,
      %c0_100 = arith.constant 0 : index
      %c0_101 = arith.constant 0 : index
      %306 = vector.load %arg18[%c0_100, %c0_101] : memref<16x1xf32, #tpu.memory_space<vmem>>, vector<16x1xf32>
      tpu.vector_store %arg18[%c0_100, %c0_101], %283 {strides = array<i32>} : memref<16x1xf32, #tpu.memory_space<vmem>>, vector<16x1xf32>,
    } else {
    }
    return
  }
  func.func @transform_0(%arg0: i32) -> (i32, i32) {
    %c0_i32 = arith.constant 0 : i32
    %c0_i32_0 = arith.constant 0 : i32
    return %arg0, %c0_i32 : i32, i32
  }
  func.func @transform_1(%arg0: i32) -> (i32, i32) {
    %c0_i32 = arith.constant 0 : i32
    %c0_i32_0 = arith.constant 0 : i32
    %c0_i32_1 = arith.constant 0 : i32
    return %c0_i32, %c0_i32_0 : i32, i32
  }
  func.func @transform_2(%arg0: i32) -> (i32, i32) {
    %c0_i32 = arith.constant 0 : i32
    %c0_i32_0 = arith.constant 0 : i32
    %c0_i32_1 = arith.constant 0 : i32
    return %c0_i32, %c0_i32_0 : i32, i32
  }
  func.func @transform_3(%arg0: i32) -> (i32, i32) {
    %c0_i32 = arith.constant 0 : i32
    %c0_i32_0 = arith.constant 0 : i32
    %c0_i32_1 = arith.constant 0 : i32
    return %c0_i32, %c0_i32_0 : i32, i32
  }
  func.func @transform_4(%arg0: i32) -> (i32, i32) {
    %c0_i32 = arith.constant 0 : i32
    %c0_i32_0 = arith.constant 0 : i32
    %c0_i32_1 = arith.constant 0 : i32
    return %c0_i32, %c0_i32_0 : i32, i32
  }
  func.func @transform_5(%arg0: i32) -> (i32, i32) {
    %c0_i32 = arith.constant 0 : i32
    %c0_i32_0 = arith.constant 0 : i32
    %c0_i32_1 = arith.constant 0 : i32
    return %c0_i32, %c0_i32_0 : i32, i32
  }
  func.func @transform_6(%arg0: i32) -> (i32, i32) {
    %c0_i32 = arith.constant 0 : i32
    %c0_i32_0 = arith.constant 0 : i32
    %c0_i32_1 = arith.constant 0 : i32
    return %c0_i32, %c0_i32_0 : i32, i32
  }
  func.func @transform_7(%arg0: i32) -> (i32, i32) {
    %c0_i32 = arith.constant 0 : i32
    %c0_i32_0 = arith.constant 0 : i32
    %c0_i32_1 = arith.constant 0 : i32
    return %c0_i32, %c0_i32_0 : i32, i32
  }
  func.func @transform_8(%arg0: i32) -> (i32, i32) {
    %c0_i32 = arith.constant 0 : i32
    %c0_i32_0 = arith.constant 0 : i32
    %c0_i32_1 = arith.constant 0 : i32
    return %c0_i32, %c0_i32_0 : i32, i32
  }
  func.func @transform_9(%arg0: i32) -> (i32, i32) {
    %c0_i32 = arith.constant 0 : i32
    %c0_i32_0 = arith.constant 0 : i32
    %c0_i32_1 = arith.constant 0 : i32
    return %c0_i32, %c0_i32_0 : i32, i32
  }
  func.func @transform_10(%arg0: i32) -> (i32, i32) {
    %c0_i32 = arith.constant 0 : i32
    %c0_i32_0 = arith.constant 0 : i32
    %c0_i32_1 = arith.constant 0 : i32
    return %c0_i32, %c0_i32_0 : i32, i32
  }
  func.func @transform_11(%arg0: i32) -> (i32, i32) {
    %c0_i32 = arith.constant 0 : i32
    %c0_i32_0 = arith.constant 0 : i32
    %c0_i32_1 = arith.constant 0 : i32
    return %c0_i32, %c0_i32_0 : i32, i32
  }
  func.func @transform_12(%arg0: i32) -> (i32, i32) {
    %c0_i32 = arith.constant 0 : i32
    %c0_i32_0 = arith.constant 0 : i32
    %c0_i32_1 = arith.constant 0 : i32
    return %c0_i32, %c0_i32_0 : i32, i32
  }
  func.func @transform_13(%arg0: i32) -> (i32, i32) {
    %c0_i32 = arith.constant 0 : i32
    %c0_i32_0 = arith.constant 0 : i32
    %c0_i32_1 = arith.constant 0 : i32
    return %c0_i32, %c0_i32_0 : i32, i32
  }
  func.func @transform_14(%arg0: i32) -> (i32, i32) {
    %c0_i32 = arith.constant 0 : i32
    %c0_i32_0 = arith.constant 0 : i32
    %c0_i32_1 = arith.constant 0 : i32
    return %c0_i32, %c0_i32_0 : i32, i32
  }
  func.func @transform_15(%arg0: i32) -> (i32, i32) {
    %c0_i32 = arith.constant 0 : i32
    %c0_i32_0 = arith.constant 0 : i32
    %c0_i32_1 = arith.constant 0 : i32
    return %c0_i32, %c0_i32_0 : i32, i32
  }
  func.func @transform_16(%arg0: i32) -> (i32, i32) {
    %c0_i32 = arith.constant 0 : i32
    %c0_i32_0 = arith.constant 0 : i32
    %c0_i32_1 = arith.constant 0 : i32
    return %c0_i32, %c0_i32_0 : i32, i32
  }
  func.func @transform_17(%arg0: i32) -> (i32, i32) {
    %c0_i32 = arith.constant 0 : i32
    %c0_i32_0 = arith.constant 0 : i32
    %c0_i32_1 = arith.constant 0 : i32
    return %c0_i32, %c0_i32_0 : i32, i32
  }
}

</mosaic_0001>

<llo_original>
// kernel: model_forward_core.1
$region0: #{model_forward_core.1}
  #allocation0 [shape = 'u32[]', space=smem, size = 0x4, offset = 0x4, fixed_abs, tag = 'smem constant byte address 0x4 - core index']
  #allocation1 [shape = 'u32[144,128]{1,0:T(1,128)}', space=vmem, size = 0x12000, scoped, tag = 'internal scratch']
  #allocation2 [shape = 'f32[16,32]{1,0:T(8,128)}', space=vmem, size = 0x2000, scoped, tag = 'scratch operand']
  #allocation3 [shape = 'f32[2,8,32]{2,1,0:T(8,128)}', space=vmem, size = 0x2000, scoped, tag = 'scratch operand']
  %s0 = inlined_call_operand.vmem [shape: f32[128,128], index: 0, kind: input, shape index: {}]
  %s1 = inlined_call_operand.vmem [shape: f32[16,16], index: 1, kind: input, shape index: {}]
  %s2 = inlined_call_operand.vmem [shape: f32[16,16], index: 2, kind: input, shape index: {}]
  %s3 = inlined_call_operand.vmem [shape: f32[16,2], index: 3, kind: input, shape index: {}]
  %s4 = inlined_call_operand.vmem [shape: f32[16,16], index: 4, kind: input, shape index: {}]
  %s5 = inlined_call_operand.vmem [shape: f32[16,1], index: 5, kind: input, shape index: {}]
  %s6 = inlined_call_operand.vmem [shape: f32[16,32], index: 6, kind: input, shape index: {}]
  %s7 = inlined_call_operand.vmem [shape: f32[128,32], index: 7, kind: input, shape index: {}]
  %s8 = inlined_call_operand.hbm [shape: f32[16,128], index: 8, kind: input, shape index: {}]
  %s9 = inlined_call_operand.vmem [shape: f32[32,128], index: 9, kind: input, shape index: {}]
  %s10 = inlined_call_operand.vmem [shape: f32[2,128], index: 10, kind: input, shape index: {}]
  %s11 = inlined_call_operand.vmem [shape: f32[32,128], index: 11, kind: input, shape index: {}]
  %s12 = inlined_call_operand.vmem [shape: f32[1,128], index: 12, kind: input, shape index: {}]
  %s13 = inlined_call_operand.vmem [shape: f32[32,16], index: 13, kind: input, shape index: {}]
  %s14 = inlined_call_operand.hbm [shape: f32[1,16], index: 14, kind: input, shape index: {}]
  %s15 = inlined_call_operand.hbm [shape: f32[1,1], index: 15, kind: output, shape index: {0}]
  %s16 = inlined_call_operand.vmem [shape: f32[16,1], index: 16, kind: output, shape index: {1}]
  %s17 = inlined_call_operand.vmem [shape: f32[16,1], index: 17, kind: output, shape index: {2}]
  %18 = xla_tuple %s15, %s16, %s17
  %s19 = sld [smem:[#allocation0]]
  $region98: #{model_forward_core.1} parent=0
    _
  %s21 = ssub.s32 1, %s19
  %s22 = scalar_select 0, %s21, %s19
  $region1: #{model_forward_core.1} parent=0
    #allocation4 [shape = 'u8[8192]{0}', space=vmem, size = 0x2000, scoped, tag = 'input window, operand 8, single buffered']
    #allocation5 [shape = 's32[1]{0}', space=sflag, size = 0x4, scoped, tag = 'scoped memory for model_forward_core.1']
    #allocation6 [shape = 's32[1]{0}', space=sflag, size = 0x4, scoped, tag = 'scoped memory for model_forward_core.1']
    #allocation7 [shape = 'u8[512]{0}', space=vmem, size = 0x400, scoped, tag = 'input window, operand 14, single buffered']
    #allocation8 [shape = 's32[1]{0}', space=sflag, size = 0x4, scoped, tag = 'scoped memory for model_forward_core.1']
    #allocation9 [shape = 'u8[512]{0}', space=vmem, size = 0x400, scoped, tag = 'output window, operand 0, single buffered']
    %23 = vsyncpa [#allocation5], 0
    %24 = vsyncpa [#allocation8], 0
    %25 = vsyncpa [#allocation6], 0
    // Predicated region
    $region2: #{model_forward_core.1} parent=1 // pred_check
      _
    $region3: #{model_forward_core.1} parent=1 // pred_check_branch
      %27 = sbr.rel (0) target = $region5
    $region4: #{model_forward_core.1} parent=1 // pred_region
      _
    $region5: #{model_forward_core.1} parent=1 // pred_fallthru
      _
    // Predicated region
    $region6: #{model_forward_core.1} parent=1 // pred_check
      _
    $region7: #{model_forward_core.1} parent=1 // pred_check_branch
      %29 = sbr.rel (0) target = $region9
    $region8: #{model_forward_core.1} parent=1 // pred_region
      _
    $region9: #{model_forward_core.1} parent=1 // pred_fallthru
      _
    // Predicated region
    $region10: #{model_forward_core.1} parent=1 // pred_check
      _
    $region11: #{model_forward_core.1} parent=1 // pred_check_branch
      %31 = sbr.rel (0) target = $region13
    $region12: #{model_forward_core.1} parent=1 // pred_region
      _
    $region13: #{model_forward_core.1} parent=1 // pred_fallthru
      _
    // Predicated region
    $region14: #{model_forward_core.1} parent=1 // pred_check
      _
    $region15: #{model_forward_core.1} parent=1 // pred_check_branch
      %33 = sbr.rel (0) target = $region17
    $region16: #{model_forward_core.1} parent=1 // pred_region
      _
    $region17: #{model_forward_core.1} parent=1 // pred_fallthru
      _
    // Predicated region
    $region18: #{model_forward_core.1} parent=1 // pred_check
      _
    $region19: #{model_forward_core.1} parent=1 // pred_check_branch
      %35 = sbr.rel (0) target = $region21
    $region20: #{model_forward_core.1} parent=1 // pred_region
      _
    $region21: #{model_forward_core.1} parent=1 // pred_fallthru
      _
    // Predicated region
    $region22: #{model_forward_core.1} parent=1 // pred_check
      _
    $region23: #{model_forward_core.1} parent=1 // pred_check_branch
      %37 = sbr.rel (0) target = $region25
    $region24: #{model_forward_core.1} parent=1 // pred_region
      _
    $region25: #{model_forward_core.1} parent=1 // pred_fallthru
      _
    // Predicated region
    $region26: #{model_forward_core.1} parent=1 // pred_check
      _
    $region27: #{model_forward_core.1} parent=1 // pred_check_branch
      %39 = sbr.rel (0) target = $region29
    $region28: #{model_forward_core.1} parent=1 // pred_region
      _
    $region29: #{model_forward_core.1} parent=1 // pred_fallthru
      _
    // Predicated region
    $region30: #{model_forward_core.1} parent=1 // pred_check
      _
    $region31: #{model_forward_core.1} parent=1 // pred_check_branch
      %41 = sbr.rel (0) target = $region33
    $region32: #{model_forward_core.1} parent=1 // pred_region
      _
    $region33: #{model_forward_core.1} parent=1 // pred_fallthru
      _
    // Predicated region
    $region34: #{model_forward_core.1} parent=1 // pred_check
      _
    $region35: #{model_forward_core.1} parent=1 // pred_check_branch
      %43 = sbr.rel (0) target = $region37
    $region36: #{model_forward_core.1} parent=1 // pred_region
      %s45 = ssub.s32 256, 256
      %46 = vsyncadd [#allocation5], %s45
      %s47 = sshll.u32 [#allocation4], 4
      %s48 = int_to_ptr.vmem [resolvable:$true] %s47
      %53 = dma.hbm_to_vmem [thread:$0]  %s8, 256, %s48, [#allocation5], 128, 128, 8
    $region37: #{model_forward_core.1} parent=1 // pred_fallthru
      _
    // Predicated region
    $region38: #{model_forward_core.1} parent=1 // pred_check
      _
    $region39: #{model_forward_core.1} parent=1 // pred_check_branch
      %55 = sbr.rel (0) target = $region41
    $region40: #{model_forward_core.1} parent=1 // pred_region
      _
    $region41: #{model_forward_core.1} parent=1 // pred_fallthru
      _
    // Predicated region
    $region42: #{model_forward_core.1} parent=1 // pred_check
      _
    $region43: #{model_forward_core.1} parent=1 // pred_check_branch
      %57 = sbr.rel (0) target = $region45
    $region44: #{model_forward_core.1} parent=1 // pred_region
      _
    $region45: #{model_forward_core.1} parent=1 // pred_fallthru
      _
    // Predicated region
    $region46: #{model_forward_core.1} parent=1 // pred_check
      _
    $region47: #{model_forward_core.1} parent=1 // pred_check_branch
      %59 = sbr.rel (0) target = $region49
    $region48: #{model_forward_core.1} parent=1 // pred_region
      _
    $region49: #{model_forward_core.1} parent=1 // pred_fallthru
      _
    // Predicated region
    $region50: #{model_forward_core.1} parent=1 // pred_check
      _
    $region51: #{model_forward_core.1} parent=1 // pred_check_branch
      %61 = sbr.rel (0) target = $region53
    $region52: #{model_forward_core.1} parent=1 // pred_region
      _
    $region53: #{model_forward_core.1} parent=1 // pred_fallthru
      _
    // Predicated region
    $region54: #{model_forward_core.1} parent=1 // pred_check
      _
    $region55: #{model_forward_core.1} parent=1 // pred_check_branch
      %63 = sbr.rel (0) target = $region57
    $region56: #{model_forward_core.1} parent=1 // pred_region
      _
    $region57: #{model_forward_core.1} parent=1 // pred_fallthru
      _
    // Predicated region
    $region58: #{model_forward_core.1} parent=1 // pred_check
      _
    $region59: #{model_forward_core.1} parent=1 // pred_check_branch
      %65 = sbr.rel (0) target = $region61
    $region60: #{model_forward_core.1} parent=1 // pred_region
      %s67 = ssub.s32 16, 16
      %68 = vsyncadd [#allocation8], %s67
      %s70 = sshll.u32 [#allocation7], 4
      %s71 = int_to_ptr.vmem [resolvable:$true] %s70
      %73 = dma.hbm_to_vmem [thread:$0]  %s14, 16, %s71, [#allocation8]
    $region61: #{model_forward_core.1} parent=1 // pred_fallthru
      _
    // Predicated region
    $region62: #{model_forward_core.1} parent=1 // pred_check
      _
    $region63: #{model_forward_core.1} parent=1 // pred_check_branch
      %75 = sbr.rel (0) target = $region65
    $region64: #{model_forward_core.1} parent=1 // pred_region
      %76 = dma.done [#allocation5], 256
    $region65: #{model_forward_core.1} parent=1 // pred_fallthru
      _
    // Predicated region
    $region66: #{model_forward_core.1} parent=1 // pred_check
      _
    $region67: #{model_forward_core.1} parent=1 // pred_check_branch
      %78 = sbr.rel (0) target = $region69
    $region68: #{model_forward_core.1} parent=1 // pred_region
      %79 = dma.done [#allocation8], 16
    $region69: #{model_forward_core.1} parent=1 // pred_fallthru
      _
    %v81 = vld [vmem:[%s0] sm:$0xff]
    %v82 = vld [vmem:[%s0 + $0x8] sm:$0xff]
    %v83 = vld [vmem:[%s0 + $0x10] sm:$0xff]
    %v84 = vld [vmem:[%s0 + $0x18] sm:$0xff]
    %v85 = vld [vmem:[%s0 + $0x20] sm:$0xff]
    %v86 = vld [vmem:[%s0 + $0x28] sm:$0xff]
    %v87 = vld [vmem:[%s0 + $0x30] sm:$0xff]
    %v88 = vld [vmem:[%s0 + $0x38] sm:$0xff]
    %v89 = vld [vmem:[%s0 + $0x40] sm:$0xff]
    %v90 = vld [vmem:[%s0 + $0x48] sm:$0xff]
    %v91 = vld [vmem:[%s0 + $0x50] sm:$0xff]
    %v92 = vld [vmem:[%s0 + $0x58] sm:$0xff]
    %v93 = vld [vmem:[%s0 + $0x60] sm:$0xff]
    %v94 = vld [vmem:[%s0 + $0x68] sm:$0xff]
    %v95 = vld [vmem:[%s0 + $0x70] sm:$0xff]
    %v96 = vld [vmem:[%s0 + $0x78] sm:$0xff]
    %v97 = vpack.c.bf16 %v82, %v81
    %v98 = vpack.c.bf16 %v84, %v83
    %v99 = vpack.c.bf16 %v86, %v85
    %v100 = vpack.c.bf16 %v88, %v87
    %v101 = vpack.c.bf16 %v90, %v89
    %v102 = vpack.c.bf16 %v92, %v91
    %v103 = vpack.c.bf16 %v94, %v93
    %v104 = vpack.c.bf16 %v96, %v95
    %v105 = vld [vmem:[%s7] sm:$0xff]
    %v106 = vld [vmem:[%s7 + $0x8] sm:$0xff]
    %v107 = vld [vmem:[%s7 + $0x10] sm:$0xff]
    %v108 = vld [vmem:[%s7 + $0x18] sm:$0xff]
    %v109 = vld [vmem:[%s7 + $0x20] sm:$0xff]
    %v110 = vld [vmem:[%s7 + $0x28] sm:$0xff]
    %v111 = vld [vmem:[%s7 + $0x30] sm:$0xff]
    %v112 = vld [vmem:[%s7 + $0x38] sm:$0xff]
    %v113 = vld [vmem:[%s7 + $0x40] sm:$0xff]
    %v114 = vld [vmem:[%s7 + $0x48] sm:$0xff]
    %v115 = vld [vmem:[%s7 + $0x50] sm:$0xff]
    %v116 = vld [vmem:[%s7 + $0x58] sm:$0xff]
    %v117 = vld [vmem:[%s7 + $0x60] sm:$0xff]
    %v118 = vld [vmem:[%s7 + $0x68] sm:$0xff]
    %v119 = vld [vmem:[%s7 + $0x70] sm:$0xff]
    %v120 = vld [vmem:[%s7 + $0x78] sm:$0xff]
    %v121 = vpack.c.bf16 %v106, %v105
    %v122 = vpack.c.bf16 %v108, %v107
    %v123 = vpack.c.bf16 %v110, %v109
    %v124 = vpack.c.bf16 %v112, %v111
    %v125 = vpack.c.bf16 %v114, %v113
    %v126 = vpack.c.bf16 %v116, %v115
    %v127 = vpack.c.bf16 %v118, %v117
    %v128 = vpack.c.bf16 %v120, %v119
    %129 = vmatprep.subr.bf16.mxu0 0
    %130 = vmatpush1.bf16.msra.mxu0 %v121
    %131 = vmatprep.subr.bf16.mxu0 0
    %132 = vmatpush1.bf16.msra.mxu0 %v122
    %133 = vmatprep.subr.bf16.mxu0 0
    %134 = vmatpush1.bf16.msra.mxu0 %v123
    %135 = vmatprep.subr.bf16.mxu0 0
    %136 = vmatpush1.bf16.msra.mxu0 %v124
    %137 = vmatprep.subr.bf16.mxu0 0
    %138 = vmatpush1.bf16.msra.mxu0 %v125
    %139 = vmatprep.subr.bf16.mxu0 0
    %140 = vmatpush1.bf16.msra.mxu0 %v126
    %141 = vmatprep.subr.bf16.mxu0 0
    %142 = vmatpush1.bf16.msra.mxu0 %v127
    %143 = vmatprep.subr.bf16.mxu0 0
    %144 = vmatpush1.bf16.msra.mxu0 %v128
    %145 = vmatprep.subr.bf16.mxu0 0
    %146 = vmatpush1.bf16.msra.mxu0 0
    %147 = vmatprep.subr.bf16.mxu0 0
    %148 = vmatpush1.bf16.msra.mxu0 0
    %149 = vmatprep.subr.bf16.mxu0 0
    %150 = vmatpush1.bf16.msra.mxu0 0
    %151 = vmatprep.subr.bf16.mxu0 0
    %152 = vmatpush1.bf16.msra.mxu0 0
    %153 = vmatprep.subr.bf16.mxu0 0
    %154 = vmatpush1.bf16.msra.mxu0 0
    %155 = vmatprep.subr.bf16.mxu0 0
    %156 = vmatpush1.bf16.msra.mxu0 0
    %157 = vmatprep.subr.bf16.mxu0 0
    %158 = vmatpush1.bf16.msra.mxu0 0
    %159 = vmatprep.subr.bf16.mxu0 0
    %160 = vmatpush1.bf16.msra.mxu0 0
    %161 = vmatprep.mubr.bf16.mxu0 0
    %162 = vmatmul.mubr.bf16.gmra.mrb[0].mxu0 %v97
    %v163 = vpop.f32.mrb[0].mxu0
    %v164 = vadd.f32 0.0, %v163
    %v165 = vpop.f32.mrb[0].mxu0
    %v166 = vpop.f32.mrb[0].mxu0
    %v167 = vadd.f32 0.0, %v166
    %v168 = vpop.f32.mrb[0].mxu0
    %169 = vmatprep.mubr.bf16.mxu0 0
    %170 = vmatmul.mubr.bf16.gmra.mrb[0].mxu0 %v98
    %v171 = vpop.f32.mrb[0].mxu0
    %v172 = vadd.f32 0.0, %v171
    %v173 = vpop.f32.mrb[0].mxu0
    %v174 = vpop.f32.mrb[0].mxu0
    %v175 = vadd.f32 0.0, %v174
    %v176 = vpop.f32.mrb[0].mxu0
    %177 = vmatprep.mubr.bf16.mxu0 0
    %178 = vmatmul.mubr.bf16.gmra.mrb[0].mxu0 %v99
    %v179 = vpop.f32.mrb[0].mxu0
    %v180 = vadd.f32 0.0, %v179
    %v181 = vpop.f32.mrb[0].mxu0
    %v182 = vpop.f32.mrb[0].mxu0
    %v183 = vadd.f32 0.0, %v182
    %v184 = vpop.f32.mrb[0].mxu0
    %185 = vmatprep.mubr.bf16.mxu0 0
    %186 = vmatmul.mubr.bf16.gmra.mrb[0].mxu0 %v100
    %v187 = vpop.f32.mrb[0].mxu0
    %v188 = vadd.f32 0.0, %v187
    %v189 = vpop.f32.mrb[0].mxu0
    %v190 = vpop.f32.mrb[0].mxu0
    %v191 = vadd.f32 0.0, %v190
    %v192 = vpop.f32.mrb[0].mxu0
    %193 = vmatprep.mubr.bf16.mxu0 0
    %194 = vmatmul.mubr.bf16.gmra.mrb[0].mxu0 %v101
    %v195 = vpop.f32.mrb[0].mxu0
    %v196 = vadd.f32 0.0, %v195
    %v197 = vpop.f32.mrb[0].mxu0
    %v198 = vpop.f32.mrb[0].mxu0
    %v199 = vadd.f32 0.0, %v198
    %v200 = vpop.f32.mrb[0].mxu0
    %201 = vmatprep.mubr.bf16.mxu0 0
    %202 = vmatmul.mubr.bf16.gmra.mrb[0].mxu0 %v102
    %v203 = vpop.f32.mrb[0].mxu0
    %v204 = vadd.f32 0.0, %v203
    %v205 = vpop.f32.mrb[0].mxu0
    %v206 = vpop.f32.mrb[0].mxu0
    %v207 = vadd.f32 0.0, %v206
    %v208 = vpop.f32.mrb[0].mxu0
    %209 = vmatprep.mubr.bf16.mxu0 0
    %210 = vmatmul.mubr.bf16.gmra.mrb[0].mxu0 %v103
    %v211 = vpop.f32.mrb[0].mxu0
    %v212 = vadd.f32 0.0, %v211
    %v213 = vpop.f32.mrb[0].mxu0
    %v214 = vpop.f32.mrb[0].mxu0
    %v215 = vadd.f32 0.0, %v214
    %v216 = vpop.f32.mrb[0].mxu0
    %217 = vmatprep.mubr.bf16.mxu0 0
    %218 = vmatmul.mubr.bf16.gmra.mrb[0].mxu0 %v104
    %v219 = vpop.f32.mrb[0].mxu0
    %v220 = vadd.f32 0.0, %v219
    %v221 = vpop.f32.mrb[0].mxu0
    %v222 = vpop.f32.mrb[0].mxu0
    %v223 = vadd.f32 0.0, %v222
    %v224 = vpop.f32.mrb[0].mxu0
    %225 = vdwg.mxu0
    %s226 = smul.u32 0, 16
    %s227 = scalar_lea.vmem %s1, %s226
    %v228 = vld [vmem:[%s227] sm:$0xff]
    %v229 = vld [vmem:[%s227 + $0x8] sm:$0xff]
    %s230 = scalar_lea.vmem %s2, %s226
    %v231 = vld [vmem:[%s230] sm:$0xff]
    %v232 = vld [vmem:[%s230 + $0x8] sm:$0xff]
    %v233 = vlaneseq
    %v234 = vshrl.u32 %v233, 7
    %v235 = vsub.s32 0, %v234
    %v236 = vrot.slane %v228, %v235
    %238 = vbcast.lane.b32.xlu0 %v236, 256
    %v239 = vpop.permute.xlu0 %238
    %s241 = sor.u32 256, 8
    %242 = vbcast.lane.b32.xlu0 %v236, %s241
    %v243 = vpop.permute.xlu0 %242
    %v244 = vlaneseq
    %v245 = vshrl.u32 %v244, 7
    %v246 = vsub.s32 1, %v245
    %v247 = vrot.slane %v228, %v246
    %249 = vbcast.lane.b32.xlu0 %v247, 256
    %v250 = vpop.permute.xlu0 %249
    %s252 = sor.u32 256, 8
    %253 = vbcast.lane.b32.xlu0 %v247, %s252
    %v254 = vpop.permute.xlu0 %253
    %v255 = vlaneseq
    %v256 = vshrl.u32 %v255, 7
    %v257 = vsub.s32 2, %v256
    %v258 = vrot.slane %v228, %v257
    %260 = vbcast.lane.b32.xlu0 %v258, 256
    %v261 = vpop.permute.xlu0 %260
    %s263 = sor.u32 256, 8
    %264 = vbcast.lane.b32.xlu0 %v258, %s263
    %v265 = vpop.permute.xlu0 %264
    %v266 = vlaneseq
    %v267 = vshrl.u32 %v266, 7
    %v268 = vsub.s32 3, %v267
    %v269 = vrot.slane %v228, %v268
    %271 = vbcast.lane.b32.xlu0 %v269, 256
    %v272 = vpop.permute.xlu0 %271
    %s274 = sor.u32 256, 8
    %275 = vbcast.lane.b32.xlu0 %v269, %s274
    %v276 = vpop.permute.xlu0 %275
    %v277 = vlaneseq
    %v278 = vshrl.u32 %v277, 7
    %v279 = vsub.s32 4, %v278
    %v280 = vrot.slane %v228, %v279
    %282 = vbcast.lane.b32.xlu0 %v280, 256
    %v283 = vpop.permute.xlu0 %282
    %s285 = sor.u32 256, 8
    %286 = vbcast.lane.b32.xlu0 %v280, %s285
    %v287 = vpop.permute.xlu0 %286
    %v288 = vlaneseq
    %v289 = vshrl.u32 %v288, 7
    %v290 = vsub.s32 5, %v289
    %v291 = vrot.slane %v228, %v290
    %293 = vbcast.lane.b32.xlu0 %v291, 256
    %v294 = vpop.permute.xlu0 %293
    %s296 = sor.u32 256, 8
    %297 = vbcast.lane.b32.xlu0 %v291, %s296
    %v298 = vpop.permute.xlu0 %297
    %v299 = vlaneseq
    %v300 = vshrl.u32 %v299, 7
    %v301 = vsub.s32 6, %v300
    %v302 = vrot.slane %v228, %v301
    %304 = vbcast.lane.b32.xlu0 %v302, 256
    %v305 = vpop.permute.xlu0 %304
    %s307 = sor.u32 256, 8
    %308 = vbcast.lane.b32.xlu0 %v302, %s307
    %v309 = vpop.permute.xlu0 %308
    %v310 = vlaneseq
    %v311 = vshrl.u32 %v310, 7
    %v312 = vsub.s32 7, %v311
    %v313 = vrot.slane %v228, %v312
    %315 = vbcast.lane.b32.xlu0 %v313, 256
    %v316 = vpop.permute.xlu0 %315
    %s318 = sor.u32 256, 8
    %319 = vbcast.lane.b32.xlu0 %v313, %s318
    %v320 = vpop.permute.xlu0 %319
    %v321 = vlaneseq
    %v322 = vshrl.u32 %v321, 7
    %v323 = vsub.s32 0, %v322
    %v324 = vrot.slane %v229, %v323
    %326 = vbcast.lane.b32.xlu0 %v324, 256
    %v327 = vpop.permute.xlu0 %326
    %s329 = sor.u32 256, 8
    %330 = vbcast.lane.b32.xlu0 %v324, %s329
    %v331 = vpop.permute.xlu0 %330
    %v332 = vlaneseq
    %v333 = vshrl.u32 %v332, 7
    %v334 = vsub.s32 1, %v333
    %v335 = vrot.slane %v229, %v334
    %337 = vbcast.lane.b32.xlu0 %v335, 256
    %v338 = vpop.permute.xlu0 %337
    %s340 = sor.u32 256, 8
    %341 = vbcast.lane.b32.xlu0 %v335, %s340
    %v342 = vpop.permute.xlu0 %341
    %v343 = vlaneseq
    %v344 = vshrl.u32 %v343, 7
    %v345 = vsub.s32 2, %v344
    %v346 = vrot.slane %v229, %v345
    %348 = vbcast.lane.b32.xlu0 %v346, 256
    %v349 = vpop.permute.xlu0 %348
    %s351 = sor.u32 256, 8
    %352 = vbcast.lane.b32.xlu0 %v346, %s351
    %v353 = vpop.permute.xlu0 %352
    %v354 = vlaneseq
    %v355 = vshrl.u32 %v354, 7
    %v356 = vsub.s32 3, %v355
    %v357 = vrot.slane %v229, %v356
    %359 = vbcast.lane.b32.xlu0 %v357, 256
    %v360 = vpop.permute.xlu0 %359
    %s362 = sor.u32 256, 8
    %363 = vbcast.lane.b32.xlu0 %v357, %s362
    %v364 = vpop.permute.xlu0 %363
    %v365 = vlaneseq
    %v366 = vshrl.u32 %v365, 7
    %v367 = vsub.s32 4, %v366
    %v368 = vrot.slane %v229, %v367
    %370 = vbcast.lane.b32.xlu0 %v368, 256
    %v371 = vpop.permute.xlu0 %370
    %s373 = sor.u32 256, 8
    %374 = vbcast.lane.b32.xlu0 %v368, %s373
    %v375 = vpop.permute.xlu0 %374
    %v376 = vlaneseq
    %v377 = vshrl.u32 %v376, 7
    %v378 = vsub.s32 5, %v377
    %v379 = vrot.slane %v229, %v378
    %381 = vbcast.lane.b32.xlu0 %v379, 256
    %v382 = vpop.permute.xlu0 %381
    %s384 = sor.u32 256, 8
    %385 = vbcast.lane.b32.xlu0 %v379, %s384
    %v386 = vpop.permute.xlu0 %385
    %v387 = vlaneseq
    %v388 = vshrl.u32 %v387, 7
    %v389 = vsub.s32 6, %v388
    %v390 = vrot.slane %v229, %v389
    %392 = vbcast.lane.b32.xlu0 %v390, 256
    %v393 = vpop.permute.xlu0 %392
    %s395 = sor.u32 256, 8
    %396 = vbcast.lane.b32.xlu0 %v390, %s395
    %v397 = vpop.permute.xlu0 %396
    %v398 = vlaneseq
    %v399 = vshrl.u32 %v398, 7
    %v400 = vsub.s32 7, %v399
    %v401 = vrot.slane %v229, %v400
    %403 = vbcast.lane.b32.xlu0 %v401, 256
    %v404 = vpop.permute.xlu0 %403
    %s406 = sor.u32 256, 8
    %407 = vbcast.lane.b32.xlu0 %v401, %s406
    %v408 = vpop.permute.xlu0 %407
    %v409 = vld [vmem:[%s6] sm:$0xff]
    %v410 = vld [vmem:[%s6 + $0x8] sm:$0xff]
    %v411 = vmul.f32 %v239, %v409
    %v412 = vmul.f32 %v243, %v410
    %v413 = vmul.f32 %v250, %v409
    %v414 = vmul.f32 %v254, %v410
    %v415 = vmul.f32 %v261, %v409
    %v416 = vmul.f32 %v265, %v410
    %v417 = vmul.f32 %v272, %v409
    %v418 = vmul.f32 %v276, %v410
    %v419 = vmul.f32 %v283, %v409
    %v420 = vmul.f32 %v287, %v410
    %v421 = vmul.f32 %v294, %v409
    %v422 = vmul.f32 %v298, %v410
    %v423 = vmul.f32 %v305, %v409
    %v424 = vmul.f32 %v309, %v410
    %v425 = vmul.f32 %v316, %v409
    %v426 = vmul.f32 %v320, %v410
    %v427 = vmul.f32 %v327, %v409
    %v428 = vmul.f32 %v331, %v410
    %v429 = vmul.f32 %v338, %v409
    %v430 = vmul.f32 %v342, %v410
    %v431 = vmul.f32 %v349, %v409
    %v432 = vmul.f32 %v353, %v410
    %v433 = vmul.f32 %v360, %v409
    %v434 = vmul.f32 %v364, %v410
    %v435 = vmul.f32 %v371, %v409
    %v436 = vmul.f32 %v375, %v410
    %v437 = vmul.f32 %v382, %v409
    %v438 = vmul.f32 %v386, %v410
    %v439 = vmul.f32 %v393, %v409
    %v440 = vmul.f32 %v397, %v410
    %v441 = vmul.f32 %v404, %v409
    %v442 = vmul.f32 %v408, %v410
    %vm443 = vcmask 261120
    %v445 = vsel %vm443, %v411, 0
    %v448 = vsel %vm443, %v412, 0
    %v451 = vsel %vm443, %v164, 0
    %453 = vmatprep.subr.mxu0 0.0
    %454 = vmatpush1.xpose.msra.mxu0 %v451
    %455 = vmatprep.subr.mxu0 0.0
    %456 = vmatpush1.xpose.msra.mxu0 0.0
    %457 = vmatprep.subr.mxu0 0.0
    %458 = vmatpush1.xpose.msra.mxu0 0.0
    %459 = vmatprep.subr.mxu0 0.0
    %460 = vmatpush1.xpose.msra.mxu0 0.0
    %461 = vmatprep.subr.mxu0 0.0
    %462 = vmatpush1.xpose.msra.mxu0 0.0
    %463 = vmatprep.subr.mxu0 0.0
    %464 = vmatpush1.xpose.msra.mxu0 0.0
    %465 = vmatprep.subr.mxu0 0.0
    %466 = vmatpush1.xpose.msra.mxu0 0.0
    %467 = vmatprep.subr.mxu0 0.0
    %468 = vmatpush1.xpose.msra.mxu0 0.0
    %469 = vmatprep.subr.mxu0 0.0
    %470 = vmatpush1.xpose.msra.mxu0 0.0
    %471 = vmatprep.subr.mxu0 0.0
    %472 = vmatpush1.xpose.msra.mxu0 0.0
    %473 = vmatprep.subr.mxu0 0.0
    %474 = vmatpush1.xpose.msra.mxu0 0.0
    %475 = vmatprep.subr.mxu0 0.0
    %476 = vmatpush1.xpose.msra.mxu0 0.0
    %477 = vmatprep.subr.mxu0 0.0
    %478 = vmatpush1.xpose.msra.mxu0 0.0
    %479 = vmatprep.subr.mxu0 0.0
    %480 = vmatpush1.xpose.msra.mxu0 0.0
    %481 = vmatprep.subr.mxu0 0.0
    %482 = vmatpush1.xpose.msra.mxu0 0.0
    %483 = vmatprep.subr.mxu0 0.0
    %484 = vmatpush1.xpose.msra.mxu0 0.0
    %485 = vmatprep.subr.mxu0 0.0
    %486 = vmatpush1.xpose.msra.mxu0 0.0
    %487 = vmatprep.subr.mxu0 0.0
    %488 = vmatpush1.xpose.msra.mxu0 0.0
    %489 = vmatprep.subr.mxu0 0.0
    %490 = vmatpush1.xpose.msra.mxu0 0.0
    %491 = vmatprep.subr.mxu0 0.0
    %492 = vmatpush1.xpose.msra.mxu0 0.0
    %493 = vmatprep.subr.mxu0 0.0
    %494 = vmatpush1.xpose.msra.mxu0 0.0
    %495 = vmatprep.subr.mxu0 0.0
    %496 = vmatpush1.xpose.msra.mxu0 0.0
    %497 = vmatprep.subr.mxu0 0.0
    %498 = vmatpush1.xpose.msra.mxu0 0.0
    %499 = vmatprep.subr.mxu0 0.0
    %500 = vmatpush1.xpose.msra.mxu0 0.0
    %501 = vmatprep.subr.mxu0 0.0
    %502 = vmatpush1.xpose.msra.mxu0 0.0
    %503 = vmatprep.subr.mxu0 0.0
    %504 = vmatpush1.xpose.msra.mxu0 0.0
    %505 = vmatprep.subr.mxu0 0.0
    %506 = vmatpush1.xpose.msra.mxu0 0.0
    %507 = vmatprep.subr.mxu0 0.0
    %508 = vmatpush1.xpose.msra.mxu0 0.0
    %509 = vmatprep.subr.mxu0 0.0
    %510 = vmatpush1.xpose.msra.mxu0 0.0
    %511 = vmatprep.subr.mxu0 0.0
    %512 = vmatpush1.xpose.msra.mxu0 0.0
    %513 = vmatprep.subr.mxu0 0.0
    %514 = vmatpush1.xpose.msra.mxu0 0.0
    %515 = vmatprep.subr.mxu0 0.0
    %516 = vmatpush1.xpose.msra.mxu0 0.0
    %517 = vmatprep.mubr.f32.mxu0 0.0
    %518 = vmatmul.mubr.f32.gmra.mrb[0].mxu0 %v445
    %v519 = vpop.f32.mrb[0].mxu0
    %v520 = vadd.f32 0.0, %v519
    %v521 = vpop.f32.mrb[0].mxu0
    %522 = vmatprep.mubr.f32.mxu0 0.0
    %523 = vmatmul.mubr.f32.gmra.mrb[0].mxu0 %v448
    %v524 = vpop.f32.mrb[0].mxu0
    %v525 = vadd.f32 0.0, %v524
    %v526 = vpop.f32.mrb[0].mxu0
    %527 = vdwg.mxu0
    %v529 = vsel %vm443, %v413, 0
    %v532 = vsel %vm443, %v414, 0
    %v535 = vsel %vm443, %v167, 0
    %537 = vmatprep.subr.mxu0 0.0
    %538 = vmatpush1.xpose.msra.mxu0 %v535
    %539 = vmatprep.subr.mxu0 0.0
    %540 = vmatpush1.xpose.msra.mxu0 0.0
    %541 = vmatprep.subr.mxu0 0.0
    %542 = vmatpush1.xpose.msra.mxu0 0.0
    %543 = vmatprep.subr.mxu0 0.0
    %544 = vmatpush1.xpose.msra.mxu0 0.0
    %545 = vmatprep.subr.mxu0 0.0
    %546 = vmatpush1.xpose.msra.mxu0 0.0
    %547 = vmatprep.subr.mxu0 0.0
    %548 = vmatpush1.xpose.msra.mxu0 0.0
    %549 = vmatprep.subr.mxu0 0.0
    %550 = vmatpush1.xpose.msra.mxu0 0.0
    %551 = vmatprep.subr.mxu0 0.0
    %552 = vmatpush1.xpose.msra.mxu0 0.0
    %553 = vmatprep.subr.mxu0 0.0
    %554 = vmatpush1.xpose.msra.mxu0 0.0
    %555 = vmatprep.subr.mxu0 0.0
    %556 = vmatpush1.xpose.msra.mxu0 0.0
    %557 = vmatprep.subr.mxu0 0.0
    %558 = vmatpush1.xpose.msra.mxu0 0.0
    %559 = vmatprep.subr.mxu0 0.0
    %560 = vmatpush1.xpose.msra.mxu0 0.0
    %561 = vmatprep.subr.mxu0 0.0
    %562 = vmatpush1.xpose.msra.mxu0 0.0
    %563 = vmatprep.subr.mxu0 0.0
    %564 = vmatpush1.xpose.msra.mxu0 0.0
    %565 = vmatprep.subr.mxu0 0.0
    %566 = vmatpush1.xpose.msra.mxu0 0.0
    %567 = vmatprep.subr.mxu0 0.0
    %568 = vmatpush1.xpose.msra.mxu0 0.0
    %569 = vmatprep.subr.mxu0 0.0
    %570 = vmatpush1.xpose.msra.mxu0 0.0
    %571 = vmatprep.subr.mxu0 0.0
    %572 = vmatpush1.xpose.msra.mxu0 0.0
    %573 = vmatprep.subr.mxu0 0.0
    %574 = vmatpush1.xpose.msra.mxu0 0.0
    %575 = vmatprep.subr.mxu0 0.0
    %576 = vmatpush1.xpose.msra.mxu0 0.0
    %577 = vmatprep.subr.mxu0 0.0
    %578 = vmatpush1.xpose.msra.mxu0 0.0
    %579 = vmatprep.subr.mxu0 0.0
    %580 = vmatpush1.xpose.msra.mxu0 0.0
    %581 = vmatprep.subr.mxu0 0.0
    %582 = vmatpush1.xpose.msra.mxu0 0.0
    %583 = vmatprep.subr.mxu0 0.0
    %584 = vmatpush1.xpose.msra.mxu0 0.0
    %585 = vmatprep.subr.mxu0 0.0
    %586 = vmatpush1.xpose.msra.mxu0 0.0
    %587 = vmatprep.subr.mxu0 0.0
    %588 = vmatpush1.xpose.msra.mxu0 0.0
    %589 = vmatprep.subr.mxu0 0.0
    %590 = vmatpush1.xpose.msra.mxu0 0.0
    %591 = vmatprep.subr.mxu0 0.0
    %592 = vmatpush1.xpose.msra.mxu0 0.0
    %593 = vmatprep.subr.mxu0 0.0
    %594 = vmatpush1.xpose.msra.mxu0 0.0
    %595 = vmatprep.subr.mxu0 0.0
    %596 = vmatpush1.xpose.msra.mxu0 0.0
    %597 = vmatprep.subr.mxu0 0.0
    %598 = vmatpush1.xpose.msra.mxu0 0.0
    %599 = vmatprep.subr.mxu0 0.0
    %600 = vmatpush1.xpose.msra.mxu0 0.0
    %601 = vmatprep.mubr.f32.mxu0 0.0
    %602 = vmatmul.mubr.f32.gmra.mrb[0].mxu0 %v529
    %v603 = vpop.f32.mrb[0].mxu0
    %v604 = vadd.f32 0.0, %v603
    %v605 = vpop.f32.mrb[0].mxu0
    %606 = vmatprep.mubr.f32.mxu0 0.0
    %607 = vmatmul.mubr.f32.gmra.mrb[0].mxu0 %v532
    %v608 = vpop.f32.mrb[0].mxu0
    %v609 = vadd.f32 0.0, %v608
    %v610 = vpop.f32.mrb[0].mxu0
    %611 = vdwg.mxu0
    %v613 = vsel %vm443, %v415, 0
    %v616 = vsel %vm443, %v416, 0
    %v619 = vsel %vm443, %v172, 0
    %621 = vmatprep.subr.mxu0 0.0
    %622 = vmatpush1.xpose.msra.mxu0 %v619
    %623 = vmatprep.subr.mxu0 0.0
    %624 = vmatpush1.xpose.msra.mxu0 0.0
    %625 = vmatprep.subr.mxu0 0.0
    %626 = vmatpush1.xpose.msra.mxu0 0.0
    %627 = vmatprep.subr.mxu0 0.0
    %628 = vmatpush1.xpose.msra.mxu0 0.0
    %629 = vmatprep.subr.mxu0 0.0
    %630 = vmatpush1.xpose.msra.mxu0 0.0
    %631 = vmatprep.subr.mxu0 0.0
    %632 = vmatpush1.xpose.msra.mxu0 0.0
    %633 = vmatprep.subr.mxu0 0.0
    %634 = vmatpush1.xpose.msra.mxu0 0.0
    %635 = vmatprep.subr.mxu0 0.0
    %636 = vmatpush1.xpose.msra.mxu0 0.0
    %637 = vmatprep.subr.mxu0 0.0
    %638 = vmatpush1.xpose.msra.mxu0 0.0
    %639 = vmatprep.subr.mxu0 0.0
    %640 = vmatpush1.xpose.msra.mxu0 0.0
    %641 = vmatprep.subr.mxu0 0.0
    %642 = vmatpush1.xpose.msra.mxu0 0.0
    %643 = vmatprep.subr.mxu0 0.0
    %644 = vmatpush1.xpose.msra.mxu0 0.0
    %645 = vmatprep.subr.mxu0 0.0
    %646 = vmatpush1.xpose.msra.mxu0 0.0
    %647 = vmatprep.subr.mxu0 0.0
    %648 = vmatpush1.xpose.msra.mxu0 0.0
    %649 = vmatprep.subr.mxu0 0.0
    %650 = vmatpush1.xpose.msra.mxu0 0.0
    %651 = vmatprep.subr.mxu0 0.0
    %652 = vmatpush1.xpose.msra.mxu0 0.0
    %653 = vmatprep.subr.mxu0 0.0
    %654 = vmatpush1.xpose.msra.mxu0 0.0
    %655 = vmatprep.subr.mxu0 0.0
    %656 = vmatpush1.xpose.msra.mxu0 0.0
    %657 = vmatprep.subr.mxu0 0.0
    %658 = vmatpush1.xpose.msra.mxu0 0.0
    %659 = vmatprep.subr.mxu0 0.0
    %660 = vmatpush1.xpose.msra.mxu0 0.0
    %661 = vmatprep.subr.mxu0 0.0
    %662 = vmatpush1.xpose.msra.mxu0 0.0
    %663 = vmatprep.subr.mxu0 0.0
    %664 = vmatpush1.xpose.msra.mxu0 0.0
    %665 = vmatprep.subr.mxu0 0.0
    %666 = vmatpush1.xpose.msra.mxu0 0.0
    %667 = vmatprep.subr.mxu0 0.0
    %668 = vmatpush1.xpose.msra.mxu0 0.0
    %669 = vmatprep.subr.mxu0 0.0
    %670 = vmatpush1.xpose.msra.mxu0 0.0
    %671 = vmatprep.subr.mxu0 0.0
    %672 = vmatpush1.xpose.msra.mxu0 0.0
    %673 = vmatprep.subr.mxu0 0.0
    %674 = vmatpush1.xpose.msra.mxu0 0.0
    %675 = vmatprep.subr.mxu0 0.0
    %676 = vmatpush1.xpose.msra.mxu0 0.0
    %677 = vmatprep.subr.mxu0 0.0
    %678 = vmatpush1.xpose.msra.mxu0 0.0
    %679 = vmatprep.subr.mxu0 0.0
    %680 = vmatpush1.xpose.msra.mxu0 0.0
    %681 = vmatprep.subr.mxu0 0.0
    %682 = vmatpush1.xpose.msra.mxu0 0.0
    %683 = vmatprep.subr.mxu0 0.0
    %684 = vmatpush1.xpose.msra.mxu0 0.0
    %685 = vmatprep.mubr.f32.mxu0 0.0
    %686 = vmatmul.mubr.f32.gmra.mrb[0].mxu0 %v613
    %v687 = vpop.f32.mrb[0].mxu0
    %v688 = vadd.f32 0.0, %v687
    %v689 = vpop.f32.mrb[0].mxu0
    %690 = vmatprep.mubr.f32.mxu0 0.0
    %691 = vmatmul.mubr.f32.gmra.mrb[0].mxu0 %v616
    %v692 = vpop.f32.mrb[0].mxu0
    %v693 = vadd.f32 0.0, %v692
    %v694 = vpop.f32.mrb[0].mxu0
    %695 = vdwg.mxu0
    %v697 = vsel %vm443, %v417, 0
    %v700 = vsel %vm443, %v418, 0
    %v703 = vsel %vm443, %v175, 0
    %705 = vmatprep.subr.mxu0 0.0
    %706 = vmatpush1.xpose.msra.mxu0 %v703
    %707 = vmatprep.subr.mxu0 0.0
    %708 = vmatpush1.xpose.msra.mxu0 0.0
    %709 = vmatprep.subr.mxu0 0.0
    %710 = vmatpush1.xpose.msra.mxu0 0.0
    %711 = vmatprep.subr.mxu0 0.0
    %712 = vmatpush1.xpose.msra.mxu0 0.0
    %713 = vmatprep.subr.mxu0 0.0
    %714 = vmatpush1.xpose.msra.mxu0 0.0
    %715 = vmatprep.subr.mxu0 0.0
    %716 = vmatpush1.xpose.msra.mxu0 0.0
    %717 = vmatprep.subr.mxu0 0.0
    %718 = vmatpush1.xpose.msra.mxu0 0.0
    %719 = vmatprep.subr.mxu0 0.0
    %720 = vmatpush1.xpose.msra.mxu0 0.0
    %721 = vmatprep.subr.mxu0 0.0
    %722 = vmatpush1.xpose.msra.mxu0 0.0
    %723 = vmatprep.subr.mxu0 0.0
    %724 = vmatpush1.xpose.msra.mxu0 0.0
    %725 = vmatprep.subr.mxu0 0.0
    %726 = vmatpush1.xpose.msra.mxu0 0.0
    %727 = vmatprep.subr.mxu0 0.0
    %728 = vmatpush1.xpose.msra.mxu0 0.0
    %729 = vmatprep.subr.mxu0 0.0
    %730 = vmatpush1.xpose.msra.mxu0 0.0
    %731 = vmatprep.subr.mxu0 0.0
    %732 = vmatpush1.xpose.msra.mxu0 0.0
    %733 = vmatprep.subr.mxu0 0.0
    %734 = vmatpush1.xpose.msra.mxu0 0.0
    %735 = vmatprep.subr.mxu0 0.0
    %736 = vmatpush1.xpose.msra.mxu0 0.0
    %737 = vmatprep.subr.mxu0 0.0
    %738 = vmatpush1.xpose.msra.mxu0 0.0
    %739 = vmatprep.subr.mxu0 0.0
    %740 = vmatpush1.xpose.msra.mxu0 0.0
    %741 = vmatprep.subr.mxu0 0.0
    %742 = vmatpush1.xpose.msra.mxu0 0.0
    %743 = vmatprep.subr.mxu0 0.0
    %744 = vmatpush1.xpose.msra.mxu0 0.0
    %745 = vmatprep.subr.mxu0 0.0
    %746 = vmatpush1.xpose.msra.mxu0 0.0
    %747 = vmatprep.subr.mxu0 0.0
    %748 = vmatpush1.xpose.msra.mxu0 0.0
    %749 = vmatprep.subr.mxu0 0.0
    %750 = vmatpush1.xpose.msra.mxu0 0.0
    %751 = vmatprep.subr.mxu0 0.0
    %752 = vmatpush1.xpose.msra.mxu0 0.0
    %753 = vmatprep.subr.mxu0 0.0
    %754 = vmatpush1.xpose.msra.mxu0 0.0
    %755 = vmatprep.subr.mxu0 0.0
    %756 = vmatpush1.xpose.msra.mxu0 0.0
    %757 = vmatprep.subr.mxu0 0.0
    %758 = vmatpush1.xpose.msra.mxu0 0.0
    %759 = vmatprep.subr.mxu0 0.0
    %760 = vmatpush1.xpose.msra.mxu0 0.0
    %761 = vmatprep.subr.mxu0 0.0
    %762 = vmatpush1.xpose.msra.mxu0 0.0
    %763 = vmatprep.subr.mxu0 0.0
    %764 = vmatpush1.xpose.msra.mxu0 0.0
    %765 = vmatprep.subr.mxu0 0.0
    %766 = vmatpush1.xpose.msra.mxu0 0.0
    %767 = vmatprep.subr.mxu0 0.0
    %768 = vmatpush1.xpose.msra.mxu0 0.0
    %769 = vmatprep.mubr.f32.mxu0 0.0
    %770 = vmatmul.mubr.f32.gmra.mrb[0].mxu0 %v697
    %v771 = vpop.f32.mrb[0].mxu0
    %v772 = vadd.f32 0.0, %v771
    %v773 = vpop.f32.mrb[0].mxu0
    %774 = vmatprep.mubr.f32.mxu0 0.0
    %775 = vmatmul.mubr.f32.gmra.mrb[0].mxu0 %v700
    %v776 = vpop.f32.mrb[0].mxu0
    %v777 = vadd.f32 0.0, %v776
    %v778 = vpop.f32.mrb[0].mxu0
    %779 = vdwg.mxu0
    %v781 = vsel %vm443, %v419, 0
    %v784 = vsel %vm443, %v420, 0
    %v787 = vsel %vm443, %v180, 0
    %789 = vmatprep.subr.mxu0 0.0
    %790 = vmatpush1.xpose.msra.mxu0 %v787
    %791 = vmatprep.subr.mxu0 0.0
    %792 = vmatpush1.xpose.msra.mxu0 0.0
    %793 = vmatprep.subr.mxu0 0.0
    %794 = vmatpush1.xpose.msra.mxu0 0.0
    %795 = vmatprep.subr.mxu0 0.0
    %796 = vmatpush1.xpose.msra.mxu0 0.0
    %797 = vmatprep.subr.mxu0 0.0
    %798 = vmatpush1.xpose.msra.mxu0 0.0
    %799 = vmatprep.subr.mxu0 0.0
    %800 = vmatpush1.xpose.msra.mxu0 0.0
    %801 = vmatprep.subr.mxu0 0.0
    %802 = vmatpush1.xpose.msra.mxu0 0.0
    %803 = vmatprep.subr.mxu0 0.0
    %804 = vmatpush1.xpose.msra.mxu0 0.0
    %805 = vmatprep.subr.mxu0 0.0
    %806 = vmatpush1.xpose.msra.mxu0 0.0
    %807 = vmatprep.subr.mxu0 0.0
    %808 = vmatpush1.xpose.msra.mxu0 0.0
    %809 = vmatprep.subr.mxu0 0.0
    %810 = vmatpush1.xpose.msra.mxu0 0.0
    %811 = vmatprep.subr.mxu0 0.0
    %812 = vmatpush1.xpose.msra.mxu0 0.0
    %813 = vmatprep.subr.mxu0 0.0
    %814 = vmatpush1.xpose.msra.mxu0 0.0
    %815 = vmatprep.subr.mxu0 0.0
    %816 = vmatpush1.xpose.msra.mxu0 0.0
    %817 = vmatprep.subr.mxu0 0.0
    %818 = vmatpush1.xpose.msra.mxu0 0.0
    %819 = vmatprep.subr.mxu0 0.0
    %820 = vmatpush1.xpose.msra.mxu0 0.0
    %821 = vmatprep.subr.mxu0 0.0
    %822 = vmatpush1.xpose.msra.mxu0 0.0
    %823 = vmatprep.subr.mxu0 0.0
    %824 = vmatpush1.xpose.msra.mxu0 0.0
    %825 = vmatprep.subr.mxu0 0.0
    %826 = vmatpush1.xpose.msra.mxu0 0.0
    %827 = vmatprep.subr.mxu0 0.0
    %828 = vmatpush1.xpose.msra.mxu0 0.0
    %829 = vmatprep.subr.mxu0 0.0
    %830 = vmatpush1.xpose.msra.mxu0 0.0
    %831 = vmatprep.subr.mxu0 0.0
    %832 = vmatpush1.xpose.msra.mxu0 0.0
    %833 = vmatprep.subr.mxu0 0.0
    %834 = vmatpush1.xpose.msra.mxu0 0.0
    %835 = vmatprep.subr.mxu0 0.0
    %836 = vmatpush1.xpose.msra.mxu0 0.0
    %837 = vmatprep.subr.mxu0 0.0
    %838 = vmatpush1.xpose.msra.mxu0 0.0
    %839 = vmatprep.subr.mxu0 0.0
    %840 = vmatpush1.xpose.msra.mxu0 0.0
    %841 = vmatprep.subr.mxu0 0.0
    %842 = vmatpush1.xpose.msra.mxu0 0.0
    %843 = vmatprep.subr.mxu0 0.0
    %844 = vmatpush1.xpose.msra.mxu0 0.0
    %845 = vmatprep.subr.mxu0 0.0
    %846 = vmatpush1.xpose.msra.mxu0 0.0
    %847 = vmatprep.subr.mxu0 0.0
    %848 = vmatpush1.xpose.msra.mxu0 0.0
    %849 = vmatprep.subr.mxu0 0.0
    %850 = vmatpush1.xpose.msra.mxu0 0.0
    %851 = vmatprep.subr.mxu0 0.0
    %852 = vmatpush1.xpose.msra.mxu0 0.0
    %853 = vmatprep.mubr.f32.mxu0 0.0
    %854 = vmatmul.mubr.f32.gmra.mrb[0].mxu0 %v781
    %v855 = vpop.f32.mrb[0].mxu0
    %v856 = vadd.f32 0.0, %v855
    %v857 = vpop.f32.mrb[0].mxu0
    %858 = vmatprep.mubr.f32.mxu0 0.0
    %859 = vmatmul.mubr.f32.gmra.mrb[0].mxu0 %v784
    %v860 = vpop.f32.mrb[0].mxu0
    %v861 = vadd.f32 0.0, %v860
    %v862 = vpop.f32.mrb[0].mxu0
    %863 = vdwg.mxu0
    %v865 = vsel %vm443, %v421, 0
    %v868 = vsel %vm443, %v422, 0
    %v871 = vsel %vm443, %v183, 0
    %873 = vmatprep.subr.mxu0 0.0
    %874 = vmatpush1.xpose.msra.mxu0 %v871
    %875 = vmatprep.subr.mxu0 0.0
    %876 = vmatpush1.xpose.msra.mxu0 0.0
    %877 = vmatprep.subr.mxu0 0.0
    %878 = vmatpush1.xpose.msra.mxu0 0.0
    %879 = vmatprep.subr.mxu0 0.0
    %880 = vmatpush1.xpose.msra.mxu0 0.0
    %881 = vmatprep.subr.mxu0 0.0
    %882 = vmatpush1.xpose.msra.mxu0 0.0
    %883 = vmatprep.subr.mxu0 0.0
    %884 = vmatpush1.xpose.msra.mxu0 0.0
    %885 = vmatprep.subr.mxu0 0.0
    %886 = vmatpush1.xpose.msra.mxu0 0.0
    %887 = vmatprep.subr.mxu0 0.0
    %888 = vmatpush1.xpose.msra.mxu0 0.0
    %889 = vmatprep.subr.mxu0 0.0
    %890 = vmatpush1.xpose.msra.mxu0 0.0
    %891 = vmatprep.subr.mxu0 0.0
    %892 = vmatpush1.xpose.msra.mxu0 0.0
    %893 = vmatprep.subr.mxu0 0.0
    %894 = vmatpush1.xpose.msra.mxu0 0.0
    %895 = vmatprep.subr.mxu0 0.0
    %896 = vmatpush1.xpose.msra.mxu0 0.0
    %897 = vmatprep.subr.mxu0 0.0
    %898 = vmatpush1.xpose.msra.mxu0 0.0
    %899 = vmatprep.subr.mxu0 0.0
    %900 = vmatpush1.xpose.msra.mxu0 0.0
    %901 = vmatprep.subr.mxu0 0.0
    %902 = vmatpush1.xpose.msra.mxu0 0.0
    %903 = vmatprep.subr.mxu0 0.0
    %904 = vmatpush1.xpose.msra.mxu0 0.0
    %905 = vmatprep.subr.mxu0 0.0
    %906 = vmatpush1.xpose.msra.mxu0 0.0
    %907 = vmatprep.subr.mxu0 0.0
    %908 = vmatpush1.xpose.msra.mxu0 0.0
    %909 = vmatprep.subr.mxu0 0.0
    %910 = vmatpush1.xpose.msra.mxu0 0.0
    %911 = vmatprep.subr.mxu0 0.0
    %912 = vmatpush1.xpose.msra.mxu0 0.0
    %913 = vmatprep.subr.mxu0 0.0
    %914 = vmatpush1.xpose.msra.mxu0 0.0
    %915 = vmatprep.subr.mxu0 0.0
    %916 = vmatpush1.xpose.msra.mxu0 0.0
    %917 = vmatprep.subr.mxu0 0.0
    %918 = vmatpush1.xpose.msra.mxu0 0.0
    %919 = vmatprep.subr.mxu0 0.0
    %920 = vmatpush1.xpose.msra.mxu0 0.0
    %921 = vmatprep.subr.mxu0 0.0
    %922 = vmatpush1.xpose.msra.mxu0 0.0
    %923 = vmatprep.subr.mxu0 0.0
    %924 = vmatpush1.xpose.msra.mxu0 0.0
    %925 = vmatprep.subr.mxu0 0.0
    %926 = vmatpush1.xpose.msra.mxu0 0.0
    %927 = vmatprep.subr.mxu0 0.0
    %928 = vmatpush1.xpose.msra.mxu0 0.0
    %929 = vmatprep.subr.mxu0 0.0
    %930 = vmatpush1.xpose.msra.mxu0 0.0
    %931 = vmatprep.subr.mxu0 0.0
    %932 = vmatpush1.xpose.msra.mxu0 0.0
    %933 = vmatprep.subr.mxu0 0.0
    %934 = vmatpush1.xpose.msra.mxu0 0.0
    %935 = vmatprep.subr.mxu0 0.0
    %936 = vmatpush1.xpose.msra.mxu0 0.0
    %937 = vmatprep.mubr.f32.mxu0 0.0
    %938 = vmatmul.mubr.f32.gmra.mrb[0].mxu0 %v865
    %v939 = vpop.f32.mrb[0].mxu0
    %v940 = vadd.f32 0.0, %v939
    %v941 = vpop.f32.mrb[0].mxu0
    %942 = vmatprep.mubr.f32.mxu0 0.0
    %943 = vmatmul.mubr.f32.gmra.mrb[0].mxu0 %v868
    %v944 = vpop.f32.mrb[0].mxu0
    %v945 = vadd.f32 0.0, %v944
    %v946 = vpop.f32.mrb[0].mxu0
    %947 = vdwg.mxu0
    %v949 = vsel %vm443, %v423, 0
    %v952 = vsel %vm443, %v424, 0
    %v955 = vsel %vm443, %v188, 0
    %957 = vmatprep.subr.mxu0 0.0
    %958 = vmatpush1.xpose.msra.mxu0 %v955
    %959 = vmatprep.subr.mxu0 0.0
    %960 = vmatpush1.xpose.msra.mxu0 0.0
    %961 = vmatprep.subr.mxu0 0.0
    %962 = vmatpush1.xpose.msra.mxu0 0.0
    %963 = vmatprep.subr.mxu0 0.0
    %964 = vmatpush1.xpose.msra.mxu0 0.0
    %965 = vmatprep.subr.mxu0 0.0
    %966 = vmatpush1.xpose.msra.mxu0 0.0
    %967 = vmatprep.subr.mxu0 0.0
    %968 = vmatpush1.xpose.msra.mxu0 0.0
    %969 = vmatprep.subr.mxu0 0.0
    %970 = vmatpush1.xpose.msra.mxu0 0.0
    %971 = vmatprep.subr.mxu0 0.0
    %972 = vmatpush1.xpose.msra.mxu0 0.0
    %973 = vmatprep.subr.mxu0 0.0
    %974 = vmatpush1.xpose.msra.mxu0 0.0
    %975 = vmatprep.subr.mxu0 0.0
    %976 = vmatpush1.xpose.msra.mxu0 0.0
    %977 = vmatprep.subr.mxu0 0.0
    %978 = vmatpush1.xpose.msra.mxu0 0.0
    %979 = vmatprep.subr.mxu0 0.0
    %980 = vmatpush1.xpose.msra.mxu0 0.0
    %981 = vmatprep.subr.mxu0 0.0
    %982 = vmatpush1.xpose.msra.mxu0 0.0
    %983 = vmatprep.subr.mxu0 0.0
    %984 = vmatpush1.xpose.msra.mxu0 0.0
    %985 = vmatprep.subr.mxu0 0.0
    %986 = vmatpush1.xpose.msra.mxu0 0.0
    %987 = vmatprep.subr.mxu0 0.0
    %988 = vmatpush1.xpose.msra.mxu0 0.0
    %989 = vmatprep.subr.mxu0 0.0
    %990 = vmatpush1.xpose.msra.mxu0 0.0
    %991 = vmatprep.subr.mxu0 0.0
    %992 = vmatpush1.xpose.msra.mxu0 0.0
    %993 = vmatprep.subr.mxu0 0.0
    %994 = vmatpush1.xpose.msra.mxu0 0.0
    %995 = vmatprep.subr.mxu0 0.0
    %996 = vmatpush1.xpose.msra.mxu0 0.0
    %997 = vmatprep.subr.mxu0 0.0
    %998 = vmatpush1.xpose.msra.mxu0 0.0
    %999 = vmatprep.subr.mxu0 0.0
    %1000 = vmatpush1.xpose.msra.mxu0 0.0
    %1001 = vmatprep.subr.mxu0 0.0
    %1002 = vmatpush1.xpose.msra.mxu0 0.0
    %1003 = vmatprep.subr.mxu0 0.0
    %1004 = vmatpush1.xpose.msra.mxu0 0.0
    %1005 = vmatprep.subr.mxu0 0.0
    %1006 = vmatpush1.xpose.msra.mxu0 0.0
    %1007 = vmatprep.subr.mxu0 0.0
    %1008 = vmatpush1.xpose.msra.mxu0 0.0
    %1009 = vmatprep.subr.mxu0 0.0
    %1010 = vmatpush1.xpose.msra.mxu0 0.0
    %1011 = vmatprep.subr.mxu0 0.0
    %1012 = vmatpush1.xpose.msra.mxu0 0.0
    %1013 = vmatprep.subr.mxu0 0.0
    %1014 = vmatpush1.xpose.msra.mxu0 0.0
    %1015 = vmatprep.subr.mxu0 0.0
    %1016 = vmatpush1.xpose.msra.mxu0 0.0
    %1017 = vmatprep.subr.mxu0 0.0
    %1018 = vmatpush1.xpose.msra.mxu0 0.0
    %1019 = vmatprep.subr.mxu0 0.0
    %1020 = vmatpush1.xpose.msra.mxu0 0.0
    %1021 = vmatprep.mubr.f32.mxu0 0.0
    %1022 = vmatmul.mubr.f32.gmra.mrb[0].mxu0 %v949
    %v1023 = vpop.f32.mrb[0].mxu0
    %v1024 = vadd.f32 0.0, %v1023
    %v1025 = vpop.f32.mrb[0].mxu0
    %1026 = vmatprep.mubr.f32.mxu0 0.0
    %1027 = vmatmul.mubr.f32.gmra.mrb[0].mxu0 %v952
    %v1028 = vpop.f32.mrb[0].mxu0
    %v1029 = vadd.f32 0.0, %v1028
    %v1030 = vpop.f32.mrb[0].mxu0
    %1031 = vdwg.mxu0
    %v1033 = vsel %vm443, %v425, 0
    %v1036 = vsel %vm443, %v426, 0
    %v1039 = vsel %vm443, %v191, 0
    %1041 = vmatprep.subr.mxu0 0.0
    %1042 = vmatpush1.xpose.msra.mxu0 %v1039
    %1043 = vmatprep.subr.mxu0 0.0
    %1044 = vmatpush1.xpose.msra.mxu0 0.0
    %1045 = vmatprep.subr.mxu0 0.0
    %1046 = vmatpush1.xpose.msra.mxu0 0.0
    %1047 = vmatprep.subr.mxu0 0.0
    %1048 = vmatpush1.xpose.msra.mxu0 0.0
    %1049 = vmatprep.subr.mxu0 0.0
    %1050 = vmatpush1.xpose.msra.mxu0 0.0
    %1051 = vmatprep.subr.mxu0 0.0
    %1052 = vmatpush1.xpose.msra.mxu0 0.0
    %1053 = vmatprep.subr.mxu0 0.0
    %1054 = vmatpush1.xpose.msra.mxu0 0.0
    %1055 = vmatprep.subr.mxu0 0.0
    %1056 = vmatpush1.xpose.msra.mxu0 0.0
    %1057 = vmatprep.subr.mxu0 0.0
    %1058 = vmatpush1.xpose.msra.mxu0 0.0
    %1059 = vmatprep.subr.mxu0 0.0
    %1060 = vmatpush1.xpose.msra.mxu0 0.0
    %1061 = vmatprep.subr.mxu0 0.0
    %1062 = vmatpush1.xpose.msra.mxu0 0.0
    %1063 = vmatprep.subr.mxu0 0.0
    %1064 = vmatpush1.xpose.msra.mxu0 0.0
    %1065 = vmatprep.subr.mxu0 0.0
    %1066 = vmatpush1.xpose.msra.mxu0 0.0
    %1067 = vmatprep.subr.mxu0 0.0
    %1068 = vmatpush1.xpose.msra.mxu0 0.0
    %1069 = vmatprep.subr.mxu0 0.0
    %1070 = vmatpush1.xpose.msra.mxu0 0.0
    %1071 = vmatprep.subr.mxu0 0.0
    %1072 = vmatpush1.xpose.msra.mxu0 0.0
    %1073 = vmatprep.subr.mxu0 0.0
    %1074 = vmatpush1.xpose.msra.mxu0 0.0
    %1075 = vmatprep.subr.mxu0 0.0
    %1076 = vmatpush1.xpose.msra.mxu0 0.0
    %1077 = vmatprep.subr.mxu0 0.0
    %1078 = vmatpush1.xpose.msra.mxu0 0.0
    %1079 = vmatprep.subr.mxu0 0.0
    %1080 = vmatpush1.xpose.msra.mxu0 0.0
    %1081 = vmatprep.subr.mxu0 0.0
    %1082 = vmatpush1.xpose.msra.mxu0 0.0
    %1083 = vmatprep.subr.mxu0 0.0
    %1084 = vmatpush1.xpose.msra.mxu0 0.0
    %1085 = vmatprep.subr.mxu0 0.0
    %1086 = vmatpush1.xpose.msra.mxu0 0.0
    %1087 = vmatprep.subr.mxu0 0.0
    %1088 = vmatpush1.xpose.msra.mxu0 0.0
    %1089 = vmatprep.subr.mxu0 0.0
    %1090 = vmatpush1.xpose.msra.mxu0 0.0
    %1091 = vmatprep.subr.mxu0 0.0
    %1092 = vmatpush1.xpose.msra.mxu0 0.0
    %1093 = vmatprep.subr.mxu0 0.0
    %1094 = vmatpush1.xpose.msra.mxu0 0.0
    %1095 = vmatprep.subr.mxu0 0.0
    %1096 = vmatpush1.xpose.msra.mxu0 0.0
    %1097 = vmatprep.subr.mxu0 0.0
    %1098 = vmatpush1.xpose.msra.mxu0 0.0
    %1099 = vmatprep.subr.mxu0 0.0
    %1100 = vmatpush1.xpose.msra.mxu0 0.0
    %1101 = vmatprep.subr.mxu0 0.0
    %1102 = vmatpush1.xpose.msra.mxu0 0.0
    %1103 = vmatprep.subr.mxu0 0.0
    %1104 = vmatpush1.xpose.msra.mxu0 0.0
    %1105 = vmatprep.mubr.f32.mxu0 0.0
    %1106 = vmatmul.mubr.f32.gmra.mrb[0].mxu0 %v1033
    %v1107 = vpop.f32.mrb[0].mxu0
    %v1108 = vadd.f32 0.0, %v1107
    %v1109 = vpop.f32.mrb[0].mxu0
    %1110 = vmatprep.mubr.f32.mxu0 0.0
    %1111 = vmatmul.mubr.f32.gmra.mrb[0].mxu0 %v1036
    %v1112 = vpop.f32.mrb[0].mxu0
    %v1113 = vadd.f32 0.0, %v1112
    %v1114 = vpop.f32.mrb[0].mxu0
    %1115 = vdwg.mxu0
    %v1117 = vsel %vm443, %v427, 0
    %v1120 = vsel %vm443, %v428, 0
    %v1123 = vsel %vm443, %v196, 0
    %1125 = vmatprep.subr.mxu0 0.0
    %1126 = vmatpush1.xpose.msra.mxu0 %v1123
    %1127 = vmatprep.subr.mxu0 0.0
    %1128 = vmatpush1.xpose.msra.mxu0 0.0
    %1129 = vmatprep.subr.mxu0 0.0
    %1130 = vmatpush1.xpose.msra.mxu0 0.0
    %1131 = vmatprep.subr.mxu0 0.0
    %1132 = vmatpush1.xpose.msra.mxu0 0.0
    %1133 = vmatprep.subr.mxu0 0.0
    %1134 = vmatpush1.xpose.msra.mxu0 0.0
    %1135 = vmatprep.subr.mxu0 0.0
    %1136 = vmatpush1.xpose.msra.mxu0 0.0
    %1137 = vmatprep.subr.mxu0 0.0
    %1138 = vmatpush1.xpose.msra.mxu0 0.0
    %1139 = vmatprep.subr.mxu0 0.0
    %1140 = vmatpush1.xpose.msra.mxu0 0.0
    %1141 = vmatprep.subr.mxu0 0.0
    %1142 = vmatpush1.xpose.msra.mxu0 0.0
    %1143 = vmatprep.subr.mxu0 0.0
    %1144 = vmatpush1.xpose.msra.mxu0 0.0
    %1145 = vmatprep.subr.mxu0 0.0
    %1146 = vmatpush1.xpose.msra.mxu0 0.0
    %1147 = vmatprep.subr.mxu0 0.0
    %1148 = vmatpush1.xpose.msra.mxu0 0.0
    %1149 = vmatprep.subr.mxu0 0.0
    %1150 = vmatpush1.xpose.msra.mxu0 0.0
    %1151 = vmatprep.subr.mxu0 0.0
    %1152 = vmatpush1.xpose.msra.mxu0 0.0
    %1153 = vmatprep.subr.mxu0 0.0
    %1154 = vmatpush1.xpose.msra.mxu0 0.0
    %1155 = vmatprep.subr.mxu0 0.0
    %1156 = vmatpush1.xpose.msra.mxu0 0.0
    %1157 = vmatprep.subr.mxu0 0.0
    %1158 = vmatpush1.xpose.msra.mxu0 0.0
    %1159 = vmatprep.subr.mxu0 0.0
    %1160 = vmatpush1.xpose.msra.mxu0 0.0
    %1161 = vmatprep.subr.mxu0 0.0
    %1162 = vmatpush1.xpose.msra.mxu0 0.0
    %1163 = vmatprep.subr.mxu0 0.0
    %1164 = vmatpush1.xpose.msra.mxu0 0.0
    %1165 = vmatprep.subr.mxu0 0.0
    %1166 = vmatpush1.xpose.msra.mxu0 0.0
    %1167 = vmatprep.subr.mxu0 0.0
    %1168 = vmatpush1.xpose.msra.mxu0 0.0
    %1169 = vmatprep.subr.mxu0 0.0
    %1170 = vmatpush1.xpose.msra.mxu0 0.0
    %1171 = vmatprep.subr.mxu0 0.0
    %1172 = vmatpush1.xpose.msra.mxu0 0.0
    %1173 = vmatprep.subr.mxu0 0.0
    %1174 = vmatpush1.xpose.msra.mxu0 0.0
    %1175 = vmatprep.subr.mxu0 0.0
    %1176 = vmatpush1.xpose.msra.mxu0 0.0
    %1177 = vmatprep.subr.mxu0 0.0
    %1178 = vmatpush1.xpose.msra.mxu0 0.0
    %1179 = vmatprep.subr.mxu0 0.0
    %1180 = vmatpush1.xpose.msra.mxu0 0.0
    %1181 = vmatprep.subr.mxu0 0.0
    %1182 = vmatpush1.xpose.msra.mxu0 0.0
    %1183 = vmatprep.subr.mxu0 0.0
    %1184 = vmatpush1.xpose.msra.mxu0 0.0
    %1185 = vmatprep.subr.mxu0 0.0
    %1186 = vmatpush1.xpose.msra.mxu0 0.0
    %1187 = vmatprep.subr.mxu0 0.0
    %1188 = vmatpush1.xpose.msra.mxu0 0.0
    %1189 = vmatprep.mubr.f32.mxu0 0.0
    %1190 = vmatmul.mubr.f32.gmra.mrb[0].mxu0 %v1117
    %v1191 = vpop.f32.mrb[0].mxu0
    %v1192 = vadd.f32 0.0, %v1191
    %v1193 = vpop.f32.mrb[0].mxu0
    %1194 = vmatprep.mubr.f32.mxu0 0.0
    %1195 = vmatmul.mubr.f32.gmra.mrb[0].mxu0 %v1120
    %v1196 = vpop.f32.mrb[0].mxu0
    %v1197 = vadd.f32 0.0, %v1196
    %v1198 = vpop.f32.mrb[0].mxu0
    %1199 = vdwg.mxu0
    %v1201 = vsel %vm443, %v429, 0
    %v1204 = vsel %vm443, %v430, 0
    %v1207 = vsel %vm443, %v199, 0
    %1209 = vmatprep.subr.mxu0 0.0
    %1210 = vmatpush1.xpose.msra.mxu0 %v1207
    %1211 = vmatprep.subr.mxu0 0.0
    %1212 = vmatpush1.xpose.msra.mxu0 0.0
    %1213 = vmatprep.subr.mxu0 0.0
    %1214 = vmatpush1.xpose.msra.mxu0 0.0
    %1215 = vmatprep.subr.mxu0 0.0
    %1216 = vmatpush1.xpose.msra.mxu0 0.0
    %1217 = vmatprep.subr.mxu0 0.0
    %1218 = vmatpush1.xpose.msra.mxu0 0.0
    %1219 = vmatprep.subr.mxu0 0.0
    %1220 = vmatpush1.xpose.msra.mxu0 0.0
    %1221 = vmatprep.subr.mxu0 0.0
    %1222 = vmatpush1.xpose.msra.mxu0 0.0
    %1223 = vmatprep.subr.mxu0 0.0
    %1224 = vmatpush1.xpose.msra.mxu0 0.0
    %1225 = vmatprep.subr.mxu0 0.0
    %1226 = vmatpush1.xpose.msra.mxu0 0.0
    %1227 = vmatprep.subr.mxu0 0.0
    %1228 = vmatpush1.xpose.msra.mxu0 0.0
    %1229 = vmatprep.subr.mxu0 0.0
    %1230 = vmatpush1.xpose.msra.mxu0 0.0
    %1231 = vmatprep.subr.mxu0 0.0
    %1232 = vmatpush1.xpose.msra.mxu0 0.0
    %1233 = vmatprep.subr.mxu0 0.0
    %1234 = vmatpush1.xpose.msra.mxu0 0.0
    %1235 = vmatprep.subr.mxu0 0.0
    %1236 = vmatpush1.xpose.msra.mxu0 0.0
    %1237 = vmatprep.subr.mxu0 0.0
    %1238 = vmatpush1.xpose.msra.mxu0 0.0
    %1239 = vmatprep.subr.mxu0 0.0
    %1240 = vmatpush1.xpose.msra.mxu0 0.0
    %1241 = vmatprep.subr.mxu0 0.0
    %1242 = vmatpush1.xpose.msra.mxu0 0.0
    %1243 = vmatprep.subr.mxu0 0.0
    %1244 = vmatpush1.xpose.msra.mxu0 0.0
    %1245 = vmatprep.subr.mxu0 0.0
    %1246 = vmatpush1.xpose.msra.mxu0 0.0
    %1247 = vmatprep.subr.mxu0 0.0
    %1248 = vmatpush1.xpose.msra.mxu0 0.0
    %1249 = vmatprep.subr.mxu0 0.0
    %1250 = vmatpush1.xpose.msra.mxu0 0.0
    %1251 = vmatprep.subr.mxu0 0.0
    %1252 = vmatpush1.xpose.msra.mxu0 0.0
    %1253 = vmatprep.subr.mxu0 0.0
    %1254 = vmatpush1.xpose.msra.mxu0 0.0
    %1255 = vmatprep.subr.mxu0 0.0
    %1256 = vmatpush1.xpose.msra.mxu0 0.0
    %1257 = vmatprep.subr.mxu0 0.0
    %1258 = vmatpush1.xpose.msra.mxu0 0.0
    %1259 = vmatprep.subr.mxu0 0.0
    %1260 = vmatpush1.xpose.msra.mxu0 0.0
    %1261 = vmatprep.subr.mxu0 0.0
    %1262 = vmatpush1.xpose.msra.mxu0 0.0
    %1263 = vmatprep.subr.mxu0 0.0
    %1264 = vmatpush1.xpose.msra.mxu0 0.0
    %1265 = vmatprep.subr.mxu0 0.0
    %1266 = vmatpush1.xpose.msra.mxu0 0.0
    %1267 = vmatprep.subr.mxu0 0.0
    %1268 = vmatpush1.xpose.msra.mxu0 0.0
    %1269 = vmatprep.subr.mxu0 0.0
    %1270 = vmatpush1.xpose.msra.mxu0 0.0
    %1271 = vmatprep.subr.mxu0 0.0
    %1272 = vmatpush1.xpose.msra.mxu0 0.0
    %1273 = vmatprep.mubr.f32.mxu0 0.0
    %1274 = vmatmul.mubr.f32.gmra.mrb[0].mxu0 %v1201
    %v1275 = vpop.f32.mrb[0].mxu0
    %v1276 = vadd.f32 0.0, %v1275
    %v1277 = vpop.f32.mrb[0].mxu0
    %1278 = vmatprep.mubr.f32.mxu0 0.0
    %1279 = vmatmul.mubr.f32.gmra.mrb[0].mxu0 %v1204
    %v1280 = vpop.f32.mrb[0].mxu0
    %v1281 = vadd.f32 0.0, %v1280
    %v1282 = vpop.f32.mrb[0].mxu0
    %1283 = vdwg.mxu0
    %v1285 = vsel %vm443, %v431, 0
    %v1288 = vsel %vm443, %v432, 0
    %v1291 = vsel %vm443, %v204, 0
    %1293 = vmatprep.subr.mxu0 0.0
    %1294 = vmatpush1.xpose.msra.mxu0 %v1291
    %1295 = vmatprep.subr.mxu0 0.0
    %1296 = vmatpush1.xpose.msra.mxu0 0.0
    %1297 = vmatprep.subr.mxu0 0.0
    %1298 = vmatpush1.xpose.msra.mxu0 0.0
    %1299 = vmatprep.subr.mxu0 0.0
    %1300 = vmatpush1.xpose.msra.mxu0 0.0
    %1301 = vmatprep.subr.mxu0 0.0
    %1302 = vmatpush1.xpose.msra.mxu0 0.0
    %1303 = vmatprep.subr.mxu0 0.0
    %1304 = vmatpush1.xpose.msra.mxu0 0.0
    %1305 = vmatprep.subr.mxu0 0.0
    %1306 = vmatpush1.xpose.msra.mxu0 0.0
    %1307 = vmatprep.subr.mxu0 0.0
    %1308 = vmatpush1.xpose.msra.mxu0 0.0
    %1309 = vmatprep.subr.mxu0 0.0
    %1310 = vmatpush1.xpose.msra.mxu0 0.0
    %1311 = vmatprep.subr.mxu0 0.0
    %1312 = vmatpush1.xpose.msra.mxu0 0.0
    %1313 = vmatprep.subr.mxu0 0.0
    %1314 = vmatpush1.xpose.msra.mxu0 0.0
    %1315 = vmatprep.subr.mxu0 0.0
    %1316 = vmatpush1.xpose.msra.mxu0 0.0
    %1317 = vmatprep.subr.mxu0 0.0
    %1318 = vmatpush1.xpose.msra.mxu0 0.0
    %1319 = vmatprep.subr.mxu0 0.0
    %1320 = vmatpush1.xpose.msra.mxu0 0.0
    %1321 = vmatprep.subr.mxu0 0.0
    %1322 = vmatpush1.xpose.msra.mxu0 0.0
    %1323 = vmatprep.subr.mxu0 0.0
    %1324 = vmatpush1.xpose.msra.mxu0 0.0
    %1325 = vmatprep.subr.mxu0 0.0
    %1326 = vmatpush1.xpose.msra.mxu0 0.0
    %1327 = vmatprep.subr.mxu0 0.0
    %1328 = vmatpush1.xpose.msra.mxu0 0.0
    %1329 = vmatprep.subr.mxu0 0.0
    %1330 = vmatpush1.xpose.msra.mxu0 0.0
    %1331 = vmatprep.subr.mxu0 0.0
    %1332 = vmatpush1.xpose.msra.mxu0 0.0
    %1333 = vmatprep.subr.mxu0 0.0
    %1334 = vmatpush1.xpose.msra.mxu0 0.0
    %1335 = vmatprep.subr.mxu0 0.0
    %1336 = vmatpush1.xpose.msra.mxu0 0.0
    %1337 = vmatprep.subr.mxu0 0.0
    %1338 = vmatpush1.xpose.msra.mxu0 0.0
    %1339 = vmatprep.subr.mxu0 0.0
    %1340 = vmatpush1.xpose.msra.mxu0 0.0
    %1341 = vmatprep.subr.mxu0 0.0
    %1342 = vmatpush1.xpose.msra.mxu0 0.0
    %1343 = vmatprep.subr.mxu0 0.0
    %1344 = vmatpush1.xpose.msra.mxu0 0.0
    %1345 = vmatprep.subr.mxu0 0.0
    %1346 = vmatpush1.xpose.msra.mxu0 0.0
    %1347 = vmatprep.subr.mxu0 0.0
    %1348 = vmatpush1.xpose.msra.mxu0 0.0
    %1349 = vmatprep.subr.mxu0 0.0
    %1350 = vmatpush1.xpose.msra.mxu0 0.0
    %1351 = vmatprep.subr.mxu0 0.0
    %1352 = vmatpush1.xpose.msra.mxu0 0.0
    %1353 = vmatprep.subr.mxu0 0.0
    %1354 = vmatpush1.xpose.msra.mxu0 0.0
    %1355 = vmatprep.subr.mxu0 0.0
    %1356 = vmatpush1.xpose.msra.mxu0 0.0
    %1357 = vmatprep.mubr.f32.mxu0 0.0
    %1358 = vmatmul.mubr.f32.gmra.mrb[0].mxu0 %v1285
    %v1359 = vpop.f32.mrb[0].mxu0
    %v1360 = vadd.f32 0.0, %v1359
    %v1361 = vpop.f32.mrb[0].mxu0
    %1362 = vmatprep.mubr.f32.mxu0 0.0
    %1363 = vmatmul.mubr.f32.gmra.mrb[0].mxu0 %v1288
    %v1364 = vpop.f32.mrb[0].mxu0
    %v1365 = vadd.f32 0.0, %v1364
    %v1366 = vpop.f32.mrb[0].mxu0
    %1367 = vdwg.mxu0
    %v1369 = vsel %vm443, %v433, 0
    %v1372 = vsel %vm443, %v434, 0
    %v1375 = vsel %vm443, %v207, 0
    %1377 = vmatprep.subr.mxu0 0.0
    %1378 = vmatpush1.xpose.msra.mxu0 %v1375
    %1379 = vmatprep.subr.mxu0 0.0
    %1380 = vmatpush1.xpose.msra.mxu0 0.0
    %1381 = vmatprep.subr.mxu0 0.0
    %1382 = vmatpush1.xpose.msra.mxu0 0.0
    %1383 = vmatprep.subr.mxu0 0.0
    %1384 = vmatpush1.xpose.msra.mxu0 0.0
    %1385 = vmatprep.subr.mxu0 0.0
    %1386 = vmatpush1.xpose.msra.mxu0 0.0
    %1387 = vmatprep.subr.mxu0 0.0
    %1388 = vmatpush1.xpose.msra.mxu0 0.0
    %1389 = vmatprep.subr.mxu0 0.0
    %1390 = vmatpush1.xpose.msra.mxu0 0.0
    %1391 = vmatprep.subr.mxu0 0.0
    %1392 = vmatpush1.xpose.msra.mxu0 0.0
    %1393 = vmatprep.subr.mxu0 0.0
    %1394 = vmatpush1.xpose.msra.mxu0 0.0
    %1395 = vmatprep.subr.mxu0 0.0
    %1396 = vmatpush1.xpose.msra.mxu0 0.0
    %1397 = vmatprep.subr.mxu0 0.0
    %1398 = vmatpush1.xpose.msra.mxu0 0.0
    %1399 = vmatprep.subr.mxu0 0.0
    %1400 = vmatpush1.xpose.msra.mxu0 0.0
    %1401 = vmatprep.subr.mxu0 0.0
    %1402 = vmatpush1.xpose.msra.mxu0 0.0
    %1403 = vmatprep.subr.mxu0 0.0
    %1404 = vmatpush1.xpose.msra.mxu0 0.0
    %1405 = vmatprep.subr.mxu0 0.0
    %1406 = vmatpush1.xpose.msra.mxu0 0.0
    %1407 = vmatprep.subr.mxu0 0.0
    %1408 = vmatpush1.xpose.msra.mxu0 0.0
    %1409 = vmatprep.subr.mxu0 0.0
    %1410 = vmatpush1.xpose.msra.mxu0 0.0
    %1411 = vmatprep.subr.mxu0 0.0
    %1412 = vmatpush1.xpose.msra.mxu0 0.0
    %1413 = vmatprep.subr.mxu0 0.0
    %1414 = vmatpush1.xpose.msra.mxu0 0.0
    %1415 = vmatprep.subr.mxu0 0.0
    %1416 = vmatpush1.xpose.msra.mxu0 0.0
    %1417 = vmatprep.subr.mxu0 0.0
    %1418 = vmatpush1.xpose.msra.mxu0 0.0
    %1419 = vmatprep.subr.mxu0 0.0
    %1420 = vmatpush1.xpose.msra.mxu0 0.0
    %1421 = vmatprep.subr.mxu0 0.0
    %1422 = vmatpush1.xpose.msra.mxu0 0.0
    %1423 = vmatprep.subr.mxu0 0.0
    %1424 = vmatpush1.xpose.msra.mxu0 0.0
    %1425 = vmatprep.subr.mxu0 0.0
    %1426 = vmatpush1.xpose.msra.mxu0 0.0
    %1427 = vmatprep.subr.mxu0 0.0
    %1428 = vmatpush1.xpose.msra.mxu0 0.0
    %1429 = vmatprep.subr.mxu0 0.0
    %1430 = vmatpush1.xpose.msra.mxu0 0.0
    %1431 = vmatprep.subr.mxu0 0.0
    %1432 = vmatpush1.xpose.msra.mxu0 0.0
    %1433 = vmatprep.subr.mxu0 0.0
    %1434 = vmatpush1.xpose.msra.mxu0 0.0
    %1435 = vmatprep.subr.mxu0 0.0
    %1436 = vmatpush1.xpose.msra.mxu0 0.0
    %1437 = vmatprep.subr.mxu0 0.0
    %1438 = vmatpush1.xpose.msra.mxu0 0.0
    %1439 = vmatprep.subr.mxu0 0.0
    %1440 = vmatpush1.xpose.msra.mxu0 0.0
    %1441 = vmatprep.mubr.f32.mxu0 0.0
    %1442 = vmatmul.mubr.f32.gmra.mrb[0].mxu0 %v1369
    %v1443 = vpop.f32.mrb[0].mxu0
    %v1444 = vadd.f32 0.0, %v1443
    %v1445 = vpop.f32.mrb[0].mxu0
    %1446 = vmatprep.mubr.f32.mxu0 0.0
    %1447 = vmatmul.mubr.f32.gmra.mrb[0].mxu0 %v1372
    %v1448 = vpop.f32.mrb[0].mxu0
    %v1449 = vadd.f32 0.0, %v1448
    %v1450 = vpop.f32.mrb[0].mxu0
    %1451 = vdwg.mxu0
    %v1453 = vsel %vm443, %v435, 0
    %v1456 = vsel %vm443, %v436, 0
    %v1459 = vsel %vm443, %v212, 0
    %1461 = vmatprep.subr.mxu0 0.0
    %1462 = vmatpush1.xpose.msra.mxu0 %v1459
    %1463 = vmatprep.subr.mxu0 0.0
    %1464 = vmatpush1.xpose.msra.mxu0 0.0
    %1465 = vmatprep.subr.mxu0 0.0
    %1466 = vmatpush1.xpose.msra.mxu0 0.0
    %1467 = vmatprep.subr.mxu0 0.0
    %1468 = vmatpush1.xpose.msra.mxu0 0.0
    %1469 = vmatprep.subr.mxu0 0.0
    %1470 = vmatpush1.xpose.msra.mxu0 0.0
    %1471 = vmatprep.subr.mxu0 0.0
    %1472 = vmatpush1.xpose.msra.mxu0 0.0
    %1473 = vmatprep.subr.mxu0 0.0
    %1474 = vmatpush1.xpose.msra.mxu0 0.0
    %1475 = vmatprep.subr.mxu0 0.0
    %1476 = vmatpush1.xpose.msra.mxu0 0.0
    %1477 = vmatprep.subr.mxu0 0.0
    %1478 = vmatpush1.xpose.msra.mxu0 0.0
    %1479 = vmatprep.subr.mxu0 0.0
    %1480 = vmatpush1.xpose.msra.mxu0 0.0
    %1481 = vmatprep.subr.mxu0 0.0
    %1482 = vmatpush1.xpose.msra.mxu0 0.0
    %1483 = vmatprep.subr.mxu0 0.0
    %1484 = vmatpush1.xpose.msra.mxu0 0.0
    %1485 = vmatprep.subr.mxu0 0.0
    %1486 = vmatpush1.xpose.msra.mxu0 0.0
    %1487 = vmatprep.subr.mxu0 0.0
    %1488 = vmatpush1.xpose.msra.mxu0 0.0
    %1489 = vmatprep.subr.mxu0 0.0
    %1490 = vmatpush1.xpose.msra.mxu0 0.0
    %1491 = vmatprep.subr.mxu0 0.0
    %1492 = vmatpush1.xpose.msra.mxu0 0.0
    %1493 = vmatprep.subr.mxu0 0.0
    %1494 = vmatpush1.xpose.msra.mxu0 0.0
    %1495 = vmatprep.subr.mxu0 0.0
    %1496 = vmatpush1.xpose.msra.mxu0 0.0
    %1497 = vmatprep.subr.mxu0 0.0
    %1498 = vmatpush1.xpose.msra.mxu0 0.0
    %1499 = vmatprep.subr.mxu0 0.0
    %1500 = vmatpush1.xpose.msra.mxu0 0.0
    %1501 = vmatprep.subr.mxu0 0.0
    %1502 = vmatpush1.xpose.msra.mxu0 0.0
    %1503 = vmatprep.subr.mxu0 0.0
    %1504 = vmatpush1.xpose.msra.mxu0 0.0
    %1505 = vmatprep.subr.mxu0 0.0
    %1506 = vmatpush1.xpose.msra.mxu0 0.0
    %1507 = vmatprep.subr.mxu0 0.0
    %1508 = vmatpush1.xpose.msra.mxu0 0.0
    %1509 = vmatprep.subr.mxu0 0.0
    %1510 = vmatpush1.xpose.msra.mxu0 0.0
    %1511 = vmatprep.subr.mxu0 0.0
    %1512 = vmatpush1.xpose.msra.mxu0 0.0
    %1513 = vmatprep.subr.mxu0 0.0
    %1514 = vmatpush1.xpose.msra.mxu0 0.0
    %1515 = vmatprep.subr.mxu0 0.0
    %1516 = vmatpush1.xpose.msra.mxu0 0.0
    %1517 = vmatprep.subr.mxu0 0.0
    %1518 = vmatpush1.xpose.msra.mxu0 0.0
    %1519 = vmatprep.subr.mxu0 0.0
    %1520 = vmatpush1.xpose.msra.mxu0 0.0
    %1521 = vmatprep.subr.mxu0 0.0
    %1522 = vmatpush1.xpose.msra.mxu0 0.0
    %1523 = vmatprep.subr.mxu0 0.0
    %1524 = vmatpush1.xpose.msra.mxu0 0.0
    %1525 = vmatprep.mubr.f32.mxu0 0.0
    %1526 = vmatmul.mubr.f32.gmra.mrb[0].mxu0 %v1453
    %v1527 = vpop.f32.mrb[0].mxu0
    %v1528 = vadd.f32 0.0, %v1527
    %v1529 = vpop.f32.mrb[0].mxu0
    %1530 = vmatprep.mubr.f32.mxu0 0.0
    %1531 = vmatmul.mubr.f32.gmra.mrb[0].mxu0 %v1456
    %v1532 = vpop.f32.mrb[0].mxu0
    %v1533 = vadd.f32 0.0, %v1532
    %v1534 = vpop.f32.mrb[0].mxu0
    %1535 = vdwg.mxu0
    %v1537 = vsel %vm443, %v437, 0
    %v1540 = vsel %vm443, %v438, 0
    %v1543 = vsel %vm443, %v215, 0
    %1545 = vmatprep.subr.mxu0 0.0
    %1546 = vmatpush1.xpose.msra.mxu0 %v1543
    %1547 = vmatprep.subr.mxu0 0.0
    %1548 = vmatpush1.xpose.msra.mxu0 0.0
    %1549 = vmatprep.subr.mxu0 0.0
    %1550 = vmatpush1.xpose.msra.mxu0 0.0
    %1551 = vmatprep.subr.mxu0 0.0
    %1552 = vmatpush1.xpose.msra.mxu0 0.0
    %1553 = vmatprep.subr.mxu0 0.0
    %1554 = vmatpush1.xpose.msra.mxu0 0.0
    %1555 = vmatprep.subr.mxu0 0.0
    %1556 = vmatpush1.xpose.msra.mxu0 0.0
    %1557 = vmatprep.subr.mxu0 0.0
    %1558 = vmatpush1.xpose.msra.mxu0 0.0
    %1559 = vmatprep.subr.mxu0 0.0
    %1560 = vmatpush1.xpose.msra.mxu0 0.0
    %1561 = vmatprep.subr.mxu0 0.0
    %1562 = vmatpush1.xpose.msra.mxu0 0.0
    %1563 = vmatprep.subr.mxu0 0.0
    %1564 = vmatpush1.xpose.msra.mxu0 0.0
    %1565 = vmatprep.subr.mxu0 0.0
    %1566 = vmatpush1.xpose.msra.mxu0 0.0
    %1567 = vmatprep.subr.mxu0 0.0
    %1568 = vmatpush1.xpose.msra.mxu0 0.0
    %1569 = vmatprep.subr.mxu0 0.0
    %1570 = vmatpush1.xpose.msra.mxu0 0.0
    %1571 = vmatprep.subr.mxu0 0.0
    %1572 = vmatpush1.xpose.msra.mxu0 0.0
    %1573 = vmatprep.subr.mxu0 0.0
    %1574 = vmatpush1.xpose.msra.mxu0 0.0
    %1575 = vmatprep.subr.mxu0 0.0
    %1576 = vmatpush1.xpose.msra.mxu0 0.0
    %1577 = vmatprep.subr.mxu0 0.0
    %1578 = vmatpush1.xpose.msra.mxu0 0.0
    %1579 = vmatprep.subr.mxu0 0.0
    %1580 = vmatpush1.xpose.msra.mxu0 0.0
    %1581 = vmatprep.subr.mxu0 0.0
    %1582 = vmatpush1.xpose.msra.mxu0 0.0
    %1583 = vmatprep.subr.mxu0 0.0
    %1584 = vmatpush1.xpose.msra.mxu0 0.0
    %1585 = vmatprep.subr.mxu0 0.0
    %1586 = vmatpush1.xpose.msra.mxu0 0.0
    %1587 = vmatprep.subr.mxu0 0.0
    %1588 = vmatpush1.xpose.msra.mxu0 0.0
    %1589 = vmatprep.subr.mxu0 0.0
    %1590 = vmatpush1.xpose.msra.mxu0 0.0
    %1591 = vmatprep.subr.mxu0 0.0
    %1592 = vmatpush1.xpose.msra.mxu0 0.0
    %1593 = vmatprep.subr.mxu0 0.0
    %1594 = vmatpush1.xpose.msra.mxu0 0.0
    %1595 = vmatprep.subr.mxu0 0.0
    %1596 = vmatpush1.xpose.msra.mxu0 0.0
    %1597 = vmatprep.subr.mxu0 0.0
    %1598 = vmatpush1.xpose.msra.mxu0 0.0
    %1599 = vmatprep.subr.mxu0 0.0
    %1600 = vmatpush1.xpose.msra.mxu0 0.0
    %1601 = vmatprep.subr.mxu0 0.0
    %1602 = vmatpush1.xpose.msra.mxu0 0.0
    %1603 = vmatprep.subr.mxu0 0.0
    %1604 = vmatpush1.xpose.msra.mxu0 0.0
    %1605 = vmatprep.subr.mxu0 0.0
    %1606 = vmatpush1.xpose.msra.mxu0 0.0
    %1607 = vmatprep.subr.mxu0 0.0
    %1608 = vmatpush1.xpose.msra.mxu0 0.0
    %1609 = vmatprep.mubr.f32.mxu0 0.0
    %1610 = vmatmul.mubr.f32.gmra.mrb[0].mxu0 %v1537
    %v1611 = vpop.f32.mrb[0].mxu0
    %v1612 = vadd.f32 0.0, %v1611
    %v1613 = vpop.f32.mrb[0].mxu0
    %1614 = vmatprep.mubr.f32.mxu0 0.0
    %1615 = vmatmul.mubr.f32.gmra.mrb[0].mxu0 %v1540
    %v1616 = vpop.f32.mrb[0].mxu0
    %v1617 = vadd.f32 0.0, %v1616
    %v1618 = vpop.f32.mrb[0].mxu0
    %1619 = vdwg.mxu0
    %v1621 = vsel %vm443, %v439, 0
    %v1624 = vsel %vm443, %v440, 0
    %v1627 = vsel %vm443, %v220, 0
    %1629 = vmatprep.subr.mxu0 0.0
    %1630 = vmatpush1.xpose.msra.mxu0 %v1627
    %1631 = vmatprep.subr.mxu0 0.0
    %1632 = vmatpush1.xpose.msra.mxu0 0.0
    %1633 = vmatprep.subr.mxu0 0.0
    %1634 = vmatpush1.xpose.msra.mxu0 0.0
    %1635 = vmatprep.subr.mxu0 0.0
    %1636 = vmatpush1.xpose.msra.mxu0 0.0
    %1637 = vmatprep.subr.mxu0 0.0
    %1638 = vmatpush1.xpose.msra.mxu0 0.0
    %1639 = vmatprep.subr.mxu0 0.0
    %1640 = vmatpush1.xpose.msra.mxu0 0.0
    %1641 = vmatprep.subr.mxu0 0.0
    %1642 = vmatpush1.xpose.msra.mxu0 0.0
    %1643 = vmatprep.subr.mxu0 0.0
    %1644 = vmatpush1.xpose.msra.mxu0 0.0
    %1645 = vmatprep.subr.mxu0 0.0
    %1646 = vmatpush1.xpose.msra.mxu0 0.0
    %1647 = vmatprep.subr.mxu0 0.0
    %1648 = vmatpush1.xpose.msra.mxu0 0.0
    %1649 = vmatprep.subr.mxu0 0.0
    %1650 = vmatpush1.xpose.msra.mxu0 0.0
    %1651 = vmatprep.subr.mxu0 0.0
    %1652 = vmatpush1.xpose.msra.mxu0 0.0
    %1653 = vmatprep.subr.mxu0 0.0
    %1654 = vmatpush1.xpose.msra.mxu0 0.0
    %1655 = vmatprep.subr.mxu0 0.0
    %1656 = vmatpush1.xpose.msra.mxu0 0.0
    %1657 = vmatprep.subr.mxu0 0.0
    %1658 = vmatpush1.xpose.msra.mxu0 0.0
    %1659 = vmatprep.subr.mxu0 0.0
    %1660 = vmatpush1.xpose.msra.mxu0 0.0
    %1661 = vmatprep.subr.mxu0 0.0
    %1662 = vmatpush1.xpose.msra.mxu0 0.0
    %1663 = vmatprep.subr.mxu0 0.0
    %1664 = vmatpush1.xpose.msra.mxu0 0.0
    %1665 = vmatprep.subr.mxu0 0.0
    %1666 = vmatpush1.xpose.msra.mxu0 0.0
    %1667 = vmatprep.subr.mxu0 0.0
    %1668 = vmatpush1.xpose.msra.mxu0 0.0
    %1669 = vmatprep.subr.mxu0 0.0
    %1670 = vmatpush1.xpose.msra.mxu0 0.0
    %1671 = vmatprep.subr.mxu0 0.0
    %1672 = vmatpush1.xpose.msra.mxu0 0.0
    %1673 = vmatprep.subr.mxu0 0.0
    %1674 = vmatpush1.xpose.msra.mxu0 0.0
    %1675 = vmatprep.subr.mxu0 0.0
    %1676 = vmatpush1.xpose.msra.mxu0 0.0
    %1677 = vmatprep.subr.mxu0 0.0
    %1678 = vmatpush1.xpose.msra.mxu0 0.0
    %1679 = vmatprep.subr.mxu0 0.0
    %1680 = vmatpush1.xpose.msra.mxu0 0.0
    %1681 = vmatprep.subr.mxu0 0.0
    %1682 = vmatpush1.xpose.msra.mxu0 0.0
    %1683 = vmatprep.subr.mxu0 0.0
    %1684 = vmatpush1.xpose.msra.mxu0 0.0
    %1685 = vmatprep.subr.mxu0 0.0
    %1686 = vmatpush1.xpose.msra.mxu0 0.0
    %1687 = vmatprep.subr.mxu0 0.0
    %1688 = vmatpush1.xpose.msra.mxu0 0.0
    %1689 = vmatprep.subr.mxu0 0.0
    %1690 = vmatpush1.xpose.msra.mxu0 0.0
    %1691 = vmatprep.subr.mxu0 0.0
    %1692 = vmatpush1.xpose.msra.mxu0 0.0
    %1693 = vmatprep.mubr.f32.mxu0 0.0
    %1694 = vmatmul.mubr.f32.gmra.mrb[0].mxu0 %v1621
    %v1695 = vpop.f32.mrb[0].mxu0
    %v1696 = vadd.f32 0.0, %v1695
    %v1697 = vpop.f32.mrb[0].mxu0
    %1698 = vmatprep.mubr.f32.mxu0 0.0
    %1699 = vmatmul.mubr.f32.gmra.mrb[0].mxu0 %v1624
    %v1700 = vpop.f32.mrb[0].mxu0
    %v1701 = vadd.f32 0.0, %v1700
    %v1702 = vpop.f32.mrb[0].mxu0
    %1703 = vdwg.mxu0
    %v1705 = vsel %vm443, %v441, 0
    %v1708 = vsel %vm443, %v442, 0
    %v1711 = vsel %vm443, %v223, 0
    %1713 = vmatprep.subr.mxu0 0.0
    %1714 = vmatpush1.xpose.msra.mxu0 %v1711
    %1715 = vmatprep.subr.mxu0 0.0
    %1716 = vmatpush1.xpose.msra.mxu0 0.0
    %1717 = vmatprep.subr.mxu0 0.0
    %1718 = vmatpush1.xpose.msra.mxu0 0.0
    %1719 = vmatprep.subr.mxu0 0.0
    %1720 = vmatpush1.xpose.msra.mxu0 0.0
    %1721 = vmatprep.subr.mxu0 0.0
    %1722 = vmatpush1.xpose.msra.mxu0 0.0
    %1723 = vmatprep.subr.mxu0 0.0
    %1724 = vmatpush1.xpose.msra.mxu0 0.0
    %1725 = vmatprep.subr.mxu0 0.0
    %1726 = vmatpush1.xpose.msra.mxu0 0.0
    %1727 = vmatprep.subr.mxu0 0.0
    %1728 = vmatpush1.xpose.msra.mxu0 0.0
    %1729 = vmatprep.subr.mxu0 0.0
    %1730 = vmatpush1.xpose.msra.mxu0 0.0
    %1731 = vmatprep.subr.mxu0 0.0
    %1732 = vmatpush1.xpose.msra.mxu0 0.0
    %1733 = vmatprep.subr.mxu0 0.0
    %1734 = vmatpush1.xpose.msra.mxu0 0.0
    %1735 = vmatprep.subr.mxu0 0.0
    %1736 = vmatpush1.xpose.msra.mxu0 0.0
    %1737 = vmatprep.subr.mxu0 0.0
    %1738 = vmatpush1.xpose.msra.mxu0 0.0
    %1739 = vmatprep.subr.mxu0 0.0
    %1740 = vmatpush1.xpose.msra.mxu0 0.0
    %1741 = vmatprep.subr.mxu0 0.0
    %1742 = vmatpush1.xpose.msra.mxu0 0.0
    %1743 = vmatprep.subr.mxu0 0.0
    %1744 = vmatpush1.xpose.msra.mxu0 0.0
    %1745 = vmatprep.subr.mxu0 0.0
    %1746 = vmatpush1.xpose.msra.mxu0 0.0
    %1747 = vmatprep.subr.mxu0 0.0
    %1748 = vmatpush1.xpose.msra.mxu0 0.0
    %1749 = vmatprep.subr.mxu0 0.0
    %1750 = vmatpush1.xpose.msra.mxu0 0.0
    %1751 = vmatprep.subr.mxu0 0.0
    %1752 = vmatpush1.xpose.msra.mxu0 0.0
    %1753 = vmatprep.subr.mxu0 0.0
    %1754 = vmatpush1.xpose.msra.mxu0 0.0
    %1755 = vmatprep.subr.mxu0 0.0
    %1756 = vmatpush1.xpose.msra.mxu0 0.0
    %1757 = vmatprep.subr.mxu0 0.0
    %1758 = vmatpush1.xpose.msra.mxu0 0.0
    %1759 = vmatprep.subr.mxu0 0.0
    %1760 = vmatpush1.xpose.msra.mxu0 0.0
    %1761 = vmatprep.subr.mxu0 0.0
    %1762 = vmatpush1.xpose.msra.mxu0 0.0
    %1763 = vmatprep.subr.mxu0 0.0
    %1764 = vmatpush1.xpose.msra.mxu0 0.0
    %1765 = vmatprep.subr.mxu0 0.0
    %1766 = vmatpush1.xpose.msra.mxu0 0.0
    %1767 = vmatprep.subr.mxu0 0.0
    %1768 = vmatpush1.xpose.msra.mxu0 0.0
    %1769 = vmatprep.subr.mxu0 0.0
    %1770 = vmatpush1.xpose.msra.mxu0 0.0
    %1771 = vmatprep.subr.mxu0 0.0
    %1772 = vmatpush1.xpose.msra.mxu0 0.0
    %1773 = vmatprep.subr.mxu0 0.0
    %1774 = vmatpush1.xpose.msra.mxu0 0.0
    %1775 = vmatprep.subr.mxu0 0.0
    %1776 = vmatpush1.xpose.msra.mxu0 0.0
    %1777 = vmatprep.mubr.f32.mxu0 0.0
    %1778 = vmatmul.mubr.f32.gmra.mrb[0].mxu0 %v1705
    %v1779 = vpop.f32.mrb[0].mxu0
    %v1780 = vadd.f32 0.0, %v1779
    %v1781 = vpop.f32.mrb[0].mxu0
    %1782 = vmatprep.mubr.f32.mxu0 0.0
    %1783 = vmatmul.mubr.f32.gmra.mrb[0].mxu0 %v1708
    %v1784 = vpop.f32.mrb[0].mxu0
    %v1785 = vadd.f32 0.0, %v1784
    %v1786 = vpop.f32.mrb[0].mxu0
    %1787 = vdwg.mxu0
    %vm1788 = vcmask 64512
    %v1789 = vsel %vm1788, %v520, -inf
    %1790 = vmax.xlane.f32.xlu0 %v1789
    %v1791 = vpop.xlane.xlu0 %1790
    %v1792 = vsel %vm1788, %v525, -inf
    %1793 = vmax.xlane.f32.xlu0 %v1792
    %v1794 = vpop.xlane.xlu0 %1793
    %v1795 = vsel %vm1788, %v604, -inf
    %1796 = vmax.xlane.f32.xlu0 %v1795
    %v1797 = vpop.xlane.xlu0 %1796
    %v1798 = vsel %vm1788, %v609, -inf
    %1799 = vmax.xlane.f32.xlu0 %v1798
    %v1800 = vpop.xlane.xlu0 %1799
    %v1801 = vsel %vm1788, %v688, -inf
    %1802 = vmax.xlane.f32.xlu0 %v1801
    %v1803 = vpop.xlane.xlu0 %1802
    %v1804 = vsel %vm1788, %v693, -inf
    %1805 = vmax.xlane.f32.xlu0 %v1804
    %v1806 = vpop.xlane.xlu0 %1805
    %v1807 = vsel %vm1788, %v772, -inf
    %1808 = vmax.xlane.f32.xlu0 %v1807
    %v1809 = vpop.xlane.xlu0 %1808
    %v1810 = vsel %vm1788, %v777, -inf
    %1811 = vmax.xlane.f32.xlu0 %v1810
    %v1812 = vpop.xlane.xlu0 %1811
    %v1813 = vsel %vm1788, %v856, -inf
    %1814 = vmax.xlane.f32.xlu0 %v1813
    %v1815 = vpop.xlane.xlu0 %1814
    %v1816 = vsel %vm1788, %v861, -inf
    %1817 = vmax.xlane.f32.xlu0 %v1816
    %v1818 = vpop.xlane.xlu0 %1817
    %v1819 = vsel %vm1788, %v940, -inf
    %1820 = vmax.xlane.f32.xlu0 %v1819
    %v1821 = vpop.xlane.xlu0 %1820
    %v1822 = vsel %vm1788, %v945, -inf
    %1823 = vmax.xlane.f32.xlu0 %v1822
    %v1824 = vpop.xlane.xlu0 %1823
    %v1825 = vsel %vm1788, %v1024, -inf
    %1826 = vmax.xlane.f32.xlu0 %v1825
    %v1827 = vpop.xlane.xlu0 %1826
    %v1828 = vsel %vm1788, %v1029, -inf
    %1829 = vmax.xlane.f32.xlu0 %v1828
    %v1830 = vpop.xlane.xlu0 %1829
    %v1831 = vsel %vm1788, %v1108, -inf
    %1832 = vmax.xlane.f32.xlu0 %v1831
    %v1833 = vpop.xlane.xlu0 %1832
    %v1834 = vsel %vm1788, %v1113, -inf
    %1835 = vmax.xlane.f32.xlu0 %v1834
    %v1836 = vpop.xlane.xlu0 %1835
    %v1837 = vsel %vm1788, %v1192, -inf
    %1838 = vmax.xlane.f32.xlu0 %v1837
    %v1839 = vpop.xlane.xlu0 %1838
    %v1840 = vsel %vm1788, %v1197, -inf
    %1841 = vmax.xlane.f32.xlu0 %v1840
    %v1842 = vpop.xlane.xlu0 %1841
    %v1843 = vsel %vm1788, %v1276, -inf
    %1844 = vmax.xlane.f32.xlu0 %v1843
    %v1845 = vpop.xlane.xlu0 %1844
    %v1846 = vsel %vm1788, %v1281, -inf
    %1847 = vmax.xlane.f32.xlu0 %v1846
    %v1848 = vpop.xlane.xlu0 %1847
    %v1849 = vsel %vm1788, %v1360, -inf
    %1850 = vmax.xlane.f32.xlu0 %v1849
    %v1851 = vpop.xlane.xlu0 %1850
    %v1852 = vsel %vm1788, %v1365, -inf
    %1853 = vmax.xlane.f32.xlu0 %v1852
    %v1854 = vpop.xlane.xlu0 %1853
    %v1855 = vsel %vm1788, %v1444, -inf
    %1856 = vmax.xlane.f32.xlu0 %v1855
    %v1857 = vpop.xlane.xlu0 %1856
    %v1858 = vsel %vm1788, %v1449, -inf
    %1859 = vmax.xlane.f32.xlu0 %v1858
    %v1860 = vpop.xlane.xlu0 %1859
    %v1861 = vsel %vm1788, %v1528, -inf
    %1862 = vmax.xlane.f32.xlu0 %v1861
    %v1863 = vpop.xlane.xlu0 %1862
    %v1864 = vsel %vm1788, %v1533, -inf
    %1865 = vmax.xlane.f32.xlu0 %v1864
    %v1866 = vpop.xlane.xlu0 %1865
    %v1867 = vsel %vm1788, %v1612, -inf
    %1868 = vmax.xlane.f32.xlu0 %v1867
    %v1869 = vpop.xlane.xlu0 %1868
    %v1870 = vsel %vm1788, %v1617, -inf
    %1871 = vmax.xlane.f32.xlu0 %v1870
    %v1872 = vpop.xlane.xlu0 %1871
    %v1873 = vsel %vm1788, %v1696, -inf
    %1874 = vmax.xlane.f32.xlu0 %v1873
    %v1875 = vpop.xlane.xlu0 %1874
    %v1876 = vsel %vm1788, %v1701, -inf
    %1877 = vmax.xlane.f32.xlu0 %v1876
    %v1878 = vpop.xlane.xlu0 %1877
    %v1879 = vsel %vm1788, %v1780, -inf
    %1880 = vmax.xlane.f32.xlu0 %v1879
    %v1881 = vpop.xlane.xlu0 %1880
    %v1882 = vsel %vm1788, %v1785, -inf
    %1883 = vmax.xlane.f32.xlu0 %v1882
    %v1884 = vpop.xlane.xlu0 %1883
    %v1885 = vsub.f32 %v520, %v1791
    %v1886 = vsub.f32 %v525, %v1794
    %v1887 = vsub.f32 %v604, %v1797
    %v1888 = vsub.f32 %v609, %v1800
    %v1889 = vsub.f32 %v688, %v1803
    %v1890 = vsub.f32 %v693, %v1806
    %v1891 = vsub.f32 %v772, %v1809
    %v1892 = vsub.f32 %v777, %v1812
    %v1893 = vsub.f32 %v856, %v1815
    %v1894 = vsub.f32 %v861, %v1818
    %v1895 = vsub.f32 %v940, %v1821
    %v1896 = vsub.f32 %v945, %v1824
    %v1897 = vsub.f32 %v1024, %v1827
    %v1898 = vsub.f32 %v1029, %v1830
    %v1899 = vsub.f32 %v1108, %v1833
    %v1900 = vsub.f32 %v1113, %v1836
    %v1901 = vsub.f32 %v1192, %v1839
    %v1902 = vsub.f32 %v1197, %v1842
    %v1903 = vsub.f32 %v1276, %v1845
    %v1904 = vsub.f32 %v1281, %v1848
    %v1905 = vsub.f32 %v1360, %v1851
    %v1906 = vsub.f32 %v1365, %v1854
    %v1907 = vsub.f32 %v1444, %v1857
    %v1908 = vsub.f32 %v1449, %v1860
    %v1909 = vsub.f32 %v1528, %v1863
    %v1910 = vsub.f32 %v1533, %v1866
    %v1911 = vsub.f32 %v1612, %v1869
    %v1912 = vsub.f32 %v1617, %v1872
    %v1913 = vsub.f32 %v1696, %v1875
    %v1914 = vsub.f32 %v1701, %v1878
    %v1915 = vsub.f32 %v1780, %v1881
    %v1916 = vsub.f32 %v1785, %v1884
    %v1917 = vmul.f32 %v1885, 1.442695
    %v1918 = vpow.pop %v1917
    %v1919 = vmul.f32 %v1886, 1.442695
    %v1920 = vpow.pop %v1919
    %v1921 = vmul.f32 %v1887, 1.442695
    %v1922 = vpow.pop %v1921
    %v1923 = vmul.f32 %v1888, 1.442695
    %v1924 = vpow.pop %v1923
    %v1925 = vmul.f32 %v1889, 1.442695
    %v1926 = vpow.pop %v1925
    %v1927 = vmul.f32 %v1890, 1.442695
    %v1928 = vpow.pop %v1927
    %v1929 = vmul.f32 %v1891, 1.442695
    %v1930 = vpow.pop %v1929
    %v1931 = vmul.f32 %v1892, 1.442695
    %v1932 = vpow.pop %v1931
    %v1933 = vmul.f32 %v1893, 1.442695
    %v1934 = vpow.pop %v1933
    %v1935 = vmul.f32 %v1894, 1.442695
    %v1936 = vpow.pop %v1935
    %v1937 = vmul.f32 %v1895, 1.442695
    %v1938 = vpow.pop %v1937
    %v1939 = vmul.f32 %v1896, 1.442695
    %v1940 = vpow.pop %v1939
    %v1941 = vmul.f32 %v1897, 1.442695
    %v1942 = vpow.pop %v1941
    %v1943 = vmul.f32 %v1898, 1.442695
    %v1944 = vpow.pop %v1943
    %v1945 = vmul.f32 %v1899, 1.442695
    %v1946 = vpow.pop %v1945
    %v1947 = vmul.f32 %v1900, 1.442695
    %v1948 = vpow.pop %v1947
    %v1949 = vmul.f32 %v1901, 1.442695
    %v1950 = vpow.pop %v1949
    %v1951 = vmul.f32 %v1902, 1.442695
    %v1952 = vpow.pop %v1951
    %v1953 = vmul.f32 %v1903, 1.442695
    %v1954 = vpow.pop %v1953
    %v1955 = vmul.f32 %v1904, 1.442695
    %v1956 = vpow.pop %v1955
    %v1957 = vmul.f32 %v1905, 1.442695
    %v1958 = vpow.pop %v1957
    %v1959 = vmul.f32 %v1906, 1.442695
    %v1960 = vpow.pop %v1959
    %v1961 = vmul.f32 %v1907, 1.442695
    %v1962 = vpow.pop %v1961
    %v1963 = vmul.f32 %v1908, 1.442695
    %v1964 = vpow.pop %v1963
    %v1965 = vmul.f32 %v1909, 1.442695
    %v1966 = vpow.pop %v1965
    %v1967 = vmul.f32 %v1910, 1.442695
    %v1968 = vpow.pop %v1967
    %v1969 = vmul.f32 %v1911, 1.442695
    %v1970 = vpow.pop %v1969
    %v1971 = vmul.f32 %v1912, 1.442695
    %v1972 = vpow.pop %v1971
    %v1973 = vmul.f32 %v1913, 1.442695
    %v1974 = vpow.pop %v1973
    %v1975 = vmul.f32 %v1914, 1.442695
    %v1976 = vpow.pop %v1975
    %v1977 = vmul.f32 %v1915, 1.442695
    %v1978 = vpow.pop %v1977
    %v1979 = vmul.f32 %v1916, 1.442695
    %v1980 = vpow.pop %v1979
    %v1981 = vsel %vm1788, %v1918, 0.0
    %1982 = vadd.xlane.f32.xlu0 %v1981
    %v1983 = vpop.xlane.xlu0 %1982
    %v1984 = vsel %vm1788, %v1920, 0.0
    %1985 = vadd.xlane.f32.xlu0 %v1984
    %v1986 = vpop.xlane.xlu0 %1985
    %v1987 = vsel %vm1788, %v1922, 0.0
    %1988 = vadd.xlane.f32.xlu0 %v1987
    %v1989 = vpop.xlane.xlu0 %1988
    %v1990 = vsel %vm1788, %v1924, 0.0
    %1991 = vadd.xlane.f32.xlu0 %v1990
    %v1992 = vpop.xlane.xlu0 %1991
    %v1993 = vsel %vm1788, %v1926, 0.0
    %1994 = vadd.xlane.f32.xlu0 %v1993
    %v1995 = vpop.xlane.xlu0 %1994
    %v1996 = vsel %vm1788, %v1928, 0.0
    %1997 = vadd.xlane.f32.xlu0 %v1996
    %v1998 = vpop.xlane.xlu0 %1997
    %v1999 = vsel %vm1788, %v1930, 0.0
    %2000 = vadd.xlane.f32.xlu0 %v1999
    %v2001 = vpop.xlane.xlu0 %2000
    %v2002 = vsel %vm1788, %v1932, 0.0
    %2003 = vadd.xlane.f32.xlu0 %v2002
    %v2004 = vpop.xlane.xlu0 %2003
    %v2005 = vsel %vm1788, %v1934, 0.0
    %2006 = vadd.xlane.f32.xlu0 %v2005
    %v2007 = vpop.xlane.xlu0 %2006
    %v2008 = vsel %vm1788, %v1936, 0.0
    %2009 = vadd.xlane.f32.xlu0 %v2008
    %v2010 = vpop.xlane.xlu0 %2009
    %v2011 = vsel %vm1788, %v1938, 0.0
    %2012 = vadd.xlane.f32.xlu0 %v2011
    %v2013 = vpop.xlane.xlu0 %2012
    %v2014 = vsel %vm1788, %v1940, 0.0
    %2015 = vadd.xlane.f32.xlu0 %v2014
    %v2016 = vpop.xlane.xlu0 %2015
    %v2017 = vsel %vm1788, %v1942, 0.0
    %2018 = vadd.xlane.f32.xlu0 %v2017
    %v2019 = vpop.xlane.xlu0 %2018
    %v2020 = vsel %vm1788, %v1944, 0.0
    %2021 = vadd.xlane.f32.xlu0 %v2020
    %v2022 = vpop.xlane.xlu0 %2021
    %v2023 = vsel %vm1788, %v1946, 0.0
    %2024 = vadd.xlane.f32.xlu0 %v2023
    %v2025 = vpop.xlane.xlu0 %2024
    %v2026 = vsel %vm1788, %v1948, 0.0
    %2027 = vadd.xlane.f32.xlu0 %v2026
    %v2028 = vpop.xlane.xlu0 %2027
    %v2029 = vsel %vm1788, %v1950, 0.0
    %2030 = vadd.xlane.f32.xlu0 %v2029
    %v2031 = vpop.xlane.xlu0 %2030
    %v2032 = vsel %vm1788, %v1952, 0.0
    %2033 = vadd.xlane.f32.xlu0 %v2032
    %v2034 = vpop.xlane.xlu0 %2033
    %v2035 = vsel %vm1788, %v1954, 0.0
    %2036 = vadd.xlane.f32.xlu0 %v2035
    %v2037 = vpop.xlane.xlu0 %2036
    %v2038 = vsel %vm1788, %v1956, 0.0
    %2039 = vadd.xlane.f32.xlu0 %v2038
    %v2040 = vpop.xlane.xlu0 %2039
    %v2041 = vsel %vm1788, %v1958, 0.0
    %2042 = vadd.xlane.f32.xlu0 %v2041
    %v2043 = vpop.xlane.xlu0 %2042
    %v2044 = vsel %vm1788, %v1960, 0.0
    %2045 = vadd.xlane.f32.xlu0 %v2044
    %v2046 = vpop.xlane.xlu0 %2045
    %v2047 = vsel %vm1788, %v1962, 0.0
    %2048 = vadd.xlane.f32.xlu0 %v2047
    %v2049 = vpop.xlane.xlu0 %2048
    %v2050 = vsel %vm1788, %v1964, 0.0
    %2051 = vadd.xlane.f32.xlu0 %v2050
    %v2052 = vpop.xlane.xlu0 %2051
    %v2053 = vsel %vm1788, %v1966, 0.0
    %2054 = vadd.xlane.f32.xlu0 %v2053
    %v2055 = vpop.xlane.xlu0 %2054
    %v2056 = vsel %vm1788, %v1968, 0.0
    %2057 = vadd.xlane.f32.xlu0 %v2056
    %v2058 = vpop.xlane.xlu0 %2057
    %v2059 = vsel %vm1788, %v1970, 0.0
    %2060 = vadd.xlane.f32.xlu0 %v2059
    %v2061 = vpop.xlane.xlu0 %2060
    %v2062 = vsel %vm1788, %v1972, 0.0
    %2063 = vadd.xlane.f32.xlu0 %v2062
    %v2064 = vpop.xlane.xlu0 %2063
    %v2065 = vsel %vm1788, %v1974, 0.0
    %2066 = vadd.xlane.f32.xlu0 %v2065
    %v2067 = vpop.xlane.xlu0 %2066
    %v2068 = vsel %vm1788, %v1976, 0.0
    %2069 = vadd.xlane.f32.xlu0 %v2068
    %v2070 = vpop.xlane.xlu0 %2069
    %v2071 = vsel %vm1788, %v1978, 0.0
    %2072 = vadd.xlane.f32.xlu0 %v2071
    %v2073 = vpop.xlane.xlu0 %2072
    %v2074 = vsel %vm1788, %v1980, 0.0
    %2075 = vadd.xlane.f32.xlu0 %v2074
    %v2076 = vpop.xlane.xlu0 %2075
    %v2077 = vrcp.pop %v1983
    %v2078 = vmul.f32 %v1918, %v2077
    %v2079 = vrcp.pop %v1986
    %v2080 = vmul.f32 %v1920, %v2079
    %v2081 = vrcp.pop %v1989
    %v2082 = vmul.f32 %v1922, %v2081
    %v2083 = vrcp.pop %v1992
    %v2084 = vmul.f32 %v1924, %v2083
    %v2085 = vrcp.pop %v1995
    %v2086 = vmul.f32 %v1926, %v2085
    %v2087 = vrcp.pop %v1998
    %v2088 = vmul.f32 %v1928, %v2087
    %v2089 = vrcp.pop %v2001
    %v2090 = vmul.f32 %v1930, %v2089
    %v2091 = vrcp.pop %v2004
    %v2092 = vmul.f32 %v1932, %v2091
    %v2093 = vrcp.pop %v2007
    %v2094 = vmul.f32 %v1934, %v2093
    %v2095 = vrcp.pop %v2010
    %v2096 = vmul.f32 %v1936, %v2095
    %v2097 = vrcp.pop %v2013
    %v2098 = vmul.f32 %v1938, %v2097
    %v2099 = vrcp.pop %v2016
    %v2100 = vmul.f32 %v1940, %v2099
    %v2101 = vrcp.pop %v2019
    %v2102 = vmul.f32 %v1942, %v2101
    %v2103 = vrcp.pop %v2022
    %v2104 = vmul.f32 %v1944, %v2103
    %v2105 = vrcp.pop %v2025
    %v2106 = vmul.f32 %v1946, %v2105
    %v2107 = vrcp.pop %v2028
    %v2108 = vmul.f32 %v1948, %v2107
    %v2109 = vrcp.pop %v2031
    %v2110 = vmul.f32 %v1950, %v2109
    %v2111 = vrcp.pop %v2034
    %v2112 = vmul.f32 %v1952, %v2111
    %v2113 = vrcp.pop %v2037
    %v2114 = vmul.f32 %v1954, %v2113
    %v2115 = vrcp.pop %v2040
    %v2116 = vmul.f32 %v1956, %v2115
    %v2117 = vrcp.pop %v2043
    %v2118 = vmul.f32 %v1958, %v2117
    %v2119 = vrcp.pop %v2046
    %v2120 = vmul.f32 %v1960, %v2119
    %v2121 = vrcp.pop %v2049
    %v2122 = vmul.f32 %v1962, %v2121
    %v2123 = vrcp.pop %v2052
    %v2124 = vmul.f32 %v1964, %v2123
    %v2125 = vrcp.pop %v2055
    %v2126 = vmul.f32 %v1966, %v2125
    %v2127 = vrcp.pop %v2058
    %v2128 = vmul.f32 %v1968, %v2127
    %v2129 = vrcp.pop %v2061
    %v2130 = vmul.f32 %v1970, %v2129
    %v2131 = vrcp.pop %v2064
    %v2132 = vmul.f32 %v1972, %v2131
    %v2133 = vrcp.pop %v2067
    %v2134 = vmul.f32 %v1974, %v2133
    %v2135 = vrcp.pop %v2070
    %v2136 = vmul.f32 %v1976, %v2135
    %v2137 = vrcp.pop %v2073
    %v2138 = vmul.f32 %v1978, %v2137
    %v2139 = vrcp.pop %v2076
    %v2140 = vmul.f32 %v1980, %v2139
    %v2142 = vsel %vm1788, %v2078, 0
    %v2145 = vsel %vm1788, %v2080, 0
    %2147 = vmatprep.subr.mxu0 0.0
    %2148 = vmatpush1.msra.mxu0 %v164
    %2149 = vmatprep.subr.mxu0 0.0
    %2150 = vmatpush1.msra.mxu0 0.0
    %2151 = vmatprep.subr.mxu0 0.0
    %2152 = vmatpush1.msra.mxu0 0.0
    %2153 = vmatprep.subr.mxu0 0.0
    %2154 = vmatpush1.msra.mxu0 0.0
    %2155 = vmatprep.subr.mxu0 0.0
    %2156 = vmatpush1.msra.mxu0 0.0
    %2157 = vmatprep.subr.mxu0 0.0
    %2158 = vmatpush1.msra.mxu0 0.0
    %2159 = vmatprep.subr.mxu0 0.0
    %2160 = vmatpush1.msra.mxu0 0.0
    %2161 = vmatprep.subr.mxu0 0.0
    %2162 = vmatpush1.msra.mxu0 0.0
    %2163 = vmatprep.subr.mxu0 0.0
    %2164 = vmatpush1.msra.mxu0 0.0
    %2165 = vmatprep.subr.mxu0 0.0
    %2166 = vmatpush1.msra.mxu0 0.0
    %2167 = vmatprep.subr.mxu0 0.0
    %2168 = vmatpush1.msra.mxu0 0.0
    %2169 = vmatprep.subr.mxu0 0.0
    %2170 = vmatpush1.msra.mxu0 0.0
    %2171 = vmatprep.subr.mxu0 0.0
    %2172 = vmatpush1.msra.mxu0 0.0
    %2173 = vmatprep.subr.mxu0 0.0
    %2174 = vmatpush1.msra.mxu0 0.0
    %2175 = vmatprep.subr.mxu0 0.0
    %2176 = vmatpush1.msra.mxu0 0.0
    %2177 = vmatprep.subr.mxu0 0.0
    %2178 = vmatpush1.msra.mxu0 0.0
    %2179 = vmatprep.subr.mxu0 0.0
    %2180 = vmatpush1.msra.mxu0 0.0
    %2181 = vmatprep.subr.mxu0 0.0
    %2182 = vmatpush1.msra.mxu0 0.0
    %2183 = vmatprep.subr.mxu0 0.0
    %2184 = vmatpush1.msra.mxu0 0.0
    %2185 = vmatprep.subr.mxu0 0.0
    %2186 = vmatpush1.msra.mxu0 0.0
    %2187 = vmatprep.subr.mxu0 0.0
    %2188 = vmatpush1.msra.mxu0 0.0
    %2189 = vmatprep.subr.mxu0 0.0
    %2190 = vmatpush1.msra.mxu0 0.0
    %2191 = vmatprep.subr.mxu0 0.0
    %2192 = vmatpush1.msra.mxu0 0.0
    %2193 = vmatprep.subr.mxu0 0.0
    %2194 = vmatpush1.msra.mxu0 0.0
    %2195 = vmatprep.subr.mxu0 0.0
    %2196 = vmatpush1.msra.mxu0 0.0
    %2197 = vmatprep.subr.mxu0 0.0
    %2198 = vmatpush1.msra.mxu0 0.0
    %2199 = vmatprep.subr.mxu0 0.0
    %2200 = vmatpush1.msra.mxu0 0.0
    %2201 = vmatprep.subr.mxu0 0.0
    %2202 = vmatpush1.msra.mxu0 0.0
    %2203 = vmatprep.subr.mxu0 0.0
    %2204 = vmatpush1.msra.mxu0 0.0
    %2205 = vmatprep.subr.mxu0 0.0
    %2206 = vmatpush1.msra.mxu0 0.0
    %2207 = vmatprep.subr.mxu0 0.0
    %2208 = vmatpush1.msra.mxu0 0.0
    %2209 = vmatprep.subr.mxu0 0.0
    %2210 = vmatpush1.msra.mxu0 0.0
    %2211 = vmatprep.mubr.f32.mxu0 0.0
    %2212 = vmatmul.mubr.f32.gmra.mrb[0].mxu0 %v2142
    %v2213 = vpop.f32.mrb[0].mxu0
    %v2214 = vadd.f32 0.0, %v2213
    %v2215 = vpop.f32.mrb[0].mxu0
    %2216 = vmatprep.mubr.f32.mxu0 0.0
    %2217 = vmatmul.mubr.f32.gmra.mrb[0].mxu0 %v2145
    %v2218 = vpop.f32.mrb[0].mxu0
    %v2219 = vadd.f32 0.0, %v2218
    %v2220 = vpop.f32.mrb[0].mxu0
    %2221 = vdwg.mxu0
    %v2223 = vsel %vm1788, %v2082, 0
    %v2226 = vsel %vm1788, %v2084, 0
    %2228 = vmatprep.subr.mxu0 0.0
    %2229 = vmatpush1.msra.mxu0 %v167
    %2230 = vmatprep.subr.mxu0 0.0
    %2231 = vmatpush1.msra.mxu0 0.0
    %2232 = vmatprep.subr.mxu0 0.0
    %2233 = vmatpush1.msra.mxu0 0.0
    %2234 = vmatprep.subr.mxu0 0.0
    %2235 = vmatpush1.msra.mxu0 0.0
    %2236 = vmatprep.subr.mxu0 0.0
    %2237 = vmatpush1.msra.mxu0 0.0
    %2238 = vmatprep.subr.mxu0 0.0
    %2239 = vmatpush1.msra.mxu0 0.0
    %2240 = vmatprep.subr.mxu0 0.0
    %2241 = vmatpush1.msra.mxu0 0.0
    %2242 = vmatprep.subr.mxu0 0.0
    %2243 = vmatpush1.msra.mxu0 0.0
    %2244 = vmatprep.subr.mxu0 0.0
    %2245 = vmatpush1.msra.mxu0 0.0
    %2246 = vmatprep.subr.mxu0 0.0
    %2247 = vmatpush1.msra.mxu0 0.0
    %2248 = vmatprep.subr.mxu0 0.0
    %2249 = vmatpush1.msra.mxu0 0.0
    %2250 = vmatprep.subr.mxu0 0.0
    %2251 = vmatpush1.msra.mxu0 0.0
    %2252 = vmatprep.subr.mxu0 0.0
    %2253 = vmatpush1.msra.mxu0 0.0
    %2254 = vmatprep.subr.mxu0 0.0
    %2255 = vmatpush1.msra.mxu0 0.0
    %2256 = vmatprep.subr.mxu0 0.0
    %2257 = vmatpush1.msra.mxu0 0.0
    %2258 = vmatprep.subr.mxu0 0.0
    %2259 = vmatpush1.msra.mxu0 0.0
    %2260 = vmatprep.subr.mxu0 0.0
    %2261 = vmatpush1.msra.mxu0 0.0
    %2262 = vmatprep.subr.mxu0 0.0
    %2263 = vmatpush1.msra.mxu0 0.0
    %2264 = vmatprep.subr.mxu0 0.0
    %2265 = vmatpush1.msra.mxu0 0.0
    %2266 = vmatprep.subr.mxu0 0.0
    %2267 = vmatpush1.msra.mxu0 0.0
    %2268 = vmatprep.subr.mxu0 0.0
    %2269 = vmatpush1.msra.mxu0 0.0
    %2270 = vmatprep.subr.mxu0 0.0
    %2271 = vmatpush1.msra.mxu0 0.0
    %2272 = vmatprep.subr.mxu0 0.0
    %2273 = vmatpush1.msra.mxu0 0.0
    %2274 = vmatprep.subr.mxu0 0.0
    %2275 = vmatpush1.msra.mxu0 0.0
    %2276 = vmatprep.subr.mxu0 0.0
    %2277 = vmatpush1.msra.mxu0 0.0
    %2278 = vmatprep.subr.mxu0 0.0
    %2279 = vmatpush1.msra.mxu0 0.0
    %2280 = vmatprep.subr.mxu0 0.0
    %2281 = vmatpush1.msra.mxu0 0.0
    %2282 = vmatprep.subr.mxu0 0.0
    %2283 = vmatpush1.msra.mxu0 0.0
    %2284 = vmatprep.subr.mxu0 0.0
    %2285 = vmatpush1.msra.mxu0 0.0
    %2286 = vmatprep.subr.mxu0 0.0
    %2287 = vmatpush1.msra.mxu0 0.0
    %2288 = vmatprep.subr.mxu0 0.0
    %2289 = vmatpush1.msra.mxu0 0.0
    %2290 = vmatprep.subr.mxu0 0.0
    %2291 = vmatpush1.msra.mxu0 0.0
    %2292 = vmatprep.mubr.f32.mxu0 0.0
    %2293 = vmatmul.mubr.f32.gmra.mrb[0].mxu0 %v2223
    %v2294 = vpop.f32.mrb[0].mxu0
    %v2295 = vadd.f32 0.0, %v2294
    %v2296 = vpop.f32.mrb[0].mxu0
    %2297 = vmatprep.mubr.f32.mxu0 0.0
    %2298 = vmatmul.mubr.f32.gmra.mrb[0].mxu0 %v2226
    %v2299 = vpop.f32.mrb[0].mxu0
    %v2300 = vadd.f32 0.0, %v2299
    %v2301 = vpop.f32.mrb[0].mxu0
    %2302 = vdwg.mxu0
    %v2304 = vsel %vm1788, %v2086, 0
    %v2307 = vsel %vm1788, %v2088, 0
    %2309 = vmatprep.subr.mxu0 0.0
    %2310 = vmatpush1.msra.mxu0 %v172
    %2311 = vmatprep.subr.mxu0 0.0
    %2312 = vmatpush1.msra.mxu0 0.0
    %2313 = vmatprep.subr.mxu0 0.0
    %2314 = vmatpush1.msra.mxu0 0.0
    %2315 = vmatprep.subr.mxu0 0.0
    %2316 = vmatpush1.msra.mxu0 0.0
    %2317 = vmatprep.subr.mxu0 0.0
    %2318 = vmatpush1.msra.mxu0 0.0
    %2319 = vmatprep.subr.mxu0 0.0
    %2320 = vmatpush1.msra.mxu0 0.0
    %2321 = vmatprep.subr.mxu0 0.0
    %2322 = vmatpush1.msra.mxu0 0.0
    %2323 = vmatprep.subr.mxu0 0.0
    %2324 = vmatpush1.msra.mxu0 0.0
    %2325 = vmatprep.subr.mxu0 0.0
    %2326 = vmatpush1.msra.mxu0 0.0
    %2327 = vmatprep.subr.mxu0 0.0
    %2328 = vmatpush1.msra.mxu0 0.0
    %2329 = vmatprep.subr.mxu0 0.0
    %2330 = vmatpush1.msra.mxu0 0.0
    %2331 = vmatprep.subr.mxu0 0.0
    %2332 = vmatpush1.msra.mxu0 0.0
    %2333 = vmatprep.subr.mxu0 0.0
    %2334 = vmatpush1.msra.mxu0 0.0
    %2335 = vmatprep.subr.mxu0 0.0
    %2336 = vmatpush1.msra.mxu0 0.0
    %2337 = vmatprep.subr.mxu0 0.0
    %2338 = vmatpush1.msra.mxu0 0.0
    %2339 = vmatprep.subr.mxu0 0.0
    %2340 = vmatpush1.msra.mxu0 0.0
    %2341 = vmatprep.subr.mxu0 0.0
    %2342 = vmatpush1.msra.mxu0 0.0
    %2343 = vmatprep.subr.mxu0 0.0
    %2344 = vmatpush1.msra.mxu0 0.0
    %2345 = vmatprep.subr.mxu0 0.0
    %2346 = vmatpush1.msra.mxu0 0.0
    %2347 = vmatprep.subr.mxu0 0.0
    %2348 = vmatpush1.msra.mxu0 0.0
    %2349 = vmatprep.subr.mxu0 0.0
    %2350 = vmatpush1.msra.mxu0 0.0
    %2351 = vmatprep.subr.mxu0 0.0
    %2352 = vmatpush1.msra.mxu0 0.0
    %2353 = vmatprep.subr.mxu0 0.0
    %2354 = vmatpush1.msra.mxu0 0.0
    %2355 = vmatprep.subr.mxu0 0.0
    %2356 = vmatpush1.msra.mxu0 0.0
    %2357 = vmatprep.subr.mxu0 0.0
    %2358 = vmatpush1.msra.mxu0 0.0
    %2359 = vmatprep.subr.mxu0 0.0
    %2360 = vmatpush1.msra.mxu0 0.0
    %2361 = vmatprep.subr.mxu0 0.0
    %2362 = vmatpush1.msra.mxu0 0.0
    %2363 = vmatprep.subr.mxu0 0.0
    %2364 = vmatpush1.msra.mxu0 0.0
    %2365 = vmatprep.subr.mxu0 0.0
    %2366 = vmatpush1.msra.mxu0 0.0
    %2367 = vmatprep.subr.mxu0 0.0
    %2368 = vmatpush1.msra.mxu0 0.0
    %2369 = vmatprep.subr.mxu0 0.0
    %2370 = vmatpush1.msra.mxu0 0.0
    %2371 = vmatprep.subr.mxu0 0.0
    %2372 = vmatpush1.msra.mxu0 0.0
    %2373 = vmatprep.mubr.f32.mxu0 0.0
    %2374 = vmatmul.mubr.f32.gmra.mrb[0].mxu0 %v2304
    %v2375 = vpop.f32.mrb[0].mxu0
    %v2376 = vadd.f32 0.0, %v2375
    %v2377 = vpop.f32.mrb[0].mxu0
    %2378 = vmatprep.mubr.f32.mxu0 0.0
    %2379 = vmatmul.mubr.f32.gmra.mrb[0].mxu0 %v2307
    %v2380 = vpop.f32.mrb[0].mxu0
    %v2381 = vadd.f32 0.0, %v2380
    %v2382 = vpop.f32.mrb[0].mxu0
    %2383 = vdwg.mxu0
    %v2385 = vsel %vm1788, %v2090, 0
    %v2388 = vsel %vm1788, %v2092, 0
    %2390 = vmatprep.subr.mxu0 0.0
    %2391 = vmatpush1.msra.mxu0 %v175
    %2392 = vmatprep.subr.mxu0 0.0
    %2393 = vmatpush1.msra.mxu0 0.0
    %2394 = vmatprep.subr.mxu0 0.0
    %2395 = vmatpush1.msra.mxu0 0.0
    %2396 = vmatprep.subr.mxu0 0.0
    %2397 = vmatpush1.msra.mxu0 0.0
    %2398 = vmatprep.subr.mxu0 0.0
    %2399 = vmatpush1.msra.mxu0 0.0
    %2400 = vmatprep.subr.mxu0 0.0
    %2401 = vmatpush1.msra.mxu0 0.0
    %2402 = vmatprep.subr.mxu0 0.0
    %2403 = vmatpush1.msra.mxu0 0.0
    %2404 = vmatprep.subr.mxu0 0.0
    %2405 = vmatpush1.msra.mxu0 0.0
    %2406 = vmatprep.subr.mxu0 0.0
    %2407 = vmatpush1.msra.mxu0 0.0
    %2408 = vmatprep.subr.mxu0 0.0
    %2409 = vmatpush1.msra.mxu0 0.0
    %2410 = vmatprep.subr.mxu0 0.0
    %2411 = vmatpush1.msra.mxu0 0.0
    %2412 = vmatprep.subr.mxu0 0.0
    %2413 = vmatpush1.msra.mxu0 0.0
    %2414 = vmatprep.subr.mxu0 0.0
    %2415 = vmatpush1.msra.mxu0 0.0
    %2416 = vmatprep.subr.mxu0 0.0
    %2417 = vmatpush1.msra.mxu0 0.0
    %2418 = vmatprep.subr.mxu0 0.0
    %2419 = vmatpush1.msra.mxu0 0.0
    %2420 = vmatprep.subr.mxu0 0.0
    %2421 = vmatpush1.msra.mxu0 0.0
    %2422 = vmatprep.subr.mxu0 0.0
    %2423 = vmatpush1.msra.mxu0 0.0
    %2424 = vmatprep.subr.mxu0 0.0
    %2425 = vmatpush1.msra.mxu0 0.0
    %2426 = vmatprep.subr.mxu0 0.0
    %2427 = vmatpush1.msra.mxu0 0.0
    %2428 = vmatprep.subr.mxu0 0.0
    %2429 = vmatpush1.msra.mxu0 0.0
    %2430 = vmatprep.subr.mxu0 0.0
    %2431 = vmatpush1.msra.mxu0 0.0
    %2432 = vmatprep.subr.mxu0 0.0
    %2433 = vmatpush1.msra.mxu0 0.0
    %2434 = vmatprep.subr.mxu0 0.0
    %2435 = vmatpush1.msra.mxu0 0.0
    %2436 = vmatprep.subr.mxu0 0.0
    %2437 = vmatpush1.msra.mxu0 0.0
    %2438 = vmatprep.subr.mxu0 0.0
    %2439 = vmatpush1.msra.mxu0 0.0
    %2440 = vmatprep.subr.mxu0 0.0
    %2441 = vmatpush1.msra.mxu0 0.0
    %2442 = vmatprep.subr.mxu0 0.0
    %2443 = vmatpush1.msra.mxu0 0.0
    %2444 = vmatprep.subr.mxu0 0.0
    %2445 = vmatpush1.msra.mxu0 0.0
    %2446 = vmatprep.subr.mxu0 0.0
    %2447 = vmatpush1.msra.mxu0 0.0
    %2448 = vmatprep.subr.mxu0 0.0
    %2449 = vmatpush1.msra.mxu0 0.0
    %2450 = vmatprep.subr.mxu0 0.0
    %2451 = vmatpush1.msra.mxu0 0.0
    %2452 = vmatprep.subr.mxu0 0.0
    %2453 = vmatpush1.msra.mxu0 0.0
    %2454 = vmatprep.mubr.f32.mxu0 0.0
    %2455 = vmatmul.mubr.f32.gmra.mrb[0].mxu0 %v2385
    %v2456 = vpop.f32.mrb[0].mxu0
    %v2457 = vadd.f32 0.0, %v2456
    %v2458 = vpop.f32.mrb[0].mxu0
    %2459 = vmatprep.mubr.f32.mxu0 0.0
    %2460 = vmatmul.mubr.f32.gmra.mrb[0].mxu0 %v2388
    %v2461 = vpop.f32.mrb[0].mxu0
    %v2462 = vadd.f32 0.0, %v2461
    %v2463 = vpop.f32.mrb[0].mxu0
    %2464 = vdwg.mxu0
    %v2466 = vsel %vm1788, %v2094, 0
    %v2469 = vsel %vm1788, %v2096, 0
    %2471 = vmatprep.subr.mxu0 0.0
    %2472 = vmatpush1.msra.mxu0 %v180
    %2473 = vmatprep.subr.mxu0 0.0
    %2474 = vmatpush1.msra.mxu0 0.0
    %2475 = vmatprep.subr.mxu0 0.0
    %2476 = vmatpush1.msra.mxu0 0.0
    %2477 = vmatprep.subr.mxu0 0.0
    %2478 = vmatpush1.msra.mxu0 0.0
    %2479 = vmatprep.subr.mxu0 0.0
    %2480 = vmatpush1.msra.mxu0 0.0
    %2481 = vmatprep.subr.mxu0 0.0
    %2482 = vmatpush1.msra.mxu0 0.0
    %2483 = vmatprep.subr.mxu0 0.0
    %2484 = vmatpush1.msra.mxu0 0.0
    %2485 = vmatprep.subr.mxu0 0.0
    %2486 = vmatpush1.msra.mxu0 0.0
    %2487 = vmatprep.subr.mxu0 0.0
    %2488 = vmatpush1.msra.mxu0 0.0
    %2489 = vmatprep.subr.mxu0 0.0
    %2490 = vmatpush1.msra.mxu0 0.0
    %2491 = vmatprep.subr.mxu0 0.0
    %2492 = vmatpush1.msra.mxu0 0.0
    %2493 = vmatprep.subr.mxu0 0.0
    %2494 = vmatpush1.msra.mxu0 0.0
    %2495 = vmatprep.subr.mxu0 0.0
    %2496 = vmatpush1.msra.mxu0 0.0
    %2497 = vmatprep.subr.mxu0 0.0
    %2498 = vmatpush1.msra.mxu0 0.0
    %2499 = vmatprep.subr.mxu0 0.0
    %2500 = vmatpush1.msra.mxu0 0.0
    %2501 = vmatprep.subr.mxu0 0.0
    %2502 = vmatpush1.msra.mxu0 0.0
    %2503 = vmatprep.subr.mxu0 0.0
    %2504 = vmatpush1.msra.mxu0 0.0
    %2505 = vmatprep.subr.mxu0 0.0
    %2506 = vmatpush1.msra.mxu0 0.0
    %2507 = vmatprep.subr.mxu0 0.0
    %2508 = vmatpush1.msra.mxu0 0.0
    %2509 = vmatprep.subr.mxu0 0.0
    %2510 = vmatpush1.msra.mxu0 0.0
    %2511 = vmatprep.subr.mxu0 0.0
    %2512 = vmatpush1.msra.mxu0 0.0
    %2513 = vmatprep.subr.mxu0 0.0
    %2514 = vmatpush1.msra.mxu0 0.0
    %2515 = vmatprep.subr.mxu0 0.0
    %2516 = vmatpush1.msra.mxu0 0.0
    %2517 = vmatprep.subr.mxu0 0.0
    %2518 = vmatpush1.msra.mxu0 0.0
    %2519 = vmatprep.subr.mxu0 0.0
    %2520 = vmatpush1.msra.mxu0 0.0
    %2521 = vmatprep.subr.mxu0 0.0
    %2522 = vmatpush1.msra.mxu0 0.0
    %2523 = vmatprep.subr.mxu0 0.0
    %2524 = vmatpush1.msra.mxu0 0.0
    %2525 = vmatprep.subr.mxu0 0.0
    %2526 = vmatpush1.msra.mxu0 0.0
    %2527 = vmatprep.subr.mxu0 0.0
    %2528 = vmatpush1.msra.mxu0 0.0
    %2529 = vmatprep.subr.mxu0 0.0
    %2530 = vmatpush1.msra.mxu0 0.0
    %2531 = vmatprep.subr.mxu0 0.0
    %2532 = vmatpush1.msra.mxu0 0.0
    %2533 = vmatprep.subr.mxu0 0.0
    %2534 = vmatpush1.msra.mxu0 0.0
    %2535 = vmatprep.mubr.f32.mxu0 0.0
    %2536 = vmatmul.mubr.f32.gmra.mrb[0].mxu0 %v2466
    %v2537 = vpop.f32.mrb[0].mxu0
    %v2538 = vadd.f32 0.0, %v2537
    %v2539 = vpop.f32.mrb[0].mxu0
    %2540 = vmatprep.mubr.f32.mxu0 0.0
    %2541 = vmatmul.mubr.f32.gmra.mrb[0].mxu0 %v2469
    %v2542 = vpop.f32.mrb[0].mxu0
    %v2543 = vadd.f32 0.0, %v2542
    %v2544 = vpop.f32.mrb[0].mxu0
    %2545 = vdwg.mxu0
    %v2547 = vsel %vm1788, %v2098, 0
    %v2550 = vsel %vm1788, %v2100, 0
    %2552 = vmatprep.subr.mxu0 0.0
    %2553 = vmatpush1.msra.mxu0 %v183
    %2554 = vmatprep.subr.mxu0 0.0
    %2555 = vmatpush1.msra.mxu0 0.0
    %2556 = vmatprep.subr.mxu0 0.0
    %2557 = vmatpush1.msra.mxu0 0.0
    %2558 = vmatprep.subr.mxu0 0.0
    %2559 = vmatpush1.msra.mxu0 0.0
    %2560 = vmatprep.subr.mxu0 0.0
    %2561 = vmatpush1.msra.mxu0 0.0
    %2562 = vmatprep.subr.mxu0 0.0
    %2563 = vmatpush1.msra.mxu0 0.0
    %2564 = vmatprep.subr.mxu0 0.0
    %2565 = vmatpush1.msra.mxu0 0.0
    %2566 = vmatprep.subr.mxu0 0.0
    %2567 = vmatpush1.msra.mxu0 0.0
    %2568 = vmatprep.subr.mxu0 0.0
    %2569 = vmatpush1.msra.mxu0 0.0
    %2570 = vmatprep.subr.mxu0 0.0
    %2571 = vmatpush1.msra.mxu0 0.0
    %2572 = vmatprep.subr.mxu0 0.0
    %2573 = vmatpush1.msra.mxu0 0.0
    %2574 = vmatprep.subr.mxu0 0.0
    %2575 = vmatpush1.msra.mxu0 0.0
    %2576 = vmatprep.subr.mxu0 0.0
    %2577 = vmatpush1.msra.mxu0 0.0
    %2578 = vmatprep.subr.mxu0 0.0
    %2579 = vmatpush1.msra.mxu0 0.0
    %2580 = vmatprep.subr.mxu0 0.0
    %2581 = vmatpush1.msra.mxu0 0.0
    %2582 = vmatprep.subr.mxu0 0.0
    %2583 = vmatpush1.msra.mxu0 0.0
    %2584 = vmatprep.subr.mxu0 0.0
    %2585 = vmatpush1.msra.mxu0 0.0
    %2586 = vmatprep.subr.mxu0 0.0
    %2587 = vmatpush1.msra.mxu0 0.0
    %2588 = vmatprep.subr.mxu0 0.0
    %2589 = vmatpush1.msra.mxu0 0.0
    %2590 = vmatprep.subr.mxu0 0.0
    %2591 = vmatpush1.msra.mxu0 0.0
    %2592 = vmatprep.subr.mxu0 0.0
    %2593 = vmatpush1.msra.mxu0 0.0
    %2594 = vmatprep.subr.mxu0 0.0
    %2595 = vmatpush1.msra.mxu0 0.0
    %2596 = vmatprep.subr.mxu0 0.0
    %2597 = vmatpush1.msra.mxu0 0.0
    %2598 = vmatprep.subr.mxu0 0.0
    %2599 = vmatpush1.msra.mxu0 0.0
    %2600 = vmatprep.subr.mxu0 0.0
    %2601 = vmatpush1.msra.mxu0 0.0
    %2602 = vmatprep.subr.mxu0 0.0
    %2603 = vmatpush1.msra.mxu0 0.0
    %2604 = vmatprep.subr.mxu0 0.0
    %2605 = vmatpush1.msra.mxu0 0.0
    %2606 = vmatprep.subr.mxu0 0.0
    %2607 = vmatpush1.msra.mxu0 0.0
    %2608 = vmatprep.subr.mxu0 0.0
    %2609 = vmatpush1.msra.mxu0 0.0
    %2610 = vmatprep.subr.mxu0 0.0
    %2611 = vmatpush1.msra.mxu0 0.0
    %2612 = vmatprep.subr.mxu0 0.0
    %2613 = vmatpush1.msra.mxu0 0.0
    %2614 = vmatprep.subr.mxu0 0.0
    %2615 = vmatpush1.msra.mxu0 0.0
    %2616 = vmatprep.mubr.f32.mxu0 0.0
    %2617 = vmatmul.mubr.f32.gmra.mrb[0].mxu0 %v2547
    %v2618 = vpop.f32.mrb[0].mxu0
    %v2619 = vadd.f32 0.0, %v2618
    %v2620 = vpop.f32.mrb[0].mxu0
    %2621 = vmatprep.mubr.f32.mxu0 0.0
    %2622 = vmatmul.mubr.f32.gmra.mrb[0].mxu0 %v2550
    %v2623 = vpop.f32.mrb[0].mxu0
    %v2624 = vadd.f32 0.0, %v2623
    %v2625 = vpop.f32.mrb[0].mxu0
    %2626 = vdwg.mxu0
    %v2628 = vsel %vm1788, %v2102, 0
    %v2631 = vsel %vm1788, %v2104, 0
    %2633 = vmatprep.subr.mxu0 0.0
    %2634 = vmatpush1.msra.mxu0 %v188
    %2635 = vmatprep.subr.mxu0 0.0
    %2636 = vmatpush1.msra.mxu0 0.0
    %2637 = vmatprep.subr.mxu0 0.0
    %2638 = vmatpush1.msra.mxu0 0.0
    %2639 = vmatprep.subr.mxu0 0.0
    %2640 = vmatpush1.msra.mxu0 0.0
    %2641 = vmatprep.subr.mxu0 0.0
    %2642 = vmatpush1.msra.mxu0 0.0
    %2643 = vmatprep.subr.mxu0 0.0
    %2644 = vmatpush1.msra.mxu0 0.0
    %2645 = vmatprep.subr.mxu0 0.0
    %2646 = vmatpush1.msra.mxu0 0.0
    %2647 = vmatprep.subr.mxu0 0.0
    %2648 = vmatpush1.msra.mxu0 0.0
    %2649 = vmatprep.subr.mxu0 0.0
    %2650 = vmatpush1.msra.mxu0 0.0
    %2651 = vmatprep.subr.mxu0 0.0
    %2652 = vmatpush1.msra.mxu0 0.0
    %2653 = vmatprep.subr.mxu0 0.0
    %2654 = vmatpush1.msra.mxu0 0.0
    %2655 = vmatprep.subr.mxu0 0.0
    %2656 = vmatpush1.msra.mxu0 0.0
    %2657 = vmatprep.subr.mxu0 0.0
    %2658 = vmatpush1.msra.mxu0 0.0
    %2659 = vmatprep.subr.mxu0 0.0
    %2660 = vmatpush1.msra.mxu0 0.0
    %2661 = vmatprep.subr.mxu0 0.0
    %2662 = vmatpush1.msra.mxu0 0.0
    %2663 = vmatprep.subr.mxu0 0.0
    %2664 = vmatpush1.msra.mxu0 0.0
    %2665 = vmatprep.subr.mxu0 0.0
    %2666 = vmatpush1.msra.mxu0 0.0
    %2667 = vmatprep.subr.mxu0 0.0
    %2668 = vmatpush1.msra.mxu0 0.0
    %2669 = vmatprep.subr.mxu0 0.0
    %2670 = vmatpush1.msra.mxu0 0.0
    %2671 = vmatprep.subr.mxu0 0.0
    %2672 = vmatpush1.msra.mxu0 0.0
    %2673 = vmatprep.subr.mxu0 0.0
    %2674 = vmatpush1.msra.mxu0 0.0
    %2675 = vmatprep.subr.mxu0 0.0
    %2676 = vmatpush1.msra.mxu0 0.0
    %2677 = vmatprep.subr.mxu0 0.0
    %2678 = vmatpush1.msra.mxu0 0.0
    %2679 = vmatprep.subr.mxu0 0.0
    %2680 = vmatpush1.msra.mxu0 0.0
    %2681 = vmatprep.subr.mxu0 0.0
    %2682 = vmatpush1.msra.mxu0 0.0
    %2683 = vmatprep.subr.mxu0 0.0
    %2684 = vmatpush1.msra.mxu0 0.0
    %2685 = vmatprep.subr.mxu0 0.0
    %2686 = vmatpush1.msra.mxu0 0.0
    %2687 = vmatprep.subr.mxu0 0.0
    %2688 = vmatpush1.msra.mxu0 0.0
    %2689 = vmatprep.subr.mxu0 0.0
    %2690 = vmatpush1.msra.mxu0 0.0
    %2691 = vmatprep.subr.mxu0 0.0
    %2692 = vmatpush1.msra.mxu0 0.0
    %2693 = vmatprep.subr.mxu0 0.0
    %2694 = vmatpush1.msra.mxu0 0.0
    %2695 = vmatprep.subr.mxu0 0.0
    %2696 = vmatpush1.msra.mxu0 0.0
    %2697 = vmatprep.mubr.f32.mxu0 0.0
    %2698 = vmatmul.mubr.f32.gmra.mrb[0].mxu0 %v2628
    %v2699 = vpop.f32.mrb[0].mxu0
    %v2700 = vadd.f32 0.0, %v2699
    %v2701 = vpop.f32.mrb[0].mxu0
    %2702 = vmatprep.mubr.f32.mxu0 0.0
    %2703 = vmatmul.mubr.f32.gmra.mrb[0].mxu0 %v2631
    %v2704 = vpop.f32.mrb[0].mxu0
    %v2705 = vadd.f32 0.0, %v2704
    %v2706 = vpop.f32.mrb[0].mxu0
    %2707 = vdwg.mxu0
    %v2709 = vsel %vm1788, %v2106, 0
    %v2712 = vsel %vm1788, %v2108, 0
    %2714 = vmatprep.subr.mxu0 0.0
    %2715 = vmatpush1.msra.mxu0 %v191
    %2716 = vmatprep.subr.mxu0 0.0
    %2717 = vmatpush1.msra.mxu0 0.0
    %2718 = vmatprep.subr.mxu0 0.0
    %2719 = vmatpush1.msra.mxu0 0.0
    %2720 = vmatprep.subr.mxu0 0.0
    %2721 = vmatpush1.msra.mxu0 0.0
    %2722 = vmatprep.subr.mxu0 0.0
    %2723 = vmatpush1.msra.mxu0 0.0
    %2724 = vmatprep.subr.mxu0 0.0
    %2725 = vmatpush1.msra.mxu0 0.0
    %2726 = vmatprep.subr.mxu0 0.0
    %2727 = vmatpush1.msra.mxu0 0.0
    %2728 = vmatprep.subr.mxu0 0.0
    %2729 = vmatpush1.msra.mxu0 0.0
    %2730 = vmatprep.subr.mxu0 0.0
    %2731 = vmatpush1.msra.mxu0 0.0
    %2732 = vmatprep.subr.mxu0 0.0
    %2733 = vmatpush1.msra.mxu0 0.0
    %2734 = vmatprep.subr.mxu0 0.0
    %2735 = vmatpush1.msra.mxu0 0.0
    %2736 = vmatprep.subr.mxu0 0.0
    %2737 = vmatpush1.msra.mxu0 0.0
    %2738 = vmatprep.subr.mxu0 0.0
    %2739 = vmatpush1.msra.mxu0 0.0
    %2740 = vmatprep.subr.mxu0 0.0
    %2741 = vmatpush1.msra.mxu0 0.0
    %2742 = vmatprep.subr.mxu0 0.0
    %2743 = vmatpush1.msra.mxu0 0.0
    %2744 = vmatprep.subr.mxu0 0.0
    %2745 = vmatpush1.msra.mxu0 0.0
    %2746 = vmatprep.subr.mxu0 0.0
    %2747 = vmatpush1.msra.mxu0 0.0
    %2748 = vmatprep.subr.mxu0 0.0
    %2749 = vmatpush1.msra.mxu0 0.0
    %2750 = vmatprep.subr.mxu0 0.0
    %2751 = vmatpush1.msra.mxu0 0.0
    %2752 = vmatprep.subr.mxu0 0.0
    %2753 = vmatpush1.msra.mxu0 0.0
    %2754 = vmatprep.subr.mxu0 0.0
    %2755 = vmatpush1.msra.mxu0 0.0
    %2756 = vmatprep.subr.mxu0 0.0
    %2757 = vmatpush1.msra.mxu0 0.0
    %2758 = vmatprep.subr.mxu0 0.0
    %2759 = vmatpush1.msra.mxu0 0.0
    %2760 = vmatprep.subr.mxu0 0.0
    %2761 = vmatpush1.msra.mxu0 0.0
    %2762 = vmatprep.subr.mxu0 0.0
    %2763 = vmatpush1.msra.mxu0 0.0
    %2764 = vmatprep.subr.mxu0 0.0
    %2765 = vmatpush1.msra.mxu0 0.0
    %2766 = vmatprep.subr.mxu0 0.0
    %2767 = vmatpush1.msra.mxu0 0.0
    %2768 = vmatprep.subr.mxu0 0.0
    %2769 = vmatpush1.msra.mxu0 0.0
    %2770 = vmatprep.subr.mxu0 0.0
    %2771 = vmatpush1.msra.mxu0 0.0
    %2772 = vmatprep.subr.mxu0 0.0
    %2773 = vmatpush1.msra.mxu0 0.0
    %2774 = vmatprep.subr.mxu0 0.0
    %2775 = vmatpush1.msra.mxu0 0.0
    %2776 = vmatprep.subr.mxu0 0.0
    %2777 = vmatpush1.msra.mxu0 0.0
    %2778 = vmatprep.mubr.f32.mxu0 0.0
    %2779 = vmatmul.mubr.f32.gmra.mrb[0].mxu0 %v2709
    %v2780 = vpop.f32.mrb[0].mxu0
    %v2781 = vadd.f32 0.0, %v2780
    %v2782 = vpop.f32.mrb[0].mxu0
    %2783 = vmatprep.mubr.f32.mxu0 0.0
    %2784 = vmatmul.mubr.f32.gmra.mrb[0].mxu0 %v2712
    %v2785 = vpop.f32.mrb[0].mxu0
    %v2786 = vadd.f32 0.0, %v2785
    %v2787 = vpop.f32.mrb[0].mxu0
    %2788 = vdwg.mxu0
    %v2790 = vsel %vm1788, %v2110, 0
    %v2793 = vsel %vm1788, %v2112, 0
    %2795 = vmatprep.subr.mxu0 0.0
    %2796 = vmatpush1.msra.mxu0 %v196
    %2797 = vmatprep.subr.mxu0 0.0
    %2798 = vmatpush1.msra.mxu0 0.0
    %2799 = vmatprep.subr.mxu0 0.0
    %2800 = vmatpush1.msra.mxu0 0.0
    %2801 = vmatprep.subr.mxu0 0.0
    %2802 = vmatpush1.msra.mxu0 0.0
    %2803 = vmatprep.subr.mxu0 0.0
    %2804 = vmatpush1.msra.mxu0 0.0
    %2805 = vmatprep.subr.mxu0 0.0
    %2806 = vmatpush1.msra.mxu0 0.0
    %2807 = vmatprep.subr.mxu0 0.0
    %2808 = vmatpush1.msra.mxu0 0.0
    %2809 = vmatprep.subr.mxu0 0.0
    %2810 = vmatpush1.msra.mxu0 0.0
    %2811 = vmatprep.subr.mxu0 0.0
    %2812 = vmatpush1.msra.mxu0 0.0
    %2813 = vmatprep.subr.mxu0 0.0
    %2814 = vmatpush1.msra.mxu0 0.0
    %2815 = vmatprep.subr.mxu0 0.0
    %2816 = vmatpush1.msra.mxu0 0.0
    %2817 = vmatprep.subr.mxu0 0.0
    %2818 = vmatpush1.msra.mxu0 0.0
    %2819 = vmatprep.subr.mxu0 0.0
    %2820 = vmatpush1.msra.mxu0 0.0
    %2821 = vmatprep.subr.mxu0 0.0
    %2822 = vmatpush1.msra.mxu0 0.0
    %2823 = vmatprep.subr.mxu0 0.0
    %2824 = vmatpush1.msra.mxu0 0.0
    %2825 = vmatprep.subr.mxu0 0.0
    %2826 = vmatpush1.msra.mxu0 0.0
    %2827 = vmatprep.subr.mxu0 0.0
    %2828 = vmatpush1.msra.mxu0 0.0
    %2829 = vmatprep.subr.mxu0 0.0
    %2830 = vmatpush1.msra.mxu0 0.0
    %2831 = vmatprep.subr.mxu0 0.0
    %2832 = vmatpush1.msra.mxu0 0.0
    %2833 = vmatprep.subr.mxu0 0.0
    %2834 = vmatpush1.msra.mxu0 0.0
    %2835 = vmatprep.subr.mxu0 0.0
    %2836 = vmatpush1.msra.mxu0 0.0
    %2837 = vmatprep.subr.mxu0 0.0
    %2838 = vmatpush1.msra.mxu0 0.0
    %2839 = vmatprep.subr.mxu0 0.0
    %2840 = vmatpush1.msra.mxu0 0.0
    %2841 = vmatprep.subr.mxu0 0.0
    %2842 = vmatpush1.msra.mxu0 0.0
    %2843 = vmatprep.subr.mxu0 0.0
    %2844 = vmatpush1.msra.mxu0 0.0
    %2845 = vmatprep.subr.mxu0 0.0
    %2846 = vmatpush1.msra.mxu0 0.0
    %2847 = vmatprep.subr.mxu0 0.0
    %2848 = vmatpush1.msra.mxu0 0.0
    %2849 = vmatprep.subr.mxu0 0.0
    %2850 = vmatpush1.msra.mxu0 0.0
    %2851 = vmatprep.subr.mxu0 0.0
    %2852 = vmatpush1.msra.mxu0 0.0
    %2853 = vmatprep.subr.mxu0 0.0
    %2854 = vmatpush1.msra.mxu0 0.0
    %2855 = vmatprep.subr.mxu0 0.0
    %2856 = vmatpush1.msra.mxu0 0.0
    %2857 = vmatprep.subr.mxu0 0.0
    %2858 = vmatpush1.msra.mxu0 0.0
    %2859 = vmatprep.mubr.f32.mxu0 0.0
    %2860 = vmatmul.mubr.f32.gmra.mrb[0].mxu0 %v2790
    %v2861 = vpop.f32.mrb[0].mxu0
    %v2862 = vadd.f32 0.0, %v2861
    %v2863 = vpop.f32.mrb[0].mxu0
    %2864 = vmatprep.mubr.f32.mxu0 0.0
    %2865 = vmatmul.mubr.f32.gmra.mrb[0].mxu0 %v2793
    %v2866 = vpop.f32.mrb[0].mxu0
    %v2867 = vadd.f32 0.0, %v2866
    %v2868 = vpop.f32.mrb[0].mxu0
    %2869 = vdwg.mxu0
    %v2871 = vsel %vm1788, %v2114, 0
    %v2874 = vsel %vm1788, %v2116, 0
    %2876 = vmatprep.subr.mxu0 0.0
    %2877 = vmatpush1.msra.mxu0 %v199
    %2878 = vmatprep.subr.mxu0 0.0
    %2879 = vmatpush1.msra.mxu0 0.0
    %2880 = vmatprep.subr.mxu0 0.0
    %2881 = vmatpush1.msra.mxu0 0.0
    %2882 = vmatprep.subr.mxu0 0.0
    %2883 = vmatpush1.msra.mxu0 0.0
    %2884 = vmatprep.subr.mxu0 0.0
    %2885 = vmatpush1.msra.mxu0 0.0
    %2886 = vmatprep.subr.mxu0 0.0
    %2887 = vmatpush1.msra.mxu0 0.0
    %2888 = vmatprep.subr.mxu0 0.0
    %2889 = vmatpush1.msra.mxu0 0.0
    %2890 = vmatprep.subr.mxu0 0.0
    %2891 = vmatpush1.msra.mxu0 0.0
    %2892 = vmatprep.subr.mxu0 0.0
    %2893 = vmatpush1.msra.mxu0 0.0
    %2894 = vmatprep.subr.mxu0 0.0
    %2895 = vmatpush1.msra.mxu0 0.0
    %2896 = vmatprep.subr.mxu0 0.0
    %2897 = vmatpush1.msra.mxu0 0.0
    %2898 = vmatprep.subr.mxu0 0.0
    %2899 = vmatpush1.msra.mxu0 0.0
    %2900 = vmatprep.subr.mxu0 0.0
    %2901 = vmatpush1.msra.mxu0 0.0
    %2902 = vmatprep.subr.mxu0 0.0
    %2903 = vmatpush1.msra.mxu0 0.0
    %2904 = vmatprep.subr.mxu0 0.0
    %2905 = vmatpush1.msra.mxu0 0.0
    %2906 = vmatprep.subr.mxu0 0.0
    %2907 = vmatpush1.msra.mxu0 0.0
    %2908 = vmatprep.subr.mxu0 0.0
    %2909 = vmatpush1.msra.mxu0 0.0
    %2910 = vmatprep.subr.mxu0 0.0
    %2911 = vmatpush1.msra.mxu0 0.0
    %2912 = vmatprep.subr.mxu0 0.0
    %2913 = vmatpush1.msra.mxu0 0.0
    %2914 = vmatprep.subr.mxu0 0.0
    %2915 = vmatpush1.msra.mxu0 0.0
    %2916 = vmatprep.subr.mxu0 0.0
    %2917 = vmatpush1.msra.mxu0 0.0
    %2918 = vmatprep.subr.mxu0 0.0
    %2919 = vmatpush1.msra.mxu0 0.0
    %2920 = vmatprep.subr.mxu0 0.0
    %2921 = vmatpush1.msra.mxu0 0.0
    %2922 = vmatprep.subr.mxu0 0.0
    %2923 = vmatpush1.msra.mxu0 0.0
    %2924 = vmatprep.subr.mxu0 0.0
    %2925 = vmatpush1.msra.mxu0 0.0
    %2926 = vmatprep.subr.mxu0 0.0
    %2927 = vmatpush1.msra.mxu0 0.0
    %2928 = vmatprep.subr.mxu0 0.0
    %2929 = vmatpush1.msra.mxu0 0.0
    %2930 = vmatprep.subr.mxu0 0.0
    %2931 = vmatpush1.msra.mxu0 0.0
    %2932 = vmatprep.subr.mxu0 0.0
    %2933 = vmatpush1.msra.mxu0 0.0
    %2934 = vmatprep.subr.mxu0 0.0
    %2935 = vmatpush1.msra.mxu0 0.0
    %2936 = vmatprep.subr.mxu0 0.0
    %2937 = vmatpush1.msra.mxu0 0.0
    %2938 = vmatprep.subr.mxu0 0.0
    %2939 = vmatpush1.msra.mxu0 0.0
    %2940 = vmatprep.mubr.f32.mxu0 0.0
    %2941 = vmatmul.mubr.f32.gmra.mrb[0].mxu0 %v2871
    %v2942 = vpop.f32.mrb[0].mxu0
    %v2943 = vadd.f32 0.0, %v2942
    %v2944 = vpop.f32.mrb[0].mxu0
    %2945 = vmatprep.mubr.f32.mxu0 0.0
    %2946 = vmatmul.mubr.f32.gmra.mrb[0].mxu0 %v2874
    %v2947 = vpop.f32.mrb[0].mxu0
    %v2948 = vadd.f32 0.0, %v2947
    %v2949 = vpop.f32.mrb[0].mxu0
    %2950 = vdwg.mxu0
    %v2952 = vsel %vm1788, %v2118, 0
    %v2955 = vsel %vm1788, %v2120, 0
    %2957 = vmatprep.subr.mxu0 0.0
    %2958 = vmatpush1.msra.mxu0 %v204
    %2959 = vmatprep.subr.mxu0 0.0
    %2960 = vmatpush1.msra.mxu0 0.0
    %2961 = vmatprep.subr.mxu0 0.0
    %2962 = vmatpush1.msra.mxu0 0.0
    %2963 = vmatprep.subr.mxu0 0.0
    %2964 = vmatpush1.msra.mxu0 0.0
    %2965 = vmatprep.subr.mxu0 0.0
    %2966 = vmatpush1.msra.mxu0 0.0
    %2967 = vmatprep.subr.mxu0 0.0
    %2968 = vmatpush1.msra.mxu0 0.0
    %2969 = vmatprep.subr.mxu0 0.0
    %2970 = vmatpush1.msra.mxu0 0.0
    %2971 = vmatprep.subr.mxu0 0.0
    %2972 = vmatpush1.msra.mxu0 0.0
    %2973 = vmatprep.subr.mxu0 0.0
    %2974 = vmatpush1.msra.mxu0 0.0
    %2975 = vmatprep.subr.mxu0 0.0
    %2976 = vmatpush1.msra.mxu0 0.0
    %2977 = vmatprep.subr.mxu0 0.0
    %2978 = vmatpush1.msra.mxu0 0.0
    %2979 = vmatprep.subr.mxu0 0.0
    %2980 = vmatpush1.msra.mxu0 0.0
    %2981 = vmatprep.subr.mxu0 0.0
    %2982 = vmatpush1.msra.mxu0 0.0
    %2983 = vmatprep.subr.mxu0 0.0
    %2984 = vmatpush1.msra.mxu0 0.0
    %2985 = vmatprep.subr.mxu0 0.0
    %2986 = vmatpush1.msra.mxu0 0.0
    %2987 = vmatprep.subr.mxu0 0.0
    %2988 = vmatpush1.msra.mxu0 0.0
    %2989 = vmatprep.subr.mxu0 0.0
    %2990 = vmatpush1.msra.mxu0 0.0
    %2991 = vmatprep.subr.mxu0 0.0
    %2992 = vmatpush1.msra.mxu0 0.0
    %2993 = vmatprep.subr.mxu0 0.0
    %2994 = vmatpush1.msra.mxu0 0.0
    %2995 = vmatprep.subr.mxu0 0.0
    %2996 = vmatpush1.msra.mxu0 0.0
    %2997 = vmatprep.subr.mxu0 0.0
    %2998 = vmatpush1.msra.mxu0 0.0
    %2999 = vmatprep.subr.mxu0 0.0
    %3000 = vmatpush1.msra.mxu0 0.0
    %3001 = vmatprep.subr.mxu0 0.0
    %3002 = vmatpush1.msra.mxu0 0.0
    %3003 = vmatprep.subr.mxu0 0.0
    %3004 = vmatpush1.msra.mxu0 0.0
    %3005 = vmatprep.subr.mxu0 0.0
    %3006 = vmatpush1.msra.mxu0 0.0
    %3007 = vmatprep.subr.mxu0 0.0
    %3008 = vmatpush1.msra.mxu0 0.0
    %3009 = vmatprep.subr.mxu0 0.0
    %3010 = vmatpush1.msra.mxu0 0.0
    %3011 = vmatprep.subr.mxu0 0.0
    %3012 = vmatpush1.msra.mxu0 0.0
    %3013 = vmatprep.subr.mxu0 0.0
    %3014 = vmatpush1.msra.mxu0 0.0
    %3015 = vmatprep.subr.mxu0 0.0
    %3016 = vmatpush1.msra.mxu0 0.0
    %3017 = vmatprep.subr.mxu0 0.0
    %3018 = vmatpush1.msra.mxu0 0.0
    %3019 = vmatprep.subr.mxu0 0.0
    %3020 = vmatpush1.msra.mxu0 0.0
    %3021 = vmatprep.mubr.f32.mxu0 0.0
    %3022 = vmatmul.mubr.f32.gmra.mrb[0].mxu0 %v2952
    %v3023 = vpop.f32.mrb[0].mxu0
    %v3024 = vadd.f32 0.0, %v3023
    %v3025 = vpop.f32.mrb[0].mxu0
    %3026 = vmatprep.mubr.f32.mxu0 0.0
    %3027 = vmatmul.mubr.f32.gmra.mrb[0].mxu0 %v2955
    %v3028 = vpop.f32.mrb[0].mxu0
    %v3029 = vadd.f32 0.0, %v3028
    %v3030 = vpop.f32.mrb[0].mxu0
    %3031 = vdwg.mxu0
    %v3033 = vsel %vm1788, %v2122, 0
    %v3036 = vsel %vm1788, %v2124, 0
    %3038 = vmatprep.subr.mxu0 0.0
    %3039 = vmatpush1.msra.mxu0 %v207
    %3040 = vmatprep.subr.mxu0 0.0
    %3041 = vmatpush1.msra.mxu0 0.0
    %3042 = vmatprep.subr.mxu0 0.0
    %3043 = vmatpush1.msra.mxu0 0.0
    %3044 = vmatprep.subr.mxu0 0.0
    %3045 = vmatpush1.msra.mxu0 0.0
    %3046 = vmatprep.subr.mxu0 0.0
    %3047 = vmatpush1.msra.mxu0 0.0
    %3048 = vmatprep.subr.mxu0 0.0
    %3049 = vmatpush1.msra.mxu0 0.0
    %3050 = vmatprep.subr.mxu0 0.0
    %3051 = vmatpush1.msra.mxu0 0.0
    %3052 = vmatprep.subr.mxu0 0.0
    %3053 = vmatpush1.msra.mxu0 0.0
    %3054 = vmatprep.subr.mxu0 0.0
    %3055 = vmatpush1.msra.mxu0 0.0
    %3056 = vmatprep.subr.mxu0 0.0
    %3057 = vmatpush1.msra.mxu0 0.0
    %3058 = vmatprep.subr.mxu0 0.0
    %3059 = vmatpush1.msra.mxu0 0.0
    %3060 = vmatprep.subr.mxu0 0.0
    %3061 = vmatpush1.msra.mxu0 0.0
    %3062 = vmatprep.subr.mxu0 0.0
    %3063 = vmatpush1.msra.mxu0 0.0
    %3064 = vmatprep.subr.mxu0 0.0
    %3065 = vmatpush1.msra.mxu0 0.0
    %3066 = vmatprep.subr.mxu0 0.0
    %3067 = vmatpush1.msra.mxu0 0.0
    %3068 = vmatprep.subr.mxu0 0.0
    %3069 = vmatpush1.msra.mxu0 0.0
    %3070 = vmatprep.subr.mxu0 0.0
    %3071 = vmatpush1.msra.mxu0 0.0
    %3072 = vmatprep.subr.mxu0 0.0
    %3073 = vmatpush1.msra.mxu0 0.0
    %3074 = vmatprep.subr.mxu0 0.0
    %3075 = vmatpush1.msra.mxu0 0.0
    %3076 = vmatprep.subr.mxu0 0.0
    %3077 = vmatpush1.msra.mxu0 0.0
    %3078 = vmatprep.subr.mxu0 0.0
    %3079 = vmatpush1.msra.mxu0 0.0
    %3080 = vmatprep.subr.mxu0 0.0
    %3081 = vmatpush1.msra.mxu0 0.0
    %3082 = vmatprep.subr.mxu0 0.0
    %3083 = vmatpush1.msra.mxu0 0.0
    %3084 = vmatprep.subr.mxu0 0.0
    %3085 = vmatpush1.msra.mxu0 0.0
    %3086 = vmatprep.subr.mxu0 0.0
    %3087 = vmatpush1.msra.mxu0 0.0
    %3088 = vmatprep.subr.mxu0 0.0
    %3089 = vmatpush1.msra.mxu0 0.0
    %3090 = vmatprep.subr.mxu0 0.0
    %3091 = vmatpush1.msra.mxu0 0.0
    %3092 = vmatprep.subr.mxu0 0.0
    %3093 = vmatpush1.msra.mxu0 0.0
    %3094 = vmatprep.subr.mxu0 0.0
    %3095 = vmatpush1.msra.mxu0 0.0
    %3096 = vmatprep.subr.mxu0 0.0
    %3097 = vmatpush1.msra.mxu0 0.0
    %3098 = vmatprep.subr.mxu0 0.0
    %3099 = vmatpush1.msra.mxu0 0.0
    %3100 = vmatprep.subr.mxu0 0.0
    %3101 = vmatpush1.msra.mxu0 0.0
    %3102 = vmatprep.mubr.f32.mxu0 0.0
    %3103 = vmatmul.mubr.f32.gmra.mrb[0].mxu0 %v3033
    %v3104 = vpop.f32.mrb[0].mxu0
    %v3105 = vadd.f32 0.0, %v3104
    %v3106 = vpop.f32.mrb[0].mxu0
    %3107 = vmatprep.mubr.f32.mxu0 0.0
    %3108 = vmatmul.mubr.f32.gmra.mrb[0].mxu0 %v3036
    %v3109 = vpop.f32.mrb[0].mxu0
    %v3110 = vadd.f32 0.0, %v3109
    %v3111 = vpop.f32.mrb[0].mxu0
    %3112 = vdwg.mxu0
    %v3114 = vsel %vm1788, %v2126, 0
    %v3117 = vsel %vm1788, %v2128, 0
    %3119 = vmatprep.subr.mxu0 0.0
    %3120 = vmatpush1.msra.mxu0 %v212
    %3121 = vmatprep.subr.mxu0 0.0
    %3122 = vmatpush1.msra.mxu0 0.0
    %3123 = vmatprep.subr.mxu0 0.0
    %3124 = vmatpush1.msra.mxu0 0.0
    %3125 = vmatprep.subr.mxu0 0.0
    %3126 = vmatpush1.msra.mxu0 0.0
    %3127 = vmatprep.subr.mxu0 0.0
    %3128 = vmatpush1.msra.mxu0 0.0
    %3129 = vmatprep.subr.mxu0 0.0
    %3130 = vmatpush1.msra.mxu0 0.0
    %3131 = vmatprep.subr.mxu0 0.0
    %3132 = vmatpush1.msra.mxu0 0.0
    %3133 = vmatprep.subr.mxu0 0.0
    %3134 = vmatpush1.msra.mxu0 0.0
    %3135 = vmatprep.subr.mxu0 0.0
    %3136 = vmatpush1.msra.mxu0 0.0
    %3137 = vmatprep.subr.mxu0 0.0
    %3138 = vmatpush1.msra.mxu0 0.0
    %3139 = vmatprep.subr.mxu0 0.0
    %3140 = vmatpush1.msra.mxu0 0.0
    %3141 = vmatprep.subr.mxu0 0.0
    %3142 = vmatpush1.msra.mxu0 0.0
    %3143 = vmatprep.subr.mxu0 0.0
    %3144 = vmatpush1.msra.mxu0 0.0
    %3145 = vmatprep.subr.mxu0 0.0
    %3146 = vmatpush1.msra.mxu0 0.0
    %3147 = vmatprep.subr.mxu0 0.0
    %3148 = vmatpush1.msra.mxu0 0.0
    %3149 = vmatprep.subr.mxu0 0.0
    %3150 = vmatpush1.msra.mxu0 0.0
    %3151 = vmatprep.subr.mxu0 0.0
    %3152 = vmatpush1.msra.mxu0 0.0
    %3153 = vmatprep.subr.mxu0 0.0
    %3154 = vmatpush1.msra.mxu0 0.0
    %3155 = vmatprep.subr.mxu0 0.0
    %3156 = vmatpush1.msra.mxu0 0.0
    %3157 = vmatprep.subr.mxu0 0.0
    %3158 = vmatpush1.msra.mxu0 0.0
    %3159 = vmatprep.subr.mxu0 0.0
    %3160 = vmatpush1.msra.mxu0 0.0
    %3161 = vmatprep.subr.mxu0 0.0
    %3162 = vmatpush1.msra.mxu0 0.0
    %3163 = vmatprep.subr.mxu0 0.0
    %3164 = vmatpush1.msra.mxu0 0.0
    %3165 = vmatprep.subr.mxu0 0.0
    %3166 = vmatpush1.msra.mxu0 0.0
    %3167 = vmatprep.subr.mxu0 0.0
    %3168 = vmatpush1.msra.mxu0 0.0
    %3169 = vmatprep.subr.mxu0 0.0
    %3170 = vmatpush1.msra.mxu0 0.0
    %3171 = vmatprep.subr.mxu0 0.0
    %3172 = vmatpush1.msra.mxu0 0.0
    %3173 = vmatprep.subr.mxu0 0.0
    %3174 = vmatpush1.msra.mxu0 0.0
    %3175 = vmatprep.subr.mxu0 0.0
    %3176 = vmatpush1.msra.mxu0 0.0
    %3177 = vmatprep.subr.mxu0 0.0
    %3178 = vmatpush1.msra.mxu0 0.0
    %3179 = vmatprep.subr.mxu0 0.0
    %3180 = vmatpush1.msra.mxu0 0.0
    %3181 = vmatprep.subr.mxu0 0.0
    %3182 = vmatpush1.msra.mxu0 0.0
    %3183 = vmatprep.mubr.f32.mxu0 0.0
    %3184 = vmatmul.mubr.f32.gmra.mrb[0].mxu0 %v3114
    %v3185 = vpop.f32.mrb[0].mxu0
    %v3186 = vadd.f32 0.0, %v3185
    %v3187 = vpop.f32.mrb[0].mxu0
    %3188 = vmatprep.mubr.f32.mxu0 0.0
    %3189 = vmatmul.mubr.f32.gmra.mrb[0].mxu0 %v3117
    %v3190 = vpop.f32.mrb[0].mxu0
    %v3191 = vadd.f32 0.0, %v3190
    %v3192 = vpop.f32.mrb[0].mxu0
    %3193 = vdwg.mxu0
    %v3195 = vsel %vm1788, %v2130, 0
    %v3198 = vsel %vm1788, %v2132, 0
    %3200 = vmatprep.subr.mxu0 0.0
    %3201 = vmatpush1.msra.mxu0 %v215
    %3202 = vmatprep.subr.mxu0 0.0
    %3203 = vmatpush1.msra.mxu0 0.0
    %3204 = vmatprep.subr.mxu0 0.0
    %3205 = vmatpush1.msra.mxu0 0.0
    %3206 = vmatprep.subr.mxu0 0.0
    %3207 = vmatpush1.msra.mxu0 0.0
    %3208 = vmatprep.subr.mxu0 0.0
    %3209 = vmatpush1.msra.mxu0 0.0
    %3210 = vmatprep.subr.mxu0 0.0
    %3211 = vmatpush1.msra.mxu0 0.0
    %3212 = vmatprep.subr.mxu0 0.0
    %3213 = vmatpush1.msra.mxu0 0.0
    %3214 = vmatprep.subr.mxu0 0.0
    %3215 = vmatpush1.msra.mxu0 0.0
    %3216 = vmatprep.subr.mxu0 0.0
    %3217 = vmatpush1.msra.mxu0 0.0
    %3218 = vmatprep.subr.mxu0 0.0
    %3219 = vmatpush1.msra.mxu0 0.0
    %3220 = vmatprep.subr.mxu0 0.0
    %3221 = vmatpush1.msra.mxu0 0.0
    %3222 = vmatprep.subr.mxu0 0.0
    %3223 = vmatpush1.msra.mxu0 0.0
    %3224 = vmatprep.subr.mxu0 0.0
    %3225 = vmatpush1.msra.mxu0 0.0
    %3226 = vmatprep.subr.mxu0 0.0
    %3227 = vmatpush1.msra.mxu0 0.0
    %3228 = vmatprep.subr.mxu0 0.0
    %3229 = vmatpush1.msra.mxu0 0.0
    %3230 = vmatprep.subr.mxu0 0.0
    %3231 = vmatpush1.msra.mxu0 0.0
    %3232 = vmatprep.subr.mxu0 0.0
    %3233 = vmatpush1.msra.mxu0 0.0
    %3234 = vmatprep.subr.mxu0 0.0
    %3235 = vmatpush1.msra.mxu0 0.0
    %3236 = vmatprep.subr.mxu0 0.0
    %3237 = vmatpush1.msra.mxu0 0.0
    %3238 = vmatprep.subr.mxu0 0.0
    %3239 = vmatpush1.msra.mxu0 0.0
    %3240 = vmatprep.subr.mxu0 0.0
    %3241 = vmatpush1.msra.mxu0 0.0
    %3242 = vmatprep.subr.mxu0 0.0
    %3243 = vmatpush1.msra.mxu0 0.0
    %3244 = vmatprep.subr.mxu0 0.0
    %3245 = vmatpush1.msra.mxu0 0.0
    %3246 = vmatprep.subr.mxu0 0.0
    %3247 = vmatpush1.msra.mxu0 0.0
    %3248 = vmatprep.subr.mxu0 0.0
    %3249 = vmatpush1.msra.mxu0 0.0
    %3250 = vmatprep.subr.mxu0 0.0
    %3251 = vmatpush1.msra.mxu0 0.0
    %3252 = vmatprep.subr.mxu0 0.0
    %3253 = vmatpush1.msra.mxu0 0.0
    %3254 = vmatprep.subr.mxu0 0.0
    %3255 = vmatpush1.msra.mxu0 0.0
    %3256 = vmatprep.subr.mxu0 0.0
    %3257 = vmatpush1.msra.mxu0 0.0
    %3258 = vmatprep.subr.mxu0 0.0
    %3259 = vmatpush1.msra.mxu0 0.0
    %3260 = vmatprep.subr.mxu0 0.0
    %3261 = vmatpush1.msra.mxu0 0.0
    %3262 = vmatprep.subr.mxu0 0.0
    %3263 = vmatpush1.msra.mxu0 0.0
    %3264 = vmatprep.mubr.f32.mxu0 0.0
    %3265 = vmatmul.mubr.f32.gmra.mrb[0].mxu0 %v3195
    %v3266 = vpop.f32.mrb[0].mxu0
    %v3267 = vadd.f32 0.0, %v3266
    %v3268 = vpop.f32.mrb[0].mxu0
    %3269 = vmatprep.mubr.f32.mxu0 0.0
    %3270 = vmatmul.mubr.f32.gmra.mrb[0].mxu0 %v3198
    %v3271 = vpop.f32.mrb[0].mxu0
    %v3272 = vadd.f32 0.0, %v3271
    %v3273 = vpop.f32.mrb[0].mxu0
    %3274 = vdwg.mxu0
    %v3276 = vsel %vm1788, %v2134, 0
    %v3279 = vsel %vm1788, %v2136, 0
    %3281 = vmatprep.subr.mxu0 0.0
    %3282 = vmatpush1.msra.mxu0 %v220
    %3283 = vmatprep.subr.mxu0 0.0
    %3284 = vmatpush1.msra.mxu0 0.0
    %3285 = vmatprep.subr.mxu0 0.0
    %3286 = vmatpush1.msra.mxu0 0.0
    %3287 = vmatprep.subr.mxu0 0.0
    %3288 = vmatpush1.msra.mxu0 0.0
    %3289 = vmatprep.subr.mxu0 0.0
    %3290 = vmatpush1.msra.mxu0 0.0
    %3291 = vmatprep.subr.mxu0 0.0
    %3292 = vmatpush1.msra.mxu0 0.0
    %3293 = vmatprep.subr.mxu0 0.0
    %3294 = vmatpush1.msra.mxu0 0.0
    %3295 = vmatprep.subr.mxu0 0.0
    %3296 = vmatpush1.msra.mxu0 0.0
    %3297 = vmatprep.subr.mxu0 0.0
    %3298 = vmatpush1.msra.mxu0 0.0
    %3299 = vmatprep.subr.mxu0 0.0
    %3300 = vmatpush1.msra.mxu0 0.0
    %3301 = vmatprep.subr.mxu0 0.0
    %3302 = vmatpush1.msra.mxu0 0.0
    %3303 = vmatprep.subr.mxu0 0.0
    %3304 = vmatpush1.msra.mxu0 0.0
    %3305 = vmatprep.subr.mxu0 0.0
    %3306 = vmatpush1.msra.mxu0 0.0
    %3307 = vmatprep.subr.mxu0 0.0
    %3308 = vmatpush1.msra.mxu0 0.0
    %3309 = vmatprep.subr.mxu0 0.0
    %3310 = vmatpush1.msra.mxu0 0.0
    %3311 = vmatprep.subr.mxu0 0.0
    %3312 = vmatpush1.msra.mxu0 0.0
    %3313 = vmatprep.subr.mxu0 0.0
    %3314 = vmatpush1.msra.mxu0 0.0
    %3315 = vmatprep.subr.mxu0 0.0
    %3316 = vmatpush1.msra.mxu0 0.0
    %3317 = vmatprep.subr.mxu0 0.0
    %3318 = vmatpush1.msra.mxu0 0.0
    %3319 = vmatprep.subr.mxu0 0.0
    %3320 = vmatpush1.msra.mxu0 0.0
    %3321 = vmatprep.subr.mxu0 0.0
    %3322 = vmatpush1.msra.mxu0 0.0
    %3323 = vmatprep.subr.mxu0 0.0
    %3324 = vmatpush1.msra.mxu0 0.0
    %3325 = vmatprep.subr.mxu0 0.0
    %3326 = vmatpush1.msra.mxu0 0.0
    %3327 = vmatprep.subr.mxu0 0.0
    %3328 = vmatpush1.msra.mxu0 0.0
    %3329 = vmatprep.subr.mxu0 0.0
    %3330 = vmatpush1.msra.mxu0 0.0
    %3331 = vmatprep.subr.mxu0 0.0
    %3332 = vmatpush1.msra.mxu0 0.0
    %3333 = vmatprep.subr.mxu0 0.0
    %3334 = vmatpush1.msra.mxu0 0.0
    %3335 = vmatprep.subr.mxu0 0.0
    %3336 = vmatpush1.msra.mxu0 0.0
    %3337 = vmatprep.subr.mxu0 0.0
    %3338 = vmatpush1.msra.mxu0 0.0
    %3339 = vmatprep.subr.mxu0 0.0
    %3340 = vmatpush1.msra.mxu0 0.0
    %3341 = vmatprep.subr.mxu0 0.0
    %3342 = vmatpush1.msra.mxu0 0.0
    %3343 = vmatprep.subr.mxu0 0.0
    %3344 = vmatpush1.msra.mxu0 0.0
    %3345 = vmatprep.mubr.f32.mxu0 0.0
    %3346 = vmatmul.mubr.f32.gmra.mrb[0].mxu0 %v3276
    %v3347 = vpop.f32.mrb[0].mxu0
    %v3348 = vadd.f32 0.0, %v3347
    %v3349 = vpop.f32.mrb[0].mxu0
    %3350 = vmatprep.mubr.f32.mxu0 0.0
    %3351 = vmatmul.mubr.f32.gmra.mrb[0].mxu0 %v3279
    %v3352 = vpop.f32.mrb[0].mxu0
    %v3353 = vadd.f32 0.0, %v3352
    %v3354 = vpop.f32.mrb[0].mxu0
    %3355 = vdwg.mxu0
    %v3357 = vsel %vm1788, %v2138, 0
    %v3360 = vsel %vm1788, %v2140, 0
    %3362 = vmatprep.subr.mxu0 0.0
    %3363 = vmatpush1.msra.mxu0 %v223
    %3364 = vmatprep.subr.mxu0 0.0
    %3365 = vmatpush1.msra.mxu0 0.0
    %3366 = vmatprep.subr.mxu0 0.0
    %3367 = vmatpush1.msra.mxu0 0.0
    %3368 = vmatprep.subr.mxu0 0.0
    %3369 = vmatpush1.msra.mxu0 0.0
    %3370 = vmatprep.subr.mxu0 0.0
    %3371 = vmatpush1.msra.mxu0 0.0
    %3372 = vmatprep.subr.mxu0 0.0
    %3373 = vmatpush1.msra.mxu0 0.0
    %3374 = vmatprep.subr.mxu0 0.0
    %3375 = vmatpush1.msra.mxu0 0.0
    %3376 = vmatprep.subr.mxu0 0.0
    %3377 = vmatpush1.msra.mxu0 0.0
    %3378 = vmatprep.subr.mxu0 0.0
    %3379 = vmatpush1.msra.mxu0 0.0
    %3380 = vmatprep.subr.mxu0 0.0
    %3381 = vmatpush1.msra.mxu0 0.0
    %3382 = vmatprep.subr.mxu0 0.0
    %3383 = vmatpush1.msra.mxu0 0.0
    %3384 = vmatprep.subr.mxu0 0.0
    %3385 = vmatpush1.msra.mxu0 0.0
    %3386 = vmatprep.subr.mxu0 0.0
    %3387 = vmatpush1.msra.mxu0 0.0
    %3388 = vmatprep.subr.mxu0 0.0
    %3389 = vmatpush1.msra.mxu0 0.0
    %3390 = vmatprep.subr.mxu0 0.0
    %3391 = vmatpush1.msra.mxu0 0.0
    %3392 = vmatprep.subr.mxu0 0.0
    %3393 = vmatpush1.msra.mxu0 0.0
    %3394 = vmatprep.subr.mxu0 0.0
    %3395 = vmatpush1.msra.mxu0 0.0
    %3396 = vmatprep.subr.mxu0 0.0
    %3397 = vmatpush1.msra.mxu0 0.0
    %3398 = vmatprep.subr.mxu0 0.0
    %3399 = vmatpush1.msra.mxu0 0.0
    %3400 = vmatprep.subr.mxu0 0.0
    %3401 = vmatpush1.msra.mxu0 0.0
    %3402 = vmatprep.subr.mxu0 0.0
    %3403 = vmatpush1.msra.mxu0 0.0
    %3404 = vmatprep.subr.mxu0 0.0
    %3405 = vmatpush1.msra.mxu0 0.0
    %3406 = vmatprep.subr.mxu0 0.0
    %3407 = vmatpush1.msra.mxu0 0.0
    %3408 = vmatprep.subr.mxu0 0.0
    %3409 = vmatpush1.msra.mxu0 0.0
    %3410 = vmatprep.subr.mxu0 0.0
    %3411 = vmatpush1.msra.mxu0 0.0
    %3412 = vmatprep.subr.mxu0 0.0
    %3413 = vmatpush1.msra.mxu0 0.0
    %3414 = vmatprep.subr.mxu0 0.0
    %3415 = vmatpush1.msra.mxu0 0.0
    %3416 = vmatprep.subr.mxu0 0.0
    %3417 = vmatpush1.msra.mxu0 0.0
    %3418 = vmatprep.subr.mxu0 0.0
    %3419 = vmatpush1.msra.mxu0 0.0
    %3420 = vmatprep.subr.mxu0 0.0
    %3421 = vmatpush1.msra.mxu0 0.0
    %3422 = vmatprep.subr.mxu0 0.0
    %3423 = vmatpush1.msra.mxu0 0.0
    %3424 = vmatprep.subr.mxu0 0.0
    %3425 = vmatpush1.msra.mxu0 0.0
    %3426 = vmatprep.mubr.f32.mxu0 0.0
    %3427 = vmatmul.mubr.f32.gmra.mrb[0].mxu0 %v3357
    %v3428 = vpop.f32.mrb[0].mxu0
    %v3429 = vadd.f32 0.0, %v3428
    %v3430 = vpop.f32.mrb[0].mxu0
    %3431 = vmatprep.mubr.f32.mxu0 0.0
    %3432 = vmatmul.mubr.f32.gmra.mrb[0].mxu0 %v3360
    %v3433 = vpop.f32.mrb[0].mxu0
    %v3434 = vadd.f32 0.0, %v3433
    %v3435 = vpop.f32.mrb[0].mxu0
    %3436 = vdwg.mxu0
    %v3437 = vmul.f32 %v2214, %v239
    %v3438 = vmul.f32 %v2219, %v243
    %v3439 = vmul.f32 %v2295, %v250
    %v3440 = vmul.f32 %v2300, %v254
    %v3441 = vmul.f32 %v2376, %v261
    %v3442 = vmul.f32 %v2381, %v265
    %v3443 = vmul.f32 %v2457, %v272
    %v3444 = vmul.f32 %v2462, %v276
    %v3445 = vmul.f32 %v2538, %v283
    %v3446 = vmul.f32 %v2543, %v287
    %v3447 = vmul.f32 %v2619, %v294
    %v3448 = vmul.f32 %v2624, %v298
    %v3449 = vmul.f32 %v2700, %v305
    %v3450 = vmul.f32 %v2705, %v309
    %v3451 = vmul.f32 %v2781, %v316
    %v3452 = vmul.f32 %v2786, %v320
    %v3453 = vmul.f32 %v2862, %v327
    %v3454 = vmul.f32 %v2867, %v331
    %v3455 = vmul.f32 %v2943, %v338
    %v3456 = vmul.f32 %v2948, %v342
    %v3457 = vmul.f32 %v3024, %v349
    %v3458 = vmul.f32 %v3029, %v353
    %v3459 = vmul.f32 %v3105, %v360
    %v3460 = vmul.f32 %v3110, %v364
    %v3461 = vmul.f32 %v3186, %v371
    %v3462 = vmul.f32 %v3191, %v375
    %v3463 = vmul.f32 %v3267, %v382
    %v3464 = vmul.f32 %v3272, %v386
    %v3465 = vmul.f32 %v3348, %v393
    %v3466 = vmul.f32 %v3353, %v397
    %v3467 = vmul.f32 %v3429, %v404
    %v3468 = vmul.f32 %v3434, %v408
    %vm3469 = vcmask 130048
    %v3470 = vsel %vm3469, %v231, 0.0
    %3471 = vadd.xlane.f32.xlu0 %v3470
    %v3472 = vpop.xlane.xlu0 %3471
    %v3473 = vsel %vm3469, %v232, 0.0
    %3474 = vadd.xlane.f32.xlu0 %v3473
    %v3475 = vpop.xlane.xlu0 %3474
    %vm3476 = vcmp.eq.f32.partialorder %v3472, 0.0
    %vm3477 = vcmp.eq.f32.partialorder %v3475, 0.0
    %v3478 = vsel %vm3476, 1.0, %v3472
    %v3479 = vsel %vm3477, 1.0, %v3475
    %v3480 = vsel %vm443, %v3437, 0.0
    %v3481 = vsel %vm443, %v3438, 0.0
    %v3482 = vadd.f32 %v3480, %v3481
    %v3483 = vrot.slane %v3482, 4
    %v3484 = vadd.f32 %v3482, %v3483
    %v3485 = vrot.slane %v3484, 2
    %v3486 = vadd.f32 %v3484, %v3485
    %v3487 = vrot.slane %v3486, 1
    %v3488 = vadd.f32 %v3486, %v3487
    %v3489 = vsel %vm443, %v3439, 0.0
    %v3490 = vsel %vm443, %v3440, 0.0
    %v3491 = vadd.f32 %v3489, %v3490
    %v3492 = vrot.slane %v3491, 4
    %v3493 = vadd.f32 %v3491, %v3492
    %v3494 = vrot.slane %v3493, 2
    %v3495 = vadd.f32 %v3493, %v3494
    %v3496 = vrot.slane %v3495, 1
    %v3497 = vadd.f32 %v3495, %v3496
    %v3498 = vsel %vm443, %v3441, 0.0
    %v3499 = vsel %vm443, %v3442, 0.0
    %v3500 = vadd.f32 %v3498, %v3499
    %v3501 = vrot.slane %v3500, 4
    %v3502 = vadd.f32 %v3500, %v3501
    %v3503 = vrot.slane %v3502, 2
    %v3504 = vadd.f32 %v3502, %v3503
    %v3505 = vrot.slane %v3504, 1
    %v3506 = vadd.f32 %v3504, %v3505
    %v3507 = vsel %vm443, %v3443, 0.0
    %v3508 = vsel %vm443, %v3444, 0.0
    %v3509 = vadd.f32 %v3507, %v3508
    %v3510 = vrot.slane %v3509, 4
    %v3511 = vadd.f32 %v3509, %v3510
    %v3512 = vrot.slane %v3511, 2
    %v3513 = vadd.f32 %v3511, %v3512
    %v3514 = vrot.slane %v3513, 1
    %v3515 = vadd.f32 %v3513, %v3514
    %v3516 = vsel %vm443, %v3445, 0.0
    %v3517 = vsel %vm443, %v3446, 0.0
    %v3518 = vadd.f32 %v3516, %v3517
    %v3519 = vrot.slane %v3518, 4
    %v3520 = vadd.f32 %v3518, %v3519
    %v3521 = vrot.slane %v3520, 2
    %v3522 = vadd.f32 %v3520, %v3521
    %v3523 = vrot.slane %v3522, 1
    %v3524 = vadd.f32 %v3522, %v3523
    %v3525 = vsel %vm443, %v3447, 0.0
    %v3526 = vsel %vm443, %v3448, 0.0
    %v3527 = vadd.f32 %v3525, %v3526
    %v3528 = vrot.slane %v3527, 4
    %v3529 = vadd.f32 %v3527, %v3528
    %v3530 = vrot.slane %v3529, 2
    %v3531 = vadd.f32 %v3529, %v3530
    %v3532 = vrot.slane %v3531, 1
    %v3533 = vadd.f32 %v3531, %v3532
    %v3534 = vsel %vm443, %v3449, 0.0
    %v3535 = vsel %vm443, %v3450, 0.0
    %v3536 = vadd.f32 %v3534, %v3535
    %v3537 = vrot.slane %v3536, 4
    %v3538 = vadd.f32 %v3536, %v3537
    %v3539 = vrot.slane %v3538, 2
    %v3540 = vadd.f32 %v3538, %v3539
    %v3541 = vrot.slane %v3540, 1
    %v3542 = vadd.f32 %v3540, %v3541
    %v3543 = vsel %vm443, %v3451, 0.0
    %v3544 = vsel %vm443, %v3452, 0.0
    %v3545 = vadd.f32 %v3543, %v3544
    %v3546 = vrot.slane %v3545, 4
    %v3547 = vadd.f32 %v3545, %v3546
    %v3548 = vrot.slane %v3547, 2
    %v3549 = vadd.f32 %v3547, %v3548
    %v3550 = vrot.slane %v3549, 1
    %v3551 = vadd.f32 %v3549, %v3550
    %v3552 = vsel %vm443, %v3453, 0.0
    %v3553 = vsel %vm443, %v3454, 0.0
    %v3554 = vadd.f32 %v3552, %v3553
    %v3555 = vrot.slane %v3554, 4
    %v3556 = vadd.f32 %v3554, %v3555
    %v3557 = vrot.slane %v3556, 2
    %v3558 = vadd.f32 %v3556, %v3557
    %v3559 = vrot.slane %v3558, 1
    %v3560 = vadd.f32 %v3558, %v3559
    %v3561 = vsel %vm443, %v3455, 0.0
    %v3562 = vsel %vm443, %v3456, 0.0
    %v3563 = vadd.f32 %v3561, %v3562
    %v3564 = vrot.slane %v3563, 4
    %v3565 = vadd.f32 %v3563, %v3564
    %v3566 = vrot.slane %v3565, 2
    %v3567 = vadd.f32 %v3565, %v3566
    %v3568 = vrot.slane %v3567, 1
    %v3569 = vadd.f32 %v3567, %v3568
    %v3570 = vsel %vm443, %v3457, 0.0
    %v3571 = vsel %vm443, %v3458, 0.0
    %v3572 = vadd.f32 %v3570, %v3571
    %v3573 = vrot.slane %v3572, 4
    %v3574 = vadd.f32 %v3572, %v3573
    %v3575 = vrot.slane %v3574, 2
    %v3576 = vadd.f32 %v3574, %v3575
    %v3577 = vrot.slane %v3576, 1
    %v3578 = vadd.f32 %v3576, %v3577
    %v3579 = vsel %vm443, %v3459, 0.0
    %v3580 = vsel %vm443, %v3460, 0.0
    %v3581 = vadd.f32 %v3579, %v3580
    %v3582 = vrot.slane %v3581, 4
    %v3583 = vadd.f32 %v3581, %v3582
    %v3584 = vrot.slane %v3583, 2
    %v3585 = vadd.f32 %v3583, %v3584
    %v3586 = vrot.slane %v3585, 1
    %v3587 = vadd.f32 %v3585, %v3586
    %v3588 = vsel %vm443, %v3461, 0.0
    %v3589 = vsel %vm443, %v3462, 0.0
    %v3590 = vadd.f32 %v3588, %v3589
    %v3591 = vrot.slane %v3590, 4
    %v3592 = vadd.f32 %v3590, %v3591
    %v3593 = vrot.slane %v3592, 2
    %v3594 = vadd.f32 %v3592, %v3593
    %v3595 = vrot.slane %v3594, 1
    %v3596 = vadd.f32 %v3594, %v3595
    %v3597 = vsel %vm443, %v3463, 0.0
    %v3598 = vsel %vm443, %v3464, 0.0
    %v3599 = vadd.f32 %v3597, %v3598
    %v3600 = vrot.slane %v3599, 4
    %v3601 = vadd.f32 %v3599, %v3600
    %v3602 = vrot.slane %v3601, 2
    %v3603 = vadd.f32 %v3601, %v3602
    %v3604 = vrot.slane %v3603, 1
    %v3605 = vadd.f32 %v3603, %v3604
    %v3606 = vsel %vm443, %v3465, 0.0
    %v3607 = vsel %vm443, %v3466, 0.0
    %v3608 = vadd.f32 %v3606, %v3607
    %v3609 = vrot.slane %v3608, 4
    %v3610 = vadd.f32 %v3608, %v3609
    %v3611 = vrot.slane %v3610, 2
    %v3612 = vadd.f32 %v3610, %v3611
    %v3613 = vrot.slane %v3612, 1
    %v3614 = vadd.f32 %v3612, %v3613
    %v3615 = vsel %vm443, %v3467, 0.0
    %v3616 = vsel %vm443, %v3468, 0.0
    %v3617 = vadd.f32 %v3615, %v3616
    %v3618 = vrot.slane %v3617, 4
    %v3619 = vadd.f32 %v3617, %v3618
    %v3620 = vrot.slane %v3619, 2
    %v3621 = vadd.f32 %v3619, %v3620
    %v3622 = vrot.slane %v3621, 1
    %v3623 = vadd.f32 %v3621, %v3622
    %v3626 = vrot.slane %v3478, 1
    %v3627 = vrot.slane %v3478, 2
    %v3628 = vrot.slane %v3478, 3
    %v3629 = vrot.slane %v3478, 4
    %v3630 = vrot.slane %v3478, 5
    %v3631 = vrot.slane %v3478, 6
    %v3632 = vrot.slane %v3478, 7
    %v3633 = vrot.slane %v3479, 1
    %v3634 = vrot.slane %v3479, 2
    %v3635 = vrot.slane %v3479, 3
    %v3636 = vrot.slane %v3479, 4
    %v3637 = vrot.slane %v3479, 5
    %v3638 = vrot.slane %v3479, 6
    %v3639 = vrot.slane %v3479, 7
    %v3656 = vrcp.pop %v3478
    %v3657 = vmul.f32 %v3488, %v3656
    %v3658 = vrcp.pop %v3626
    %v3659 = vmul.f32 %v3497, %v3658
    %v3660 = vrcp.pop %v3627
    %v3661 = vmul.f32 %v3506, %v3660
    %v3662 = vrcp.pop %v3628
    %v3663 = vmul.f32 %v3515, %v3662
    %v3664 = vrcp.pop %v3629
    %v3665 = vmul.f32 %v3524, %v3664
    %v3666 = vrcp.pop %v3630
    %v3667 = vmul.f32 %v3533, %v3666
    %v3668 = vrcp.pop %v3631
    %v3669 = vmul.f32 %v3542, %v3668
    %v3670 = vrcp.pop %v3632
    %v3671 = vmul.f32 %v3551, %v3670
    %v3672 = vrcp.pop %v3479
    %v3673 = vmul.f32 %v3560, %v3672
    %v3674 = vrcp.pop %v3633
    %v3675 = vmul.f32 %v3569, %v3674
    %v3676 = vrcp.pop %v3634
    %v3677 = vmul.f32 %v3578, %v3676
    %v3678 = vrcp.pop %v3635
    %v3679 = vmul.f32 %v3587, %v3678
    %v3680 = vrcp.pop %v3636
    %v3681 = vmul.f32 %v3596, %v3680
    %v3682 = vrcp.pop %v3637
    %v3683 = vmul.f32 %v3605, %v3682
    %v3684 = vrcp.pop %v3638
    %v3685 = vmul.f32 %v3614, %v3684
    %v3686 = vrcp.pop %v3639
    %v3687 = vmul.f32 %v3623, %v3686
    %v3704 = vrot.slane %v3659, 7
    %vm3705 = vcmask 1041409
    %v3706 = vsel %vm3705, %v3704, %v3657
    %v3707 = vrot.slane %v3661, 6
    %vm3708 = vcmask 1042434
    %v3709 = vsel %vm3708, %v3707, %v3706
    %v3710 = vrot.slane %v3663, 5
    %vm3711 = vcmask 1043459
    %v3712 = vsel %vm3711, %v3710, %v3709
    %v3713 = vrot.slane %v3665, 4
    %vm3714 = vcmask 1044484
    %v3715 = vsel %vm3714, %v3713, %v3712
    %v3716 = vrot.slane %v3667, 3
    %vm3717 = vcmask 1045509
    %v3718 = vsel %vm3717, %v3716, %v3715
    %v3719 = vrot.slane %v3669, 2
    %vm3720 = vcmask 1046534
    %v3721 = vsel %vm3720, %v3719, %v3718
    %v3722 = vrot.slane %v3671, 1
    %vm3723 = vcmask 1047559
    %v3724 = vsel %vm3723, %v3722, %v3721
    %v3725 = vrot.slane %v3675, 7
    %v3726 = vsel %vm3705, %v3725, %v3673
    %v3727 = vrot.slane %v3677, 6
    %v3728 = vsel %vm3708, %v3727, %v3726
    %v3729 = vrot.slane %v3679, 5
    %v3730 = vsel %vm3711, %v3729, %v3728
    %v3731 = vrot.slane %v3681, 4
    %v3732 = vsel %vm3714, %v3731, %v3730
    %v3733 = vrot.slane %v3683, 3
    %v3734 = vsel %vm3717, %v3733, %v3732
    %v3735 = vrot.slane %v3685, 2
    %v3736 = vsel %vm3720, %v3735, %v3734
    %v3737 = vrot.slane %v3687, 1
    %v3738 = vsel %vm3723, %v3737, %v3736
    %s3741 = scalar_lea.vmem [#allocation2], %s226
    %3742 = vst.msk [vmem:[%s3741] sm:$0xff] %vm443, %v3724
    %3743 = vst.msk [vmem:[%s3741 + $0x8] sm:$0xff] %vm443, %v3738
    %p3744 = scmp.eq.s32.totalorder 0, 0
    // Predicated region
    $region70: #{model_forward_core.1} parent=1 // pred_check
      %p3745 = pneg %p3744
    $region71: #{model_forward_core.1} parent=1 // pred_check_branch
      %3747 = sbr.rel (%p3745) target = $region73
    $region72: #{model_forward_core.1} parent=1 // pred_region
      %v3748 = vld [vmem:[%s1] sm:$0xff]
      %v3749 = vld [vmem:[%s1 + $0x8] sm:$0xff]
      %v3750 = vpack.c.bf16 %v3749, %v3748
      %v3751 = vld [vmem:[#allocation4] sm:$0xff]
      %v3752 = vld [vmem:[#allocation4 + $0x8] sm:$0xff]
      %v3753 = vpack.c.bf16 %v3752, %v3751
      %v3754 = vld [vmem:[#allocation2] sm:$0xff]
      %v3755 = vld [vmem:[#allocation2 + $0x8] sm:$0xff]
      %v3756 = vpack.c.bf16 %v3755, %v3754
      %v3757 = vld [vmem:[%s9] sm:$0xff]
      %v3758 = vld [vmem:[%s9 + $0x8] sm:$0xff]
      %v3759 = vld [vmem:[%s9 + $0x10] sm:$0xff]
      %v3760 = vld [vmem:[%s9 + $0x18] sm:$0xff]
      %v3761 = vpack.c.bf16 %v3758, %v3757
      %v3762 = vpack.c.bf16 %v3760, %v3759
      %v3764 = vsel %vm443, %v3756, 0
      %3766 = vmatprep.subr.bf16.mxu0 0
      %3767 = vmatpush1.bf16.msra.mxu0 %v3761
      %3768 = vmatprep.subr.bf16.mxu0 0
      %3769 = vmatpush1.bf16.msra.mxu0 %v3762
      %3770 = vmatprep.subr.bf16.mxu0 0
      %3771 = vmatpush1.bf16.msra.mxu0 0
      %3772 = vmatprep.subr.bf16.mxu0 0
      %3773 = vmatpush1.bf16.msra.mxu0 0
      %3774 = vmatprep.subr.bf16.mxu0 0
      %3775 = vmatpush1.bf16.msra.mxu0 0
      %3776 = vmatprep.subr.bf16.mxu0 0
      %3777 = vmatpush1.bf16.msra.mxu0 0
      %3778 = vmatprep.subr.bf16.mxu0 0
      %3779 = vmatpush1.bf16.msra.mxu0 0
      %3780 = vmatprep.subr.bf16.mxu0 0
      %3781 = vmatpush1.bf16.msra.mxu0 0
      %3782 = vmatprep.subr.bf16.mxu0 0
      %3783 = vmatpush1.bf16.msra.mxu0 0
      %3784 = vmatprep.subr.bf16.mxu0 0
      %3785 = vmatpush1.bf16.msra.mxu0 0
      %3786 = vmatprep.subr.bf16.mxu0 0
      %3787 = vmatpush1.bf16.msra.mxu0 0
      %3788 = vmatprep.subr.bf16.mxu0 0
      %3789 = vmatpush1.bf16.msra.mxu0 0
      %3790 = vmatprep.subr.bf16.mxu0 0
      %3791 = vmatpush1.bf16.msra.mxu0 0
      %3792 = vmatprep.subr.bf16.mxu0 0
      %3793 = vmatpush1.bf16.msra.mxu0 0
      %3794 = vmatprep.subr.bf16.mxu0 0
      %3795 = vmatpush1.bf16.msra.mxu0 0
      %3796 = vmatprep.subr.bf16.mxu0 0
      %3797 = vmatpush1.bf16.msra.mxu0 0
      %3798 = vmatprep.mubr.bf16.mxu0 0
      %3799 = vmatmul.mubr.bf16.gmra.mrb[0].mxu0 %v3764
      %v3800 = vpop.f32.mrb[0].mxu0
      %v3801 = vadd.f32 0.0, %v3800
      %v3802 = vpop.f32.mrb[0].mxu0
      %v3803 = vpop.f32.mrb[0].mxu0
      %v3804 = vadd.f32 0.0, %v3803
      %v3805 = vpop.f32.mrb[0].mxu0
      %3806 = vdwg.mxu0
      %v3808 = vsel %vm3469, %v3750, 0
      %3810 = vmatprep.subr.bf16.mxu0 0
      %3811 = vmatpush1.bf16.msra.mxu0 %v3753
      %3812 = vmatprep.subr.bf16.mxu0 0
      %3813 = vmatpush1.bf16.msra.mxu0 0
      %3814 = vmatprep.subr.bf16.mxu0 0
      %3815 = vmatpush1.bf16.msra.mxu0 0
      %3816 = vmatprep.subr.bf16.mxu0 0
      %3817 = vmatpush1.bf16.msra.mxu0 0
      %3818 = vmatprep.subr.bf16.mxu0 0
      %3819 = vmatpush1.bf16.msra.mxu0 0
      %3820 = vmatprep.subr.bf16.mxu0 0
      %3821 = vmatpush1.bf16.msra.mxu0 0
      %3822 = vmatprep.subr.bf16.mxu0 0
      %3823 = vmatpush1.bf16.msra.mxu0 0
      %3824 = vmatprep.subr.bf16.mxu0 0
      %3825 = vmatpush1.bf16.msra.mxu0 0
      %3826 = vmatprep.subr.bf16.mxu0 0
      %3827 = vmatpush1.bf16.msra.mxu0 0
      %3828 = vmatprep.subr.bf16.mxu0 0
      %3829 = vmatpush1.bf16.msra.mxu0 0
      %3830 = vmatprep.subr.bf16.mxu0 0
      %3831 = vmatpush1.bf16.msra.mxu0 0
      %3832 = vmatprep.subr.bf16.mxu0 0
      %3833 = vmatpush1.bf16.msra.mxu0 0
      %3834 = vmatprep.subr.bf16.mxu0 0
      %3835 = vmatpush1.bf16.msra.mxu0 0
      %3836 = vmatprep.subr.bf16.mxu0 0
      %3837 = vmatpush1.bf16.msra.mxu0 0
      %3838 = vmatprep.subr.bf16.mxu0 0
      %3839 = vmatpush1.bf16.msra.mxu0 0
      %3840 = vmatprep.subr.bf16.mxu0 0
      %3841 = vmatpush1.bf16.msra.mxu0 0
      %3842 = vmatprep.mubr.bf16.mxu0 0
      %3843 = vmatmul.mubr.bf16.gmra.mrb[0].mxu0 %v3808
      %v3844 = vpop.f32.mrb[0].mxu0
      %v3845 = vadd.f32 %v3801, %v3844
      %v3846 = vpop.f32.mrb[0].mxu0
      %v3847 = vpop.f32.mrb[0].mxu0
      %v3848 = vadd.f32 %v3804, %v3847
      %v3849 = vpop.f32.mrb[0].mxu0
      %3850 = vdwg.mxu0
      %v3851 = vld [vmem:[%s3] sm:$0xff]
      %v3852 = vld [vmem:[%s3 + $0x8] sm:$0xff]
      %v3853 = vpack.c.bf16 %v3852, %v3851
      %v3854 = vld [vmem:[%s10] sm:$0x3]
      %v3855 = vpack.c.bf16 %v3854, %v3854
      %vm3856 = vcmask 15360
      %v3858 = vsel %vm3856, %v3853, 0
      %vm3860 = vcmask 1040384
      %v3862 = vsel %vm3860, %v3855, 0
      %3864 = vmatprep.subr.bf16.mxu0 0
      %3865 = vmatpush1.bf16.msra.mxu0 %v3862
      %3866 = vmatprep.subr.bf16.mxu0 0
      %3867 = vmatpush1.bf16.msra.mxu0 0
      %3868 = vmatprep.subr.bf16.mxu0 0
      %3869 = vmatpush1.bf16.msra.mxu0 0
      %3870 = vmatprep.subr.bf16.mxu0 0
      %3871 = vmatpush1.bf16.msra.mxu0 0
      %3872 = vmatprep.subr.bf16.mxu0 0
      %3873 = vmatpush1.bf16.msra.mxu0 0
      %3874 = vmatprep.subr.bf16.mxu0 0
      %3875 = vmatpush1.bf16.msra.mxu0 0
      %3876 = vmatprep.subr.bf16.mxu0 0
      %3877 = vmatpush1.bf16.msra.mxu0 0
      %3878 = vmatprep.subr.bf16.mxu0 0
      %3879 = vmatpush1.bf16.msra.mxu0 0
      %3880 = vmatprep.subr.bf16.mxu0 0
      %3881 = vmatpush1.bf16.msra.mxu0 0
      %3882 = vmatprep.subr.bf16.mxu0 0
      %3883 = vmatpush1.bf16.msra.mxu0 0
      %3884 = vmatprep.subr.bf16.mxu0 0
      %3885 = vmatpush1.bf16.msra.mxu0 0
      %3886 = vmatprep.subr.bf16.mxu0 0
      %3887 = vmatpush1.bf16.msra.mxu0 0
      %3888 = vmatprep.subr.bf16.mxu0 0
      %3889 = vmatpush1.bf16.msra.mxu0 0
      %3890 = vmatprep.subr.bf16.mxu0 0
      %3891 = vmatpush1.bf16.msra.mxu0 0
      %3892 = vmatprep.subr.bf16.mxu0 0
      %3893 = vmatpush1.bf16.msra.mxu0 0
      %3894 = vmatprep.subr.bf16.mxu0 0
      %3895 = vmatpush1.bf16.msra.mxu0 0
      %3896 = vmatprep.mubr.bf16.mxu0 0
      %3897 = vmatmul.mubr.bf16.gmra.mrb[0].mxu0 %v3858
      %v3898 = vpop.f32.mrb[0].mxu0
      %v3899 = vadd.f32 0.0, %v3898
      %v3900 = vpop.f32.mrb[0].mxu0
      %v3901 = vpop.f32.mrb[0].mxu0
      %v3902 = vadd.f32 0.0, %v3901
      %v3903 = vpop.f32.mrb[0].mxu0
      %3904 = vdwg.mxu0
      %v3905 = vadd.f32 %v3845, %v3899
      %v3906 = vadd.f32 %v3848, %v3902
      %v3907 = vld [vmem:[%s12] sm:$0x1]
      %v3909 = vlaneseq
      %v3910 = vshrl.u32 %v3909, 7
      %v3911 = vsub.s32 0, %v3910
      %v3912 = vrot.slane %v3907, %v3911
      %v3914 = vadd.f32 %v3905, %v3912
      %v3915 = vadd.f32 %v3906, %v3912
      %v3916 = vld [vmem:[%s11] sm:$0xff]
      %v3917 = vld [vmem:[%s11 + $0x8] sm:$0xff]
      %v3918 = vld [vmem:[%s11 + $0x10] sm:$0xff]
      %v3919 = vld [vmem:[%s11 + $0x18] sm:$0xff]
      %v3920 = vpack.c.bf16 %v3917, %v3916
      %v3921 = vpack.c.bf16 %v3919, %v3918
      %v3923 = vsel %vm443, 0, 0
      %3925 = vmatprep.subr.bf16.mxu0 0
      %3926 = vmatpush1.bf16.msra.mxu0 %v3920
      %3927 = vmatprep.subr.bf16.mxu0 0
      %3928 = vmatpush1.bf16.msra.mxu0 %v3921
      %3929 = vmatprep.subr.bf16.mxu0 0
      %3930 = vmatpush1.bf16.msra.mxu0 0
      %3931 = vmatprep.subr.bf16.mxu0 0
      %3932 = vmatpush1.bf16.msra.mxu0 0
      %3933 = vmatprep.subr.bf16.mxu0 0
      %3934 = vmatpush1.bf16.msra.mxu0 0
      %3935 = vmatprep.subr.bf16.mxu0 0
      %3936 = vmatpush1.bf16.msra.mxu0 0
      %3937 = vmatprep.subr.bf16.mxu0 0
      %3938 = vmatpush1.bf16.msra.mxu0 0
      %3939 = vmatprep.subr.bf16.mxu0 0
      %3940 = vmatpush1.bf16.msra.mxu0 0
      %3941 = vmatprep.subr.bf16.mxu0 0
      %3942 = vmatpush1.bf16.msra.mxu0 0
      %3943 = vmatprep.subr.bf16.mxu0 0
      %3944 = vmatpush1.bf16.msra.mxu0 0
      %3945 = vmatprep.subr.bf16.mxu0 0
      %3946 = vmatpush1.bf16.msra.mxu0 0
      %3947 = vmatprep.subr.bf16.mxu0 0
      %3948 = vmatpush1.bf16.msra.mxu0 0
      %3949 = vmatprep.subr.bf16.mxu0 0
      %3950 = vmatpush1.bf16.msra.mxu0 0
      %3951 = vmatprep.subr.bf16.mxu0 0
      %3952 = vmatpush1.bf16.msra.mxu0 0
      %3953 = vmatprep.subr.bf16.mxu0 0
      %3954 = vmatpush1.bf16.msra.mxu0 0
      %3955 = vmatprep.subr.bf16.mxu0 0
      %3956 = vmatpush1.bf16.msra.mxu0 0
      %3957 = vmatprep.mubr.bf16.mxu0 0
      %3958 = vmatmul.mubr.bf16.gmra.mrb[0].mxu0 %v3923
      %v3959 = vpop.f32.mrb[0].mxu0
      %v3960 = vadd.f32 0.0, %v3959
      %v3961 = vpop.f32.mrb[0].mxu0
      %v3962 = vpop.f32.mrb[0].mxu0
      %v3963 = vpop.f32.mrb[0].mxu0
      %3964 = vdwg.mxu0
      %v3966 = vrot.slane %v3960, 1
      %v3969 = vadd.f32 %v3914, %v3960
      %v3970 = vadd.f32 %v3915, %v3966
      %v3971 = vxor.u32 %v3969, 2147483648
      %v3972 = vxor.u32 %v3970, 2147483648
      %v3973 = vmul.f32 %v3971, 1.442695
      %v3974 = vpow.pop %v3973
      %v3975 = vmul.f32 %v3972, 1.442695
      %v3976 = vpow.pop %v3975
      %v3977 = vadd.f32 %v3974, 1.0
      %v3978 = vadd.f32 %v3976, 1.0
      %v3979 = vrcp.pop %v3977
      %v3980 = vmul.f32 1.0, %v3979
      %v3981 = vrcp.pop %v3978
      %v3982 = vmul.f32 1.0, %v3981
      %v3983 = vtanh.pop %v3969
      %v3984 = vtanh.pop %v3970
      %v3985 = vmul.f32 %v3980, 0.0
      %v3986 = vmul.f32 %v3982, 0.0
      %3989 = vrot.lane.b32.xlu0 %v3983, 64
      %v3990 = vpop.permute.xlu0 %3989
      %3991 = vrot.lane.b32.xlu0 %v3984, 64
      %v3992 = vpop.permute.xlu0 %3991
      %v3995 = vmul.f32 %v3980, %v3990
      %v3996 = vmul.f32 %v3982, %v3992
      %3999 = vrot.lane.b32.xlu0 %v3995, 32
      %v4000 = vpop.permute.xlu0 %3999
      %4001 = vrot.lane.b32.xlu0 %v3996, 32
      %v4002 = vpop.permute.xlu0 %4001
      %v4005 = vadd.f32 %v3985, %v4000
      %v4006 = vadd.f32 %v3986, %v4002
      %v4007 = vtanh.pop %v4005
      %v4008 = vtanh.pop %v4006
      %4011 = vrot.lane.b32.xlu0 %v4007, 64
      %v4012 = vpop.permute.xlu0 %4011
      %4013 = vrot.lane.b32.xlu0 %v4008, 64
      %v4014 = vpop.permute.xlu0 %4013
      %v4017 = vmul.f32 %v3980, %v4012
      %v4018 = vmul.f32 %v3982, %v4014
      %4021 = vrot.lane.b32.xlu0 %v4017, 32
      %v4022 = vpop.permute.xlu0 %4021
      %4023 = vrot.lane.b32.xlu0 %v4018, 32
      %v4024 = vpop.permute.xlu0 %4023
      %vm4027 = vcmask 253952
      %4028 = vst.msk [vmem:[#allocation3] sm:$0x1] %vm4027, %v4022
      %4029 = vst.msk [vmem:[#allocation3 + $0x8] sm:$0x1] %vm4027, %v4024
      %v4030 = vpack.c.bf16 %v4017, %v4017
      %v4031 = vpack.c.bf16 %v4018, %v4018
      %v4034 = vunpack.c.l.b16 %v4030
      %v4035 = vunpack.c.l.b16 %v4031
      %v4036 = vrot.slane %v4035, 7
      %v4037 = vsel %vm3705, %v4036, %v4034
      %v4038 = vpack.c.b16 %v4037, %v4037
      %4039 = vrot.lane.b32.xlu0 %v4038, 32
      %v4040 = vpop.permute.xlu0 %4039
      %v4042 = vsel %vm443, %v4040, 0
      %4044 = vmatprep.subr.bf16.mxu0 0
      %4045 = vmatpush1.bf16.msra.mxu0 %v3920
      %4046 = vmatprep.subr.bf16.mxu0 0
      %4047 = vmatpush1.bf16.msra.mxu0 %v3921
      %4048 = vmatprep.subr.bf16.mxu0 0
      %4049 = vmatpush1.bf16.msra.mxu0 0
      %4050 = vmatprep.subr.bf16.mxu0 0
      %4051 = vmatpush1.bf16.msra.mxu0 0
      %4052 = vmatprep.subr.bf16.mxu0 0
      %4053 = vmatpush1.bf16.msra.mxu0 0
      %4054 = vmatprep.subr.bf16.mxu0 0
      %4055 = vmatpush1.bf16.msra.mxu0 0
      %4056 = vmatprep.subr.bf16.mxu0 0
      %4057 = vmatpush1.bf16.msra.mxu0 0
      %4058 = vmatprep.subr.bf16.mxu0 0
      %4059 = vmatpush1.bf16.msra.mxu0 0
      %4060 = vmatprep.subr.bf16.mxu0 0
      %4061 = vmatpush1.bf16.msra.mxu0 0
      %4062 = vmatprep.subr.bf16.mxu0 0
      %4063 = vmatpush1.bf16.msra.mxu0 0
      %4064 = vmatprep.subr.bf16.mxu0 0
      %4065 = vmatpush1.bf16.msra.mxu0 0
      %4066 = vmatprep.subr.bf16.mxu0 0
      %4067 = vmatpush1.bf16.msra.mxu0 0
      %4068 = vmatprep.subr.bf16.mxu0 0
      %4069 = vmatpush1.bf16.msra.mxu0 0
      %4070 = vmatprep.subr.bf16.mxu0 0
      %4071 = vmatpush1.bf16.msra.mxu0 0
      %4072 = vmatprep.subr.bf16.mxu0 0
      %4073 = vmatpush1.bf16.msra.mxu0 0
      %4074 = vmatprep.subr.bf16.mxu0 0
      %4075 = vmatpush1.bf16.msra.mxu0 0
      %4076 = vmatprep.mubr.bf16.mxu0 0
      %4077 = vmatmul.mubr.bf16.gmra.mrb[0].mxu0 %v4042
      %v4078 = vpop.f32.mrb[0].mxu0
      %v4079 = vadd.f32 0.0, %v4078
      %v4080 = vpop.f32.mrb[0].mxu0
      %v4081 = vpop.f32.mrb[0].mxu0
      %v4082 = vpop.f32.mrb[0].mxu0
      %4083 = vdwg.mxu0
      %v4085 = vrot.slane %v4079, 7
      %v4088 = vadd.f32 %v3914, %v4085
      %v4089 = vadd.f32 %v3915, %v4079
      %v4090 = vxor.u32 %v4088, 2147483648
      %v4091 = vxor.u32 %v4089, 2147483648
      %v4092 = vmul.f32 %v4090, 1.442695
      %v4093 = vpow.pop %v4092
      %v4094 = vmul.f32 %v4091, 1.442695
      %v4095 = vpow.pop %v4094
      %v4096 = vadd.f32 %v4093, 1.0
      %v4097 = vadd.f32 %v4095, 1.0
      %v4098 = vrcp.pop %v4096
      %v4099 = vmul.f32 1.0, %v4098
      %v4100 = vrcp.pop %v4097
      %v4101 = vmul.f32 1.0, %v4100
      %v4102 = vtanh.pop %v4088
      %v4103 = vtanh.pop %v4089
      %v4106 = vrot.slane %v4005, 7
      %v4107 = vrot.slane %v4006, 7
      %v4110 = vmul.f32 %v4099, %v4106
      %v4111 = vmul.f32 %v4101, %v4107
      %4114 = vrot.lane.b32.xlu0 %v4102, 64
      %v4115 = vpop.permute.xlu0 %4114
      %4116 = vrot.lane.b32.xlu0 %v4103, 64
      %v4117 = vpop.permute.xlu0 %4116
      %v4120 = vmul.f32 %v4099, %v4115
      %v4121 = vmul.f32 %v4101, %v4117
      %4124 = vrot.lane.b32.xlu0 %v4120, 32
      %v4125 = vpop.permute.xlu0 %4124
      %4126 = vrot.lane.b32.xlu0 %v4121, 32
      %v4127 = vpop.permute.xlu0 %4126
      %v4130 = vadd.f32 %v4110, %v4125
      %v4131 = vadd.f32 %v4111, %v4127
      %v4132 = vtanh.pop %v4130
      %v4133 = vtanh.pop %v4131
      %4136 = vrot.lane.b32.xlu0 %v4132, 64
      %v4137 = vpop.permute.xlu0 %4136
      %4138 = vrot.lane.b32.xlu0 %v4133, 64
      %v4139 = vpop.permute.xlu0 %4138
      %v4142 = vmul.f32 %v4099, %v4137
      %v4143 = vmul.f32 %v4101, %v4139
      %4146 = vrot.lane.b32.xlu0 %v4142, 32
      %v4147 = vpop.permute.xlu0 %4146
      %4148 = vrot.lane.b32.xlu0 %v4143, 32
      %v4149 = vpop.permute.xlu0 %4148
      %vm4152 = vcmask 254977
      %4153 = vst.msk [vmem:[#allocation3] sm:$0x2] %vm4152, %v4147
      %4154 = vst.msk [vmem:[#allocation3 + $0x8] sm:$0x2] %vm4152, %v4149
      %v4155 = vpack.c.bf16 %v4142, %v4142
      %v4156 = vpack.c.bf16 %v4143, %v4143
      %v4159 = vunpack.c.l.b16 %v4155
      %v4160 = vunpack.c.l.b16 %v4156
      %v4161 = vrot.slane %v4159, 1
      %v4162 = vsel %vm3705, %v4160, %v4161
      %v4163 = vpack.c.b16 %v4162, %v4162
      %4164 = vrot.lane.b32.xlu0 %v4163, 32
      %v4165 = vpop.permute.xlu0 %4164
      %v4167 = vsel %vm443, %v4165, 0
      %4169 = vmatprep.subr.bf16.mxu0 0
      %4170 = vmatpush1.bf16.msra.mxu0 %v3920
      %4171 = vmatprep.subr.bf16.mxu0 0
      %4172 = vmatpush1.bf16.msra.mxu0 %v3921
      %4173 = vmatprep.subr.bf16.mxu0 0
      %4174 = vmatpush1.bf16.msra.mxu0 0
      %4175 = vmatprep.subr.bf16.mxu0 0
      %4176 = vmatpush1.bf16.msra.mxu0 0
      %4177 = vmatprep.subr.bf16.mxu0 0
      %4178 = vmatpush1.bf16.msra.mxu0 0
      %4179 = vmatprep.subr.bf16.mxu0 0
      %4180 = vmatpush1.bf16.msra.mxu0 0
      %4181 = vmatprep.subr.bf16.mxu0 0
      %4182 = vmatpush1.bf16.msra.mxu0 0
      %4183 = vmatprep.subr.bf16.mxu0 0
      %4184 = vmatpush1.bf16.msra.mxu0 0
      %4185 = vmatprep.subr.bf16.mxu0 0
      %4186 = vmatpush1.bf16.msra.mxu0 0
      %4187 = vmatprep.subr.bf16.mxu0 0
      %4188 = vmatpush1.bf16.msra.mxu0 0
      %4189 = vmatprep.subr.bf16.mxu0 0
      %4190 = vmatpush1.bf16.msra.mxu0 0
      %4191 = vmatprep.subr.bf16.mxu0 0
      %4192 = vmatpush1.bf16.msra.mxu0 0
      %4193 = vmatprep.subr.bf16.mxu0 0
      %4194 = vmatpush1.bf16.msra.mxu0 0
      %4195 = vmatprep.subr.bf16.mxu0 0
      %4196 = vmatpush1.bf16.msra.mxu0 0
      %4197 = vmatprep.subr.bf16.mxu0 0
      %4198 = vmatpush1.bf16.msra.mxu0 0
      %4199 = vmatprep.subr.bf16.mxu0 0
      %4200 = vmatpush1.bf16.msra.mxu0 0
      %4201 = vmatprep.mubr.bf16.mxu0 0
      %4202 = vmatmul.mubr.bf16.gmra.mrb[0].mxu0 %v4167
      %v4203 = vpop.f32.mrb[0].mxu0
      %v4204 = vadd.f32 0.0, %v4203
      %v4205 = vpop.f32.mrb[0].mxu0
      %v4206 = vpop.f32.mrb[0].mxu0
      %v4207 = vpop.f32.mrb[0].mxu0
      %4208 = vdwg.mxu0
      %v4210 = vrot.slane %v4204, 6
      %v4211 = vrot.slane %v4204, 7
      %v4214 = vadd.f32 %v3914, %v4210
      %v4215 = vadd.f32 %v3915, %v4211
      %v4216 = vxor.u32 %v4214, 2147483648
      %v4217 = vxor.u32 %v4215, 2147483648
      %v4218 = vmul.f32 %v4216, 1.442695
      %v4219 = vpow.pop %v4218
      %v4220 = vmul.f32 %v4217, 1.442695
      %v4221 = vpow.pop %v4220
      %v4222 = vadd.f32 %v4219, 1.0
      %v4223 = vadd.f32 %v4221, 1.0
      %v4224 = vrcp.pop %v4222
      %v4225 = vmul.f32 1.0, %v4224
      %v4226 = vrcp.pop %v4223
      %v4227 = vmul.f32 1.0, %v4226
      %v4228 = vtanh.pop %v4214
      %v4229 = vtanh.pop %v4215
      %v4232 = vrot.slane %v4130, 7
      %v4233 = vrot.slane %v4131, 7
      %v4236 = vmul.f32 %v4225, %v4232
      %v4237 = vmul.f32 %v4227, %v4233
      %4240 = vrot.lane.b32.xlu0 %v4228, 64
      %v4241 = vpop.permute.xlu0 %4240
      %4242 = vrot.lane.b32.xlu0 %v4229, 64
      %v4243 = vpop.permute.xlu0 %4242
      %v4246 = vmul.f32 %v4225, %v4241
      %v4247 = vmul.f32 %v4227, %v4243
      %4250 = vrot.lane.b32.xlu0 %v4246, 32
      %v4251 = vpop.permute.xlu0 %4250
      %4252 = vrot.lane.b32.xlu0 %v4247, 32
      %v4253 = vpop.permute.xlu0 %4252
      %v4256 = vadd.f32 %v4236, %v4251
      %v4257 = vadd.f32 %v4237, %v4253
      %v4258 = vtanh.pop %v4256
      %v4259 = vtanh.pop %v4257
      %4262 = vrot.lane.b32.xlu0 %v4258, 64
      %v4263 = vpop.permute.xlu0 %4262
      %4264 = vrot.lane.b32.xlu0 %v4259, 64
      %v4265 = vpop.permute.xlu0 %4264
      %v4268 = vmul.f32 %v4225, %v4263
      %v4269 = vmul.f32 %v4227, %v4265
      %4272 = vrot.lane.b32.xlu0 %v4268, 32
      %v4273 = vpop.permute.xlu0 %4272
      %4274 = vrot.lane.b32.xlu0 %v4269, 32
      %v4275 = vpop.permute.xlu0 %4274
      %vm4278 = vcmask 256002
      %4279 = vst.msk [vmem:[#allocation3] sm:$0x4] %vm4278, %v4273
      %4280 = vst.msk [vmem:[#allocation3 + $0x8] sm:$0x4] %vm4278, %v4275
      %v4281 = vpack.c.bf16 %v4268, %v4268
      %v4282 = vpack.c.bf16 %v4269, %v4269
      %v4285 = vunpack.c.l.b16 %v4281
      %v4286 = vunpack.c.l.b16 %v4282
      %v4287 = vrot.slane %v4285, 2
      %v4288 = vrot.slane %v4286, 1
      %v4289 = vsel %vm3705, %v4288, %v4287
      %v4290 = vpack.c.b16 %v4289, %v4289
      %4291 = vrot.lane.b32.xlu0 %v4290, 32
      %v4292 = vpop.permute.xlu0 %4291
      %v4294 = vsel %vm443, %v4292, 0
      %4296 = vmatprep.subr.bf16.mxu0 0
      %4297 = vmatpush1.bf16.msra.mxu0 %v3920
      %4298 = vmatprep.subr.bf16.mxu0 0
      %4299 = vmatpush1.bf16.msra.mxu0 %v3921
      %4300 = vmatprep.subr.bf16.mxu0 0
      %4301 = vmatpush1.bf16.msra.mxu0 0
      %4302 = vmatprep.subr.bf16.mxu0 0
      %4303 = vmatpush1.bf16.msra.mxu0 0
      %4304 = vmatprep.subr.bf16.mxu0 0
      %4305 = vmatpush1.bf16.msra.mxu0 0
      %4306 = vmatprep.subr.bf16.mxu0 0
      %4307 = vmatpush1.bf16.msra.mxu0 0
      %4308 = vmatprep.subr.bf16.mxu0 0
      %4309 = vmatpush1.bf16.msra.mxu0 0
      %4310 = vmatprep.subr.bf16.mxu0 0
      %4311 = vmatpush1.bf16.msra.mxu0 0
      %4312 = vmatprep.subr.bf16.mxu0 0
      %4313 = vmatpush1.bf16.msra.mxu0 0
      %4314 = vmatprep.subr.bf16.mxu0 0
      %4315 = vmatpush1.bf16.msra.mxu0 0
      %4316 = vmatprep.subr.bf16.mxu0 0
      %4317 = vmatpush1.bf16.msra.mxu0 0
      %4318 = vmatprep.subr.bf16.mxu0 0
      %4319 = vmatpush1.bf16.msra.mxu0 0
      %4320 = vmatprep.subr.bf16.mxu0 0
      %4321 = vmatpush1.bf16.msra.mxu0 0
      %4322 = vmatprep.subr.bf16.mxu0 0
      %4323 = vmatpush1.bf16.msra.mxu0 0
      %4324 = vmatprep.subr.bf16.mxu0 0
      %4325 = vmatpush1.bf16.msra.mxu0 0
      %4326 = vmatprep.subr.bf16.mxu0 0
      %4327 = vmatpush1.bf16.msra.mxu0 0
      %4328 = vmatprep.mubr.bf16.mxu0 0
      %4329 = vmatmul.mubr.bf16.gmra.mrb[0].mxu0 %v4294
      %v4330 = vpop.f32.mrb[0].mxu0
      %v4331 = vadd.f32 0.0, %v4330
      %v4332 = vpop.f32.mrb[0].mxu0
      %v4333 = vpop.f32.mrb[0].mxu0
      %v4334 = vpop.f32.mrb[0].mxu0
      %4335 = vdwg.mxu0
      %v4337 = vrot.slane %v4331, 5
      %v4338 = vrot.slane %v4331, 6
      %v4341 = vadd.f32 %v3914, %v4337
      %v4342 = vadd.f32 %v3915, %v4338
      %v4343 = vxor.u32 %v4341, 2147483648
      %v4344 = vxor.u32 %v4342, 2147483648
      %v4345 = vmul.f32 %v4343, 1.442695
      %v4346 = vpow.pop %v4345
      %v4347 = vmul.f32 %v4344, 1.442695
      %v4348 = vpow.pop %v4347
      %v4349 = vadd.f32 %v4346, 1.0
      %v4350 = vadd.f32 %v4348, 1.0
      %v4351 = vrcp.pop %v4349
      %v4352 = vmul.f32 1.0, %v4351
      %v4353 = vrcp.pop %v4350
      %v4354 = vmul.f32 1.0, %v4353
      %v4355 = vtanh.pop %v4341
      %v4356 = vtanh.pop %v4342
      %v4359 = vrot.slane %v4256, 7
      %v4360 = vrot.slane %v4257, 7
      %v4363 = vmul.f32 %v4352, %v4359
      %v4364 = vmul.f32 %v4354, %v4360
      %4367 = vrot.lane.b32.xlu0 %v4355, 64
      %v4368 = vpop.permute.xlu0 %4367
      %4369 = vrot.lane.b32.xlu0 %v4356, 64
      %v4370 = vpop.permute.xlu0 %4369
      %v4373 = vmul.f32 %v4352, %v4368
      %v4374 = vmul.f32 %v4354, %v4370
      %4377 = vrot.lane.b32.xlu0 %v4373, 32
      %v4378 = vpop.permute.xlu0 %4377
      %4379 = vrot.lane.b32.xlu0 %v4374, 32
      %v4380 = vpop.permute.xlu0 %4379
      %v4383 = vadd.f32 %v4363, %v4378
      %v4384 = vadd.f32 %v4364, %v4380
      %v4385 = vtanh.pop %v4383
      %v4386 = vtanh.pop %v4384
      %4389 = vrot.lane.b32.xlu0 %v4385, 64
      %v4390 = vpop.permute.xlu0 %4389
      %4391 = vrot.lane.b32.xlu0 %v4386, 64
      %v4392 = vpop.permute.xlu0 %4391
      %v4395 = vmul.f32 %v4352, %v4390
      %v4396 = vmul.f32 %v4354, %v4392
      %4399 = vrot.lane.b32.xlu0 %v4395, 32
      %v4400 = vpop.permute.xlu0 %4399
      %4401 = vrot.lane.b32.xlu0 %v4396, 32
      %v4402 = vpop.permute.xlu0 %4401
      %vm4405 = vcmask 257027
      %4406 = vst.msk [vmem:[#allocation3] sm:$0x8] %vm4405, %v4400
      %4407 = vst.msk [vmem:[#allocation3 + $0x8] sm:$0x8] %vm4405, %v4402
      %v4408 = vpack.c.bf16 %v4395, %v4395
      %v4409 = vpack.c.bf16 %v4396, %v4396
      %v4412 = vunpack.c.l.b16 %v4408
      %v4413 = vunpack.c.l.b16 %v4409
      %v4414 = vrot.slane %v4412, 3
      %v4415 = vrot.slane %v4413, 2
      %v4416 = vsel %vm3705, %v4415, %v4414
      %v4417 = vpack.c.b16 %v4416, %v4416
      %4418 = vrot.lane.b32.xlu0 %v4417, 32
      %v4419 = vpop.permute.xlu0 %4418
      %v4421 = vsel %vm443, %v4419, 0
      %4423 = vmatprep.subr.bf16.mxu0 0
      %4424 = vmatpush1.bf16.msra.mxu0 %v3920
      %4425 = vmatprep.subr.bf16.mxu0 0
      %4426 = vmatpush1.bf16.msra.mxu0 %v3921
      %4427 = vmatprep.subr.bf16.mxu0 0
      %4428 = vmatpush1.bf16.msra.mxu0 0
      %4429 = vmatprep.subr.bf16.mxu0 0
      %4430 = vmatpush1.bf16.msra.mxu0 0
      %4431 = vmatprep.subr.bf16.mxu0 0
      %4432 = vmatpush1.bf16.msra.mxu0 0
      %4433 = vmatprep.subr.bf16.mxu0 0
      %4434 = vmatpush1.bf16.msra.mxu0 0
      %4435 = vmatprep.subr.bf16.mxu0 0
      %4436 = vmatpush1.bf16.msra.mxu0 0
      %4437 = vmatprep.subr.bf16.mxu0 0
      %4438 = vmatpush1.bf16.msra.mxu0 0
      %4439 = vmatprep.subr.bf16.mxu0 0
      %4440 = vmatpush1.bf16.msra.mxu0 0
      %4441 = vmatprep.subr.bf16.mxu0 0
      %4442 = vmatpush1.bf16.msra.mxu0 0
      %4443 = vmatprep.subr.bf16.mxu0 0
      %4444 = vmatpush1.bf16.msra.mxu0 0
      %4445 = vmatprep.subr.bf16.mxu0 0
      %4446 = vmatpush1.bf16.msra.mxu0 0
      %4447 = vmatprep.subr.bf16.mxu0 0
      %4448 = vmatpush1.bf16.msra.mxu0 0
      %4449 = vmatprep.subr.bf16.mxu0 0
      %4450 = vmatpush1.bf16.msra.mxu0 0
      %4451 = vmatprep.subr.bf16.mxu0 0
      %4452 = vmatpush1.bf16.msra.mxu0 0
      %4453 = vmatprep.subr.bf16.mxu0 0
      %4454 = vmatpush1.bf16.msra.mxu0 0
      %4455 = vmatprep.mubr.bf16.mxu0 0
      %4456 = vmatmul.mubr.bf16.gmra.mrb[0].mxu0 %v4421
      %v4457 = vpop.f32.mrb[0].mxu0
      %v4458 = vadd.f32 0.0, %v4457
      %v4459 = vpop.f32.mrb[0].mxu0
      %v4460 = vpop.f32.mrb[0].mxu0
      %v4461 = vpop.f32.mrb[0].mxu0
      %4462 = vdwg.mxu0
      %v4464 = vrot.slane %v4458, 4
      %v4465 = vrot.slane %v4458, 5
      %v4468 = vadd.f32 %v3914, %v4464
      %v4469 = vadd.f32 %v3915, %v4465
      %v4470 = vxor.u32 %v4468, 2147483648
      %v4471 = vxor.u32 %v4469, 2147483648
      %v4472 = vmul.f32 %v4470, 1.442695
      %v4473 = vpow.pop %v4472
      %v4474 = vmul.f32 %v4471, 1.442695
      %v4475 = vpow.pop %v4474
      %v4476 = vadd.f32 %v4473, 1.0
      %v4477 = vadd.f32 %v4475, 1.0
      %v4478 = vrcp.pop %v4476
      %v4479 = vmul.f32 1.0, %v4478
      %v4480 = vrcp.pop %v4477
      %v4481 = vmul.f32 1.0, %v4480
      %v4482 = vtanh.pop %v4468
      %v4483 = vtanh.pop %v4469
      %v4486 = vrot.slane %v4383, 7
      %v4487 = vrot.slane %v4384, 7
      %v4490 = vmul.f32 %v4479, %v4486
      %v4491 = vmul.f32 %v4481, %v4487
      %4494 = vrot.lane.b32.xlu0 %v4482, 64
      %v4495 = vpop.permute.xlu0 %4494
      %4496 = vrot.lane.b32.xlu0 %v4483, 64
      %v4497 = vpop.permute.xlu0 %4496
      %v4500 = vmul.f32 %v4479, %v4495
      %v4501 = vmul.f32 %v4481, %v4497
      %4504 = vrot.lane.b32.xlu0 %v4500, 32
      %v4505 = vpop.permute.xlu0 %4504
      %4506 = vrot.lane.b32.xlu0 %v4501, 32
      %v4507 = vpop.permute.xlu0 %4506
      %v4510 = vadd.f32 %v4490, %v4505
      %v4511 = vadd.f32 %v4491, %v4507
      %v4512 = vtanh.pop %v4510
      %v4513 = vtanh.pop %v4511
      %4516 = vrot.lane.b32.xlu0 %v4512, 64
      %v4517 = vpop.permute.xlu0 %4516
      %4518 = vrot.lane.b32.xlu0 %v4513, 64
      %v4519 = vpop.permute.xlu0 %4518
      %v4522 = vmul.f32 %v4479, %v4517
      %v4523 = vmul.f32 %v4481, %v4519
      %4526 = vrot.lane.b32.xlu0 %v4522, 32
      %v4527 = vpop.permute.xlu0 %4526
      %4528 = vrot.lane.b32.xlu0 %v4523, 32
      %v4529 = vpop.permute.xlu0 %4528
      %vm4532 = vcmask 258052
      %4533 = vst.msk [vmem:[#allocation3] sm:$0x10] %vm4532, %v4527
      %4534 = vst.msk [vmem:[#allocation3 + $0x8] sm:$0x10] %vm4532, %v4529
      %v4535 = vpack.c.bf16 %v4522, %v4522
      %v4536 = vpack.c.bf16 %v4523, %v4523
      %v4539 = vunpack.c.l.b16 %v4535
      %v4540 = vunpack.c.l.b16 %v4536
      %v4541 = vrot.slane %v4539, 4
      %v4542 = vrot.slane %v4540, 3
      %v4543 = vsel %vm3705, %v4542, %v4541
      %v4544 = vpack.c.b16 %v4543, %v4543
      %4545 = vrot.lane.b32.xlu0 %v4544, 32
      %v4546 = vpop.permute.xlu0 %4545
      %v4548 = vsel %vm443, %v4546, 0
      %4550 = vmatprep.subr.bf16.mxu0 0
      %4551 = vmatpush1.bf16.msra.mxu0 %v3920
      %4552 = vmatprep.subr.bf16.mxu0 0
      %4553 = vmatpush1.bf16.msra.mxu0 %v3921
      %4554 = vmatprep.subr.bf16.mxu0 0
      %4555 = vmatpush1.bf16.msra.mxu0 0
      %4556 = vmatprep.subr.bf16.mxu0 0
      %4557 = vmatpush1.bf16.msra.mxu0 0
      %4558 = vmatprep.subr.bf16.mxu0 0
      %4559 = vmatpush1.bf16.msra.mxu0 0
      %4560 = vmatprep.subr.bf16.mxu0 0
      %4561 = vmatpush1.bf16.msra.mxu0 0
      %4562 = vmatprep.subr.bf16.mxu0 0
      %4563 = vmatpush1.bf16.msra.mxu0 0
      %4564 = vmatprep.subr.bf16.mxu0 0
      %4565 = vmatpush1.bf16.msra.mxu0 0
      %4566 = vmatprep.subr.bf16.mxu0 0
      %4567 = vmatpush1.bf16.msra.mxu0 0
      %4568 = vmatprep.subr.bf16.mxu0 0
      %4569 = vmatpush1.bf16.msra.mxu0 0
      %4570 = vmatprep.subr.bf16.mxu0 0
      %4571 = vmatpush1.bf16.msra.mxu0 0
      %4572 = vmatprep.subr.bf16.mxu0 0
      %4573 = vmatpush1.bf16.msra.mxu0 0
      %4574 = vmatprep.subr.bf16.mxu0 0
      %4575 = vmatpush1.bf16.msra.mxu0 0
      %4576 = vmatprep.subr.bf16.mxu0 0
      %4577 = vmatpush1.bf16.msra.mxu0 0
      %4578 = vmatprep.subr.bf16.mxu0 0
      %4579 = vmatpush1.bf16.msra.mxu0 0
      %4580 = vmatprep.subr.bf16.mxu0 0
      %4581 = vmatpush1.bf16.msra.mxu0 0
      %4582 = vmatprep.mubr.bf16.mxu0 0
      %4583 = vmatmul.mubr.bf16.gmra.mrb[0].mxu0 %v4548
      %v4584 = vpop.f32.mrb[0].mxu0
      %v4585 = vadd.f32 0.0, %v4584
      %v4586 = vpop.f32.mrb[0].mxu0
      %v4587 = vpop.f32.mrb[0].mxu0
      %v4588 = vpop.f32.mrb[0].mxu0
      %4589 = vdwg.mxu0
      %v4591 = vrot.slane %v4585, 3
      %v4592 = vrot.slane %v4585, 4
      %v4595 = vadd.f32 %v3914, %v4591
      %v4596 = vadd.f32 %v3915, %v4592
      %v4597 = vxor.u32 %v4595, 2147483648
      %v4598 = vxor.u32 %v4596, 2147483648
      %v4599 = vmul.f32 %v4597, 1.442695
      %v4600 = vpow.pop %v4599
      %v4601 = vmul.f32 %v4598, 1.442695
      %v4602 = vpow.pop %v4601
      %v4603 = vadd.f32 %v4600, 1.0
      %v4604 = vadd.f32 %v4602, 1.0
      %v4605 = vrcp.pop %v4603
      %v4606 = vmul.f32 1.0, %v4605
      %v4607 = vrcp.pop %v4604
      %v4608 = vmul.f32 1.0, %v4607
      %v4609 = vtanh.pop %v4595
      %v4610 = vtanh.pop %v4596
      %v4613 = vrot.slane %v4510, 7
      %v4614 = vrot.slane %v4511, 7
      %v4617 = vmul.f32 %v4606, %v4613
      %v4618 = vmul.f32 %v4608, %v4614
      %4621 = vrot.lane.b32.xlu0 %v4609, 64
      %v4622 = vpop.permute.xlu0 %4621
      %4623 = vrot.lane.b32.xlu0 %v4610, 64
      %v4624 = vpop.permute.xlu0 %4623
      %v4627 = vmul.f32 %v4606, %v4622
      %v4628 = vmul.f32 %v4608, %v4624
      %4631 = vrot.lane.b32.xlu0 %v4627, 32
      %v4632 = vpop.permute.xlu0 %4631
      %4633 = vrot.lane.b32.xlu0 %v4628, 32
      %v4634 = vpop.permute.xlu0 %4633
      %v4637 = vadd.f32 %v4617, %v4632
      %v4638 = vadd.f32 %v4618, %v4634
      %v4639 = vtanh.pop %v4637
      %v4640 = vtanh.pop %v4638
      %4643 = vrot.lane.b32.xlu0 %v4639, 64
      %v4644 = vpop.permute.xlu0 %4643
      %4645 = vrot.lane.b32.xlu0 %v4640, 64
      %v4646 = vpop.permute.xlu0 %4645
      %v4649 = vmul.f32 %v4606, %v4644
      %v4650 = vmul.f32 %v4608, %v4646
      %4653 = vrot.lane.b32.xlu0 %v4649, 32
      %v4654 = vpop.permute.xlu0 %4653
      %4655 = vrot.lane.b32.xlu0 %v4650, 32
      %v4656 = vpop.permute.xlu0 %4655
      %vm4659 = vcmask 259077
      %4660 = vst.msk [vmem:[#allocation3] sm:$0x20] %vm4659, %v4654
      %4661 = vst.msk [vmem:[#allocation3 + $0x8] sm:$0x20] %vm4659, %v4656
      %v4662 = vpack.c.bf16 %v4649, %v4649
      %v4663 = vpack.c.bf16 %v4650, %v4650
      %v4666 = vunpack.c.l.b16 %v4662
      %v4667 = vunpack.c.l.b16 %v4663
      %v4668 = vrot.slane %v4666, 5
      %v4669 = vrot.slane %v4667, 4
      %v4670 = vsel %vm3705, %v4669, %v4668
      %v4671 = vpack.c.b16 %v4670, %v4670
      %4672 = vrot.lane.b32.xlu0 %v4671, 32
      %v4673 = vpop.permute.xlu0 %4672
      %v4675 = vsel %vm443, %v4673, 0
      %4677 = vmatprep.subr.bf16.mxu0 0
      %4678 = vmatpush1.bf16.msra.mxu0 %v3920
      %4679 = vmatprep.subr.bf16.mxu0 0
      %4680 = vmatpush1.bf16.msra.mxu0 %v3921
      %4681 = vmatprep.subr.bf16.mxu0 0
      %4682 = vmatpush1.bf16.msra.mxu0 0
      %4683 = vmatprep.subr.bf16.mxu0 0
      %4684 = vmatpush1.bf16.msra.mxu0 0
      %4685 = vmatprep.subr.bf16.mxu0 0
      %4686 = vmatpush1.bf16.msra.mxu0 0
      %4687 = vmatprep.subr.bf16.mxu0 0
      %4688 = vmatpush1.bf16.msra.mxu0 0
      %4689 = vmatprep.subr.bf16.mxu0 0
      %4690 = vmatpush1.bf16.msra.mxu0 0
      %4691 = vmatprep.subr.bf16.mxu0 0
      %4692 = vmatpush1.bf16.msra.mxu0 0
      %4693 = vmatprep.subr.bf16.mxu0 0
      %4694 = vmatpush1.bf16.msra.mxu0 0
      %4695 = vmatprep.subr.bf16.mxu0 0
      %4696 = vmatpush1.bf16.msra.mxu0 0
      %4697 = vmatprep.subr.bf16.mxu0 0
      %4698 = vmatpush1.bf16.msra.mxu0 0
      %4699 = vmatprep.subr.bf16.mxu0 0
      %4700 = vmatpush1.bf16.msra.mxu0 0
      %4701 = vmatprep.subr.bf16.mxu0 0
      %4702 = vmatpush1.bf16.msra.mxu0 0
      %4703 = vmatprep.subr.bf16.mxu0 0
      %4704 = vmatpush1.bf16.msra.mxu0 0
      %4705 = vmatprep.subr.bf16.mxu0 0
      %4706 = vmatpush1.bf16.msra.mxu0 0
      %4707 = vmatprep.subr.bf16.mxu0 0
      %4708 = vmatpush1.bf16.msra.mxu0 0
      %4709 = vmatprep.mubr.bf16.mxu0 0
      %4710 = vmatmul.mubr.bf16.gmra.mrb[0].mxu0 %v4675
      %v4711 = vpop.f32.mrb[0].mxu0
      %v4712 = vadd.f32 0.0, %v4711
      %v4713 = vpop.f32.mrb[0].mxu0
      %v4714 = vpop.f32.mrb[0].mxu0
      %v4715 = vpop.f32.mrb[0].mxu0
      %4716 = vdwg.mxu0
      %v4718 = vrot.slane %v4712, 2
      %v4719 = vrot.slane %v4712, 3
      %v4722 = vadd.f32 %v3914, %v4718
      %v4723 = vadd.f32 %v3915, %v4719
      %v4724 = vxor.u32 %v4722, 2147483648
      %v4725 = vxor.u32 %v4723, 2147483648
      %v4726 = vmul.f32 %v4724, 1.442695
      %v4727 = vpow.pop %v4726
      %v4728 = vmul.f32 %v4725, 1.442695
      %v4729 = vpow.pop %v4728
      %v4730 = vadd.f32 %v4727, 1.0
      %v4731 = vadd.f32 %v4729, 1.0
      %v4732 = vrcp.pop %v4730
      %v4733 = vmul.f32 1.0, %v4732
      %v4734 = vrcp.pop %v4731
      %v4735 = vmul.f32 1.0, %v4734
      %v4736 = vtanh.pop %v4722
      %v4737 = vtanh.pop %v4723
      %v4740 = vrot.slane %v4637, 7
      %v4741 = vrot.slane %v4638, 7
      %v4744 = vmul.f32 %v4733, %v4740
      %v4745 = vmul.f32 %v4735, %v4741
      %4748 = vrot.lane.b32.xlu0 %v4736, 64
      %v4749 = vpop.permute.xlu0 %4748
      %4750 = vrot.lane.b32.xlu0 %v4737, 64
      %v4751 = vpop.permute.xlu0 %4750
      %v4754 = vmul.f32 %v4733, %v4749
      %v4755 = vmul.f32 %v4735, %v4751
      %4758 = vrot.lane.b32.xlu0 %v4754, 32
      %v4759 = vpop.permute.xlu0 %4758
      %4760 = vrot.lane.b32.xlu0 %v4755, 32
      %v4761 = vpop.permute.xlu0 %4760
      %v4764 = vadd.f32 %v4744, %v4759
      %v4765 = vadd.f32 %v4745, %v4761
      %v4766 = vtanh.pop %v4764
      %v4767 = vtanh.pop %v4765
      %4770 = vrot.lane.b32.xlu0 %v4766, 64
      %v4771 = vpop.permute.xlu0 %4770
      %4772 = vrot.lane.b32.xlu0 %v4767, 64
      %v4773 = vpop.permute.xlu0 %4772
      %v4776 = vmul.f32 %v4733, %v4771
      %v4777 = vmul.f32 %v4735, %v4773
      %4780 = vrot.lane.b32.xlu0 %v4776, 32
      %v4781 = vpop.permute.xlu0 %4780
      %4782 = vrot.lane.b32.xlu0 %v4777, 32
      %v4783 = vpop.permute.xlu0 %4782
      %vm4786 = vcmask 260102
      %4787 = vst.msk [vmem:[#allocation3] sm:$0x40] %vm4786, %v4781
      %4788 = vst.msk [vmem:[#allocation3 + $0x8] sm:$0x40] %vm4786, %v4783
      %v4789 = vpack.c.bf16 %v4776, %v4776
      %v4790 = vpack.c.bf16 %v4777, %v4777
      %v4793 = vunpack.c.l.b16 %v4789
      %v4794 = vunpack.c.l.b16 %v4790
      %v4795 = vrot.slane %v4793, 6
      %v4796 = vrot.slane %v4794, 5
      %v4797 = vsel %vm3705, %v4796, %v4795
      %v4798 = vpack.c.b16 %v4797, %v4797
      %4799 = vrot.lane.b32.xlu0 %v4798, 32
      %v4800 = vpop.permute.xlu0 %4799
      %v4802 = vsel %vm443, %v4800, 0
      %4804 = vmatprep.subr.bf16.mxu0 0
      %4805 = vmatpush1.bf16.msra.mxu0 %v3920
      %4806 = vmatprep.subr.bf16.mxu0 0
      %4807 = vmatpush1.bf16.msra.mxu0 %v3921
      %4808 = vmatprep.subr.bf16.mxu0 0
      %4809 = vmatpush1.bf16.msra.mxu0 0
      %4810 = vmatprep.subr.bf16.mxu0 0
      %4811 = vmatpush1.bf16.msra.mxu0 0
      %4812 = vmatprep.subr.bf16.mxu0 0
      %4813 = vmatpush1.bf16.msra.mxu0 0
      %4814 = vmatprep.subr.bf16.mxu0 0
      %4815 = vmatpush1.bf16.msra.mxu0 0
      %4816 = vmatprep.subr.bf16.mxu0 0
      %4817 = vmatpush1.bf16.msra.mxu0 0
      %4818 = vmatprep.subr.bf16.mxu0 0
      %4819 = vmatpush1.bf16.msra.mxu0 0
      %4820 = vmatprep.subr.bf16.mxu0 0
      %4821 = vmatpush1.bf16.msra.mxu0 0
      %4822 = vmatprep.subr.bf16.mxu0 0
      %4823 = vmatpush1.bf16.msra.mxu0 0
      %4824 = vmatprep.subr.bf16.mxu0 0
      %4825 = vmatpush1.bf16.msra.mxu0 0
      %4826 = vmatprep.subr.bf16.mxu0 0
      %4827 = vmatpush1.bf16.msra.mxu0 0
      %4828 = vmatprep.subr.bf16.mxu0 0
      %4829 = vmatpush1.bf16.msra.mxu0 0
      %4830 = vmatprep.subr.bf16.mxu0 0
      %4831 = vmatpush1.bf16.msra.mxu0 0
      %4832 = vmatprep.subr.bf16.mxu0 0
      %4833 = vmatpush1.bf16.msra.mxu0 0
      %4834 = vmatprep.subr.bf16.mxu0 0
      %4835 = vmatpush1.bf16.msra.mxu0 0
      %4836 = vmatprep.mubr.bf16.mxu0 0
      %4837 = vmatmul.mubr.bf16.gmra.mrb[0].mxu0 %v4802
      %v4838 = vpop.f32.mrb[0].mxu0
      %v4839 = vadd.f32 0.0, %v4838
      %v4840 = vpop.f32.mrb[0].mxu0
      %v4841 = vpop.f32.mrb[0].mxu0
      %v4842 = vpop.f32.mrb[0].mxu0
      %4843 = vdwg.mxu0
      %v4845 = vrot.slane %v4839, 1
      %v4846 = vrot.slane %v4839, 2
      %v4849 = vadd.f32 %v3914, %v4845
      %v4850 = vadd.f32 %v3915, %v4846
      %v4851 = vxor.u32 %v4849, 2147483648
      %v4852 = vxor.u32 %v4850, 2147483648
      %v4853 = vmul.f32 %v4851, 1.442695
      %v4854 = vpow.pop %v4853
      %v4855 = vmul.f32 %v4852, 1.442695
      %v4856 = vpow.pop %v4855
      %v4857 = vadd.f32 %v4854, 1.0
      %v4858 = vadd.f32 %v4856, 1.0
      %v4859 = vrcp.pop %v4857
      %v4860 = vmul.f32 1.0, %v4859
      %v4861 = vrcp.pop %v4858
      %v4862 = vmul.f32 1.0, %v4861
      %v4863 = vtanh.pop %v4849
      %v4864 = vtanh.pop %v4850
      %v4867 = vrot.slane %v4764, 7
      %v4868 = vrot.slane %v4765, 7
      %v4871 = vmul.f32 %v4860, %v4867
      %v4872 = vmul.f32 %v4862, %v4868
      %4875 = vrot.lane.b32.xlu0 %v4863, 64
      %v4876 = vpop.permute.xlu0 %4875
      %4877 = vrot.lane.b32.xlu0 %v4864, 64
      %v4878 = vpop.permute.xlu0 %4877
      %v4881 = vmul.f32 %v4860, %v4876
      %v4882 = vmul.f32 %v4862, %v4878
      %4885 = vrot.lane.b32.xlu0 %v4881, 32
      %v4886 = vpop.permute.xlu0 %4885
      %4887 = vrot.lane.b32.xlu0 %v4882, 32
      %v4888 = vpop.permute.xlu0 %4887
      %v4891 = vadd.f32 %v4871, %v4886
      %v4892 = vadd.f32 %v4872, %v4888
      %v4893 = vtanh.pop %v4891
      %v4894 = vtanh.pop %v4892
      %4897 = vrot.lane.b32.xlu0 %v4893, 64
      %v4898 = vpop.permute.xlu0 %4897
      %4899 = vrot.lane.b32.xlu0 %v4894, 64
      %v4900 = vpop.permute.xlu0 %4899
      %v4903 = vmul.f32 %v4860, %v4898
      %v4904 = vmul.f32 %v4862, %v4900
      %4907 = vrot.lane.b32.xlu0 %v4903, 32
      %v4908 = vpop.permute.xlu0 %4907
      %4909 = vrot.lane.b32.xlu0 %v4904, 32
      %v4910 = vpop.permute.xlu0 %4909
      %vm4913 = vcmask 261127
      %4914 = vst.msk [vmem:[#allocation3] sm:$0x80] %vm4913, %v4908
      %4915 = vst.msk [vmem:[#allocation3 + $0x8] sm:$0x80] %vm4913, %v4910
      %v4916 = vld [vmem:[#allocation3] sm:$0xff]
      %v4917 = vld [vmem:[#allocation3 + $0x8] sm:$0xff]
      %v4918 = vpack.c.bf16 %v4917, %v4916
      %v4919 = vld [vmem:[%s13] sm:$0xff]
      %v4920 = vld [vmem:[%s13 + $0x8] sm:$0xff]
      %v4921 = vld [vmem:[%s13 + $0x10] sm:$0xff]
      %v4922 = vld [vmem:[%s13 + $0x18] sm:$0xff]
      %v4923 = vpack.c.bf16 %v4920, %v4919
      %v4924 = vpack.c.bf16 %v4922, %v4921
      %v4925 = vld [vmem:[#allocation7] sm:$0x1]
      %v4927 = vlaneseq
      %v4928 = vshrl.u32 %v4927, 7
      %v4929 = vsub.s32 0, %v4928
      %v4930 = vrot.slane %v4925, %v4929
      %v4933 = vsel %vm443, %v4918, 0
      %4935 = vmatprep.subr.bf16.mxu0 0
      %4936 = vmatpush1.bf16.msra.mxu0 %v4923
      %4937 = vmatprep.subr.bf16.mxu0 0
      %4938 = vmatpush1.bf16.msra.mxu0 %v4924
      %4939 = vmatprep.subr.bf16.mxu0 0
      %4940 = vmatpush1.bf16.msra.mxu0 0
      %4941 = vmatprep.subr.bf16.mxu0 0
      %4942 = vmatpush1.bf16.msra.mxu0 0
      %4943 = vmatprep.subr.bf16.mxu0 0
      %4944 = vmatpush1.bf16.msra.mxu0 0
      %4945 = vmatprep.subr.bf16.mxu0 0
      %4946 = vmatpush1.bf16.msra.mxu0 0
      %4947 = vmatprep.subr.bf16.mxu0 0
      %4948 = vmatpush1.bf16.msra.mxu0 0
      %4949 = vmatprep.subr.bf16.mxu0 0
      %4950 = vmatpush1.bf16.msra.mxu0 0
      %4951 = vmatprep.subr.bf16.mxu0 0
      %4952 = vmatpush1.bf16.msra.mxu0 0
      %4953 = vmatprep.subr.bf16.mxu0 0
      %4954 = vmatpush1.bf16.msra.mxu0 0
      %4955 = vmatprep.subr.bf16.mxu0 0
      %4956 = vmatpush1.bf16.msra.mxu0 0
      %4957 = vmatprep.subr.bf16.mxu0 0
      %4958 = vmatpush1.bf16.msra.mxu0 0
      %4959 = vmatprep.subr.bf16.mxu0 0
      %4960 = vmatpush1.bf16.msra.mxu0 0
      %4961 = vmatprep.subr.bf16.mxu0 0
      %4962 = vmatpush1.bf16.msra.mxu0 0
      %4963 = vmatprep.subr.bf16.mxu0 0
      %4964 = vmatpush1.bf16.msra.mxu0 0
      %4965 = vmatprep.subr.bf16.mxu0 0
      %4966 = vmatpush1.bf16.msra.mxu0 0
      %4967 = vmatprep.mubr.bf16.mxu0 0
      %4968 = vmatmul.mubr.bf16.gmra.mrb[0].mxu0 %v4933
      %v4969 = vpop.f32.mrb[0].mxu0
      %v4970 = vadd.f32 %v4930, %v4969
      %v4971 = vpop.f32.mrb[0].mxu0
      %v4972 = vpop.f32.mrb[0].mxu0
      %v4973 = vadd.f32 %v4930, %v4972
      %v4974 = vpop.f32.mrb[0].mxu0
      %4975 = vdwg.mxu0
      %v4976 = vld [vmem:[%s4] sm:$0xff]
      %v4977 = vld [vmem:[%s4 + $0x8] sm:$0xff]
      %v4978 = vmul.f32 %v4970, %v4976
      %v4979 = vmul.f32 %v4973, %v4977
      %v4980 = vsel %vm3469, %v4978, 0.0
      %4981 = vadd.xlane.f32.xlu0 %v4980
      %v4982 = vpop.xlane.xlu0 %4981
      %v4983 = vsel %vm3469, %v4979, 0.0
      %4984 = vadd.xlane.f32.xlu0 %v4983
      %v4985 = vpop.xlane.xlu0 %4984
      %v4986 = vsel %vm3469, %v4976, 0.0
      %4987 = vadd.xlane.f32.xlu0 %v4986
      %v4988 = vpop.xlane.xlu0 %4987
      %v4989 = vsel %vm3469, %v4977, 0.0
      %4990 = vadd.xlane.f32.xlu0 %v4989
      %v4991 = vpop.xlane.xlu0 %4990
      %vm4992 = vcmp.gt.f32.partialorder %v4988, 0.0
      %vm4993 = vcmp.gt.f32.partialorder %v4991, 0.0
      %v4994 = vsel %vm4992, %v4988, 1.0
      %v4995 = vsel %vm4993, %v4991, 1.0
      %v4996 = vrcp.pop %v4994
      %v4997 = vmul.f32 %v4982, %v4996
      %v4998 = vrcp.pop %v4995
      %v4999 = vmul.f32 %v4985, %v4998
      %v5000 = vld [vmem:[%s5] sm:$0xff]
      %v5001 = vld [vmem:[%s5 + $0x8] sm:$0xff]
      %v5002 = vmax.f32 %v4997, 0.0
      %v5003 = vmax.f32 %v4999, 0.0
      %v5004 = vmul.f32 %v4997, %v5000
      %v5005 = vmul.f32 %v4999, %v5001
      %v5006 = vsub.f32 %v5002, %v5004
      %v5007 = vsub.f32 %v5003, %v5005
      %v5008 = vand.u32 2147483647, %v4997
      %v5009 = vand.u32 2147483647, %v4999
      %v5010 = vsub.f32 0.0, %v5008
      %v5011 = vsub.f32 0.0, %v5009
      %v5012 = vmul.f32 %v5010, 1.442695
      %v5013 = vpow.pop %v5012
      %v5014 = vmul.f32 %v5011, 1.442695
      %v5015 = vpow.pop %v5014
      %v5016 = vadd.f32 %v5013, 1.0
      %v5017 = vadd.f32 %v5015, 1.0
      %v5018 = vlog2.pop %v5016
      %v5019 = vmul.f32 %v5018, 0.6931472
      %v5020 = vlog2.pop %v5017
      %v5021 = vmul.f32 %v5020, 0.6931472
      %v5022 = vadd.f32 %v5006, %v5019
      %v5023 = vadd.f32 %v5007, %v5021
      %v5024 = vsel %vm4992, 1, 0
      %v5025 = vsel %vm4993, 1, 0
      %v5026 = vcvt.s32.f32 %v5024
      %v5027 = vcvt.s32.f32 %v5025
      %vm5028 = vcmask 7168
      %v5029 = vsel %vm5028, %v5026, 0.0
      %v5030 = vsel %vm5028, %v5027, 0.0
      %v5031 = vadd.f32 %v5029, %v5030
      %5032 = vadd.xlane.f32.xlu0 %v5031
      %v5033 = vpop.xlane.xlu0 %5032
      %v5034 = vrot.slane %v5033, 4
      %v5035 = vadd.f32 %v5033, %v5034
      %v5036 = vrot.slane %v5035, 2
      %v5037 = vadd.f32 %v5035, %v5036
      %v5038 = vrot.slane %v5037, 1
      %v5039 = vadd.f32 %v5037, %v5038
      %s5040 = vtos %v5039
      %v5041 = vstv %s5040
      %v5042 = vmax.f32 %v5041, 1.0
      %v5043 = vsel %vm4992, %v5022, 0.0
      %v5044 = vsel %vm4993, %v5023, 0.0
      %v5045 = vsel %vm5028, %v5043, 0.0
      %v5046 = vsel %vm5028, %v5044, 0.0
      %v5047 = vadd.f32 %v5045, %v5046
      %5048 = vadd.xlane.f32.xlu0 %v5047
      %v5049 = vpop.xlane.xlu0 %5048
      %v5050 = vrot.slane %v5049, 4
      %v5051 = vadd.f32 %v5049, %v5050
      %v5052 = vrot.slane %v5051, 2
      %v5053 = vadd.f32 %v5051, %v5052
      %v5054 = vrot.slane %v5053, 1
      %v5055 = vadd.f32 %v5053, %v5054
      %s5056 = vtos %v5055
      %v5057 = vstv %s5056
      %v5058 = vrcp.pop %v5042
      %v5059 = vmul.f32 %v5057, %v5058
      %vm5060 = vcmask 0
      %5061 = vst.msk [vmem:[#allocation9] sm:$0x1] %vm5060, %v5059
      %v5062 = vxor.u32 %v4997, 2147483648
      %v5063 = vxor.u32 %v4999, 2147483648
      %v5064 = vmul.f32 %v5062, 1.442695
      %v5065 = vpow.pop %v5064
      %v5066 = vmul.f32 %v5063, 1.442695
      %v5067 = vpow.pop %v5066
      %v5068 = vadd.f32 %v5065, 1.0
      %v5069 = vadd.f32 %v5067, 1.0
      %v5070 = vrcp.pop %v5068
      %v5071 = vmul.f32 1.0, %v5070
      %v5072 = vrcp.pop %v5069
      %v5073 = vmul.f32 1.0, %v5072
      %5074 = vst.msk [vmem:[%s16] sm:$0xff] %vm5028, %v5071
      %5075 = vst.msk [vmem:[%s16 + $0x8] sm:$0xff] %vm5028, %v5073
      %5076 = vst.msk [vmem:[%s17] sm:$0xff] %vm5028, %v5026
      %5077 = vst.msk [vmem:[%s17 + $0x8] sm:$0xff] %vm5028, %v5027
    $region73: #{model_forward_core.1} parent=1 // pred_fallthru
      _
    // Predicated region
    $region74: #{model_forward_core.1} parent=1 // pred_check
      _
    $region75: #{model_forward_core.1} parent=1 // pred_check_branch
      %5079 = sbr.rel (0) target = $region77
    $region76: #{model_forward_core.1} parent=1 // pred_region
      %s5081 = ssub.s32 16, 16
      %5082 = vsyncadd [#allocation6], %s5081
      %s5084 = sshll.u32 [#allocation9], 4
      %s5085 = int_to_ptr.vmem [resolvable:$true] %s5084
      %5087 = dma.vmem_to_hbm [thread:$0]  %s5085, 16, %s15, [#allocation6]
    $region77: #{model_forward_core.1} parent=1 // pred_fallthru
      _
    // Predicated region
    $region78: #{model_forward_core.1} parent=1 // pred_check
      _
    $region79: #{model_forward_core.1} parent=1 // pred_check_branch
      %5089 = sbr.rel (0) target = $region81
    $region80: #{model_forward_core.1} parent=1 // pred_region
      _
    $region81: #{model_forward_core.1} parent=1 // pred_fallthru
      _
    // Predicated region
    $region82: #{model_forward_core.1} parent=1 // pred_check
      _
    $region83: #{model_forward_core.1} parent=1 // pred_check_branch
      %5091 = sbr.rel (0) target = $region85
    $region84: #{model_forward_core.1} parent=1 // pred_region
      _
    $region85: #{model_forward_core.1} parent=1 // pred_fallthru
      _
    // Predicated region
    $region86: #{model_forward_core.1} parent=1 // pred_check
      _
    $region87: #{model_forward_core.1} parent=1 // pred_check_branch
      %5093 = sbr.rel (0) target = $region89
    $region88: #{model_forward_core.1} parent=1 // pred_region
      %5094 = dma.done [#allocation6], 16
    $region89: #{model_forward_core.1} parent=1 // pred_fallthru
      _
    // Predicated region
    $region90: #{model_forward_core.1} parent=1 // pred_check
      _
    $region91: #{model_forward_core.1} parent=1 // pred_check_branch
      %5096 = sbr.rel (0) target = $region93
    $region92: #{model_forward_core.1} parent=1 // pred_region
      _
    $region93: #{model_forward_core.1} parent=1 // pred_fallthru
      _
    // Predicated region
    $region94: #{model_forward_core.1} parent=1 // pred_check
      _
    $region95: #{model_forward_core.1} parent=1 // pred_check_branch
      %5098 = sbr.rel (0) target = $region97
    $region96: #{model_forward_core.1} parent=1 // pred_region
      _
    $region97: #{model_forward_core.1} parent=1 // pred_fallthru
      _
    %5099 = vsyncpa [#allocation5], 1
    %5100 = vsyncpa [#allocation8], 1
    %5101 = vsyncpa [#allocation6], 1

</llo_original>
